<compile_context>
chip_gen: v7x
topology: tpu7x:2x2x1
jax: 0.10.0
libtpu: 0.0.40
codegen_flags: <defaults>
</compile_context>

<pallas_src>
import jax
import jax.numpy as jnp
from jax.experimental import pallas as pl
from jax.experimental.pallas import tpu as pltpu

f32 = jnp.float32
bf16 = jnp.bfloat16

# ----------------------------- configuration ------------------------------
B = 2                       # batch
IMG_H, IMG_W = 128, 128     # small stand-in for the 256x256 input
PATCH = 16
CROP_W = IMG_W - 64         # forward crops columns [32:-32]
Hp, Wp = IMG_H // PATCH, CROP_W // PATCH
N_TOK = Hp * Wp             # 32
M_TOK = B * N_TOK           # 64  -- flattened (batch, token) slab
EMBED = 128                 # stand-in for the ViT-H 1280-dim features
DEPTH = 2
HEADS = 4
HEAD_DIM = EMBED // HEADS   # 32
MLP_DIM = 256
NUM_HAND_JOINTS = 15        # MANO hand pose joints
NUM_BETAS = 10
NUM_VERTS = 64              # synthetic MANO mesh size (real MANO: 778)
NUM_JOINTS_OUT = 21         # MANO output joints (incl. fingertips)
FOCAL_LENGTH = 5000.0
IMAGE_SIZE = 256

PATCH_DIM = 3 * PATCH * PATCH                        # 768
HEAD_OUT = 6 + NUM_HAND_JOINTS * 6 + NUM_BETAS + 3   # 109 real head outputs
HEAD_PAD = 128                                       # lane-dense padded width
REF_IN = EMBED + NUM_VERTS * 3 + 3 + 6 + NUM_HAND_JOINTS * 6 + NUM_BETAS + 2  # 431
REF_IN_PAD = 512                                     # lane-aligned padded K
REF_HID = 128
REF_OUT = HEAD_OUT
REF_PAD = 128
LN_EPS = 1e-6
ATTN_SCALE = 1.0 / (HEAD_DIM ** 0.5)                 # folded into qkv_w at init


# ----------------------------- kernel helpers ------------------------------
def _ln(x, g, b):
    """Row-wise LayerNorm in f32 (lane reduction -> XLU slot)."""
    mu = jnp.mean(x, axis=-1, keepdims=True)
    var = jnp.mean(jnp.square(x - mu), axis=-1, keepdims=True)
    return (x - mu) * jax.lax.rsqrt(var + LN_EPS) * g + b


# ------------------------- patch embedding kernel --------------------------
def _patch_embed_kernel(p_ref, w_ref, b_ref, pos_ref, o_ref):
    # flattened M = B*N_TOK rows, single (M,768)@(768,EMBED) bf16 matmul
    o_ref[...] = (jnp.dot(p_ref[...], w_ref[...], preferred_element_type=f32)
                  + b_ref[...] + pos_ref[...])


def patch_embed(patches, w, bias, pos):
    m = patches.shape[0]
    return pl.pallas_call(
        _patch_embed_kernel,
        out_shape=jax.ShapeDtypeStruct((m, EMBED), f32),
    )(patches, w, bias, pos)


# --------------- depth-fused transformer stack (+ final heads) -------------
def _vit_depth_kernel(tok_in_ref,
                      ln1g_ref, ln1b_ref, qkvw_ref, qkvb_ref,
                      projw_ref, projb_ref, ln2g_ref, ln2b_ref,
                      w1_ref, b1_ref, w2_ref, b2_ref,
                      lnfg_ref, lnfb_ref, hw_ref, hb_ref,
                      pooled_ref, head_ref, tok_ref):
    d = pl.program_id(0)

    @pl.when(d == 0)
    def _():
        tok_ref[...] = tok_in_ref[...]          # token slab becomes VMEM-resident
        pooled_ref[...] = jnp.zeros_like(pooled_ref)
        head_ref[...] = jnp.zeros_like(head_ref)

    x = tok_ref[...]                                             # (M_TOK, EMBED) f32

    # --- attention branch: LN1 -> fused QKV -> head-batched attention ->
    #     single merged output projection + residual ---
    h1 = _ln(x, ln1g_ref[0], ln1b_ref[0])
    qkv = jnp.dot(h1.astype(bf16), qkvw_ref[0],
                  preferred_element_type=f32) + qkvb_ref[0]      # (M_TOK, 3*EMBED)
    qkv3 = qkv.reshape(B, N_TOK, 3 * EMBED)

    # gather per-head q/k/v and batch all heads on the leading axis so each of
    # the two attention matmuls is ONE (HEADS*B)-batched einsum.  The softmax
    # scale is folded into the Q columns of qkv_w at init (no per-head mul).
    q_parts, k_parts, v_parts = [], [], []
    for h in range(HEADS):
        off = h * HEAD_DIM
        q_parts.append(qkv3[:, :, off:off + HEAD_DIM])
        k_parts.append(qkv3[:, :, EMBED + off:EMBED + off + HEAD_DIM])
        v_parts.append(qkv3[:, :, 2 * EMBED + off:2 * EMBED + off + HEAD_DIM])
    qh = jnp.concatenate(q_parts, axis=0).astype(bf16)   # (HEADS*B, N_TOK, HEAD_DIM)
    kh = jnp.concatenate(k_parts, axis=0).astype(bf16)
    vh = jnp.concatenate(v_parts, axis=0).astype(bf16)

    s = jnp.einsum('bqd,bkd->bqk', qh, kh, preferred_element_type=f32)
    s = s - jnp.max(s, axis=-1, keepdims=True)
    pexp = jnp.exp(s)
    pexp = pexp * pl.reciprocal(jnp.sum(pexp, axis=-1, keepdims=True), approx=True)
    oh = jnp.einsum('bqk,bkd->bqd', pexp.astype(bf16), vh,
                    preferred_element_type=f32)           # (HEADS*B, N_TOK, HEAD_DIM)

    # merge heads back to (M_TOK, EMBED) then ONE K=EMBED output projection
    o_merged = jnp.concatenate([oh[h * B:(h + 1) * B] for h in range(HEADS)],
                               axis=-1).reshape(M_TOK, EMBED)
    attn = jnp.dot(o_merged.astype(bf16), projw_ref[0], preferred_element_type=f32)
    x = x + attn + projb_ref[0]

    # --- MLP branch (LN2 -> MLP1 + GELU -> MLP2 + residual) ---
    h2 = _ln(x, ln2g_ref[0], ln2b_ref[0])
    hm = jnp.dot(h2.astype(bf16), w1_ref[0], preferred_element_type=f32) + b1_ref[0]
    # TODO(synk): PyTorch ViT uses exact erf GELU; tanh approximation used here.
    hm = jax.nn.gelu(hm, approximate=True)
    mlp = jnp.dot(hm.astype(bf16), w2_ref[0], preferred_element_type=f32) + b2_ref[0]
    x = x + mlp

    tok_ref[...] = x                                       # carry to next depth step

    # --- last block: final LN + per-sample mean pool + fused prediction heads ---
    @pl.when(d == DEPTH - 1)
    def _():
        normed = _ln(x, lnfg_ref[...], lnfb_ref[...])
        pooled = jnp.mean(normed.reshape(B, N_TOK, EMBED), axis=1)   # (B, EMBED)
        pooled_ref[...] = pooled
        head_ref[...] = jnp.dot(pooled.astype(bf16), hw_ref[...],
                                preferred_element_type=f32) + hb_ref[...]


def vit_blocks(p, tokens):
    flops = (DEPTH * (2 * M_TOK * EMBED * 3 * EMBED
                      + 4 * HEADS * B * N_TOK * N_TOK * HEAD_DIM
                      + 2 * M_TOK * EMBED * EMBED
                      + 4 * M_TOK * EMBED * MLP_DIM)
             + 2 * B * EMBED * HEAD_PAD)
    trans = DEPTH * (HEADS * B * N_TOK * N_TOK + M_TOK * MLP_DIM + 4 * M_TOK)
    bytes_acc = (M_TOK * EMBED * 4
                 + DEPTH * 2 * (3 * EMBED * EMBED + EMBED * EMBED
                                + 2 * EMBED * MLP_DIM)
                 + 2 * B * HEAD_PAD * 4)

    def wspec(shape):                    # per-depth stacked weight
        return pl.BlockSpec(shape, lambda d: (d, 0, 0))

    def cspec(shape):                    # constant (fetched once, stays resident)
        n = len(shape)
        return pl.BlockSpec(shape, lambda d, _n=n: (0,) * _n)

    return pl.pallas_call(
        _vit_depth_kernel,
        out_shape=(jax.ShapeDtypeStruct((B, EMBED), f32),      # pooled feature
                   jax.ShapeDtypeStruct((B, HEAD_PAD), f32)),   # fused head outputs
        grid=(DEPTH,),
        in_specs=[
            cspec((M_TOK, EMBED)),                 # tokens
            wspec((1, 1, EMBED)),                  # ln1_g
            wspec((1, 1, EMBED)),                  # ln1_b
            wspec((1, EMBED, 3 * EMBED)),          # qkv_w (bf16)
            wspec((1, 1, 3 * EMBED)),              # qkv_b
            wspec((1, EMBED, EMBED)),              # proj_w (bf16)
            wspec((1, 1, EMBED)),                  # proj_b
            wspec((1, 1, EMBED)),                  # ln2_g
            wspec((1, 1, EMBED)),                  # ln2_b
            wspec((1, EMBED, MLP_DIM)),            # mlp_w1 (bf16)
            wspec((1, 1, MLP_DIM)),                # mlp_b1
            wspec((1, MLP_DIM, EMBED)),            # mlp_w2 (bf16)
            wspec((1, 1, EMBED)),                  # mlp_b2
            cspec((1, EMBED)),                     # ln_f_g
            cspec((1, EMBED)),                     # ln_f_b
            cspec((EMBED, HEAD_PAD)),              # head_w (bf16)
            cspec((1, HEAD_PAD)),                  # head_b
        ],
        out_specs=(cspec((B, EMBED)), cspec((B, HEAD_PAD))),
        scratch_shapes=[pltpu.VMEM((M_TOK, EMBED), f32)],       # resident token slab
        compiler_params=pltpu.CompilerParams(dimension_semantics=("arbitrary",)),
        cost_estimate=pl.CostEstimate(flops=int(flops), transcendentals=int(trans),
                                      bytes_accessed=int(bytes_acc)),
    )(tokens,
      p['ln1_g'], p['ln1_b'], p['qkv_w'], p['qkv_b'],
      p['proj_w'], p['proj_b'], p['ln2_g'], p['ln2_b'],
      p['mlp_w1'], p['mlp_b1'], p['mlp_w2'], p['mlp_b2'],
      p['ln_f_g'], p['ln_f_b'], p['head_w'], p['head_b'])


# ---------------------------- fused RefineNet MLP ---------------------------
def _refine_mlp_kernel(x_ref, w1_ref, b1_ref, w2_ref, b2_ref, o_ref):
    h = jnp.dot(x_ref[...], w1_ref[...], preferred_element_type=f32) + b1_ref[...]
    h = jax.nn.gelu(h, approximate=True)
    o_ref[...] = jnp.dot(h.astype(bf16), w2_ref[...],
                         preferred_element_type=f32) + b2_ref[...]


def refine_mlp(feat, w1, b1, w2, b2):
    return pl.pallas_call(
        _refine_mlp_kernel,
        out_shape=jax.ShapeDtypeStruct((feat.shape[0], REF_PAD), f32),
    )(feat, w1, b1, w2, b2)


# ------------------------------- glue ops ----------------------------------
def rot6d_to_rotmat(x):
    """(..., 6) continuous 6D representation -> (-1, 3, 3) rotation matrices."""
    x = x.reshape(-1, 2, 3)
    a1, a2 = x[:, 0], x[:, 1]
    b1 = a1 / (jnp.linalg.norm(a1, axis=-1, keepdims=True) + 1e-8)
    a2p = a2 - jnp.sum(b1 * a2, axis=-1, keepdims=True) * b1
    b2 = a2p / (jnp.linalg.norm(a2p, axis=-1, keepdims=True) + 1e-8)
    b3 = jnp.cross(b1, b2)
    return jnp.stack([b1, b2, b3], axis=-1)


# ------------------------------- submodules ---------------------------------
def vit_backbone(p, x):
    """x: cropped NCHW image -> (temp_mano_params, pred_cam, feats, pooled)."""
    b, c, h, w = x.shape
    hp_, wp_ = h // PATCH, w // PATCH
    m = b * hp_ * wp_
    # patchify with PyTorch Conv2d flatten order (C, ph, pw), flatten (B, N_TOK)->M
    # TODO(synk): hoist this NCHW patchify transpose into the patch-embed kernel
    # (Element-indexed BlockSpec); under jit XLA fuses it into a single copy here.
    patches = x.reshape(b, c, hp_, PATCH, wp_, PATCH)
    patches = jnp.transpose(patches, (0, 2, 4, 1, 3, 5)).reshape(m, c * PATCH * PATCH)
    patches = patches.astype(bf16)                       # halve patch-embed input DMA
    pos = jnp.broadcast_to(p['pos_embed'], (b, hp_ * wp_, EMBED)).reshape(m, EMBED)

    tokens = patch_embed(patches, p['patch_w'], p['patch_b'], pos)
    pooled, head = vit_blocks(p, tokens)                 # one fused depth-loop call

    go6 = head[:, :6]
    hp6 = head[:, 6:6 + NUM_HAND_JOINTS * 6]
    betas = head[:, 6 + NUM_HAND_JOINTS * 6:6 + NUM_HAND_JOINTS * 6 + NUM_BETAS]
    cam = head[:, HEAD_OUT - 3:HEAD_OUT]

    temp_mano_params = {
        'global_orient': rot6d_to_rotmat(go6).reshape(b, 9),
        'hand_pose': rot6d_to_rotmat(hp6).reshape(b, NUM_HAND_JOINTS * 9),
        'betas': betas,
    }
    pred_mano_feats = {'global_orient': go6, 'hand_pose': hp6,
                       'betas': betas, 'cam': cam}
    # `pooled` stands in for vit_out: the (approximated) RefineNet only
    # global-pools the ViT feature map, which the backbone kernel already did.
    return temp_mano_params, cam, pred_mano_feats, pooled


def mano_layer(p, global_orient, hand_pose, betas, pose2rot=False, **kwargs):
    """Synthetic MANO with pose2rot=False semantics (rotmats in).

    The tiny K=3 / N=3 matmuls stay in XLA (VPU work; the MXU + a pallas
    launch per op was pure overhead).
    """
    del pose2rot, kwargs
    b = betas.shape[0]
    v_shaped = p['v_template'][None] + jnp.einsum(
        'bk,kv->bv', betas, p['shapedirs']).reshape(b, NUM_VERTS, 3)
    ident = jnp.eye(3, dtype=f32)
    pose_feat = (hand_pose.reshape(b, NUM_HAND_JOINTS, 3, 3) - ident).reshape(
        b, NUM_HAND_JOINTS * 9)
    v_posed = v_shaped + jnp.einsum(
        'bk,kv->bv', pose_feat, p['posedirs']).reshape(b, NUM_VERTS, 3)
    joints = jnp.einsum('jv,bvc->bjc', p['J_regressor'], v_posed)
    r = global_orient.reshape(b, 3, 3)
    vertices = jnp.einsum('bvc,bdc->bvd', v_posed, r)
    joints = jnp.einsum('bjc,bdc->bjd', joints, r)
    # TODO(synk): full MANO kinematic-chain LBS (per-joint rigid transforms +
    # skinning weights) is not replicated; only blend shapes, joint regression
    # and the root rotation are.
    return vertices, joints


def refine_net(p, pooled, temp_vertices, pred_cam, pred_mano_feats, focal_length):
    b = pooled.shape[0]
    # TODO(synk): the original RefineNet projects temp vertices to the image and
    # grid-samples multi-scale features; approximated here by global pooling +
    # concatenation of the vertex coordinates.
    feat = jnp.concatenate([
        pooled,
        temp_vertices.reshape(b, -1),
        pred_cam,
        pred_mano_feats['global_orient'],
        pred_mano_feats['hand_pose'],
        pred_mano_feats['betas'],
        focal_length,
    ], axis=-1)
    feat = jnp.pad(feat, ((0, 0), (0, REF_IN_PAD - REF_IN))).astype(bf16)
    delta = refine_mlp(feat, p['ref_w1'], p['ref_b1'], p['ref_w2'], p['ref_b2'])
    delta = delta[:, :REF_OUT]
    d_go, d_hp, d_betas, d_cam = jnp.split(
        delta, [6, 6 + NUM_HAND_JOINTS * 6, 6 + NUM_HAND_JOINTS * 6 + NUM_BETAS],
        axis=-1)
    go6 = pred_mano_feats['global_orient'] + d_go
    hp6 = pred_mano_feats['hand_pose'] + d_hp
    betas = pred_mano_feats['betas'] + d_betas
    cam = pred_cam + d_cam
    return {
        'global_orient': rot6d_to_rotmat(go6).reshape(b, 1, 3, 3),
        'hand_pose': rot6d_to_rotmat(hp6).reshape(b, NUM_HAND_JOINTS, 3, 3),
        'betas': betas,
        'pred_cam': cam,
    }


# ------------------------------- WiLor.forward ------------------------------
def wilor_forward(params, x):
    batch_size = x.shape[0]
    temp_mano_params, pred_cam, pred_mano_feats, pooled = vit_backbone(
        params, x[:, :, :, 32:-32])
    focal_length = FOCAL_LENGTH * jnp.ones((batch_size, 2), x.dtype)

    temp_mano_params['global_orient'] = temp_mano_params['global_orient'].reshape(
        batch_size, -1, 3, 3)
    temp_mano_params['hand_pose'] = temp_mano_params['hand_pose'].reshape(
        batch_size, -1, 3, 3)
    temp_mano_params['betas'] = temp_mano_params['betas'].reshape(batch_size, -1)

    temp_vertices, _ = mano_layer(params, **temp_mano_params, pose2rot=False)

    pred_mano_params = refine_net(params, pooled, temp_vertices, pred_cam,
                                  pred_mano_feats, focal_length)

    pred_vertices, pred_keypoints_3d = mano_layer(params, **pred_mano_params,
                                                  pose2rot=False)
    pred_mano_params['pred_keypoints_3d'] = pred_keypoints_3d.reshape(
        batch_size, -1, 3)
    pred_mano_params['pred_vertices'] = pred_vertices.reshape(batch_size, -1, 3)
    return pred_mano_params


# ------------------------------- parameters ---------------------------------
def init_params(key):
    keys = iter(jax.random.split(key, 160))

    def nrm(shape, scale=0.02):
        return (scale * jax.random.normal(next(keys), shape)).astype(f32)

    id6 = jnp.array([1., 0., 0., 0., 1., 0.], f32)

    # the four heads fused into one lane-dense (EMBED, 128) weight (109 real)
    head_w = jnp.concatenate([
        nrm((EMBED, 6)),
        nrm((EMBED, NUM_HAND_JOINTS * 6)),
        nrm((EMBED, NUM_BETAS)),
        nrm((EMBED, 3)),
    ], axis=1)
    head_w = jnp.pad(head_w, ((0, 0), (0, HEAD_PAD - HEAD_OUT)))
    head_b = jnp.concatenate([
        id6, jnp.tile(id6, NUM_HAND_JOINTS),
        jnp.zeros((NUM_BETAS,), f32), jnp.zeros((3,), f32)])
    head_b = jnp.pad(head_b, (0, HEAD_PAD - HEAD_OUT)).reshape(1, HEAD_PAD)

    p = {
        # MXU weights stored bf16 (f32 accumulation in-kernel); biases/LN in f32
        'patch_w': nrm((PATCH_DIM, EMBED)).astype(bf16),
        'patch_b': jnp.zeros((1, EMBED), f32),
        'pos_embed': nrm((1, N_TOK, EMBED)),
        'ln_f_g': jnp.ones((1, EMBED), f32),
        'ln_f_b': jnp.zeros((1, EMBED), f32),
        'head_w': head_w.astype(bf16),
        'head_b': head_b,
        # synthetic MANO buffers (XLA side)
        'v_template': nrm((NUM_VERTS, 3), scale=0.1),
        'shapedirs': nrm((NUM_BETAS, NUM_VERTS * 3), scale=0.01),
        'posedirs': nrm((NUM_HAND_JOINTS * 9, NUM_VERTS * 3), scale=0.01),
        'J_regressor': jax.nn.softmax(nrm((NUM_JOINTS_OUT, NUM_VERTS), 1.0), -1),
    }

    # per-block params, stacked along a leading depth axis for the fused kernel
    blocks = []
    for _ in range(DEPTH):
        q_w = nrm((EMBED, EMBED)) * ATTN_SCALE     # fold softmax scale into Q
        k_w = nrm((EMBED, EMBED))
        v_w = nrm((EMBED, EMBED))
        blocks.append({
            'ln1_g': jnp.ones((1, EMBED), f32), 'ln1_b': jnp.zeros((1, EMBED), f32),
            'qkv_w': jnp.concatenate([q_w, k_w, v_w], axis=1).astype(bf16),
            'qkv_b': jnp.zeros((1, 3 * EMBED), f32),
            'proj_w': nrm((EMBED, EMBED)).astype(bf16),
            'proj_b': jnp.zeros((1, EMBED), f32),
            'ln2_g': jnp.ones((1, EMBED), f32), 'ln2_b': jnp.zeros((1, EMBED), f32),
            'mlp_w1': nrm((EMBED, MLP_DIM)).astype(bf16),
            'mlp_b1': jnp.zeros((1, MLP_DIM), f32),
            'mlp_w2': nrm((MLP_DIM, EMBED)).astype(bf16),
            'mlp_b2': jnp.zeros((1, EMBED), f32),
        })
    for name in blocks[0]:
        p[name] = jnp.stack([blk[name] for blk in blocks], axis=0)

    # RefineNet MLP: K padded to 512, output padded to 128 (lane-dense)
    ref_w1 = nrm((REF_IN, REF_HID))
    p['ref_w1'] = jnp.pad(ref_w1, ((0, REF_IN_PAD - REF_IN), (0, 0))).astype(bf16)
    p['ref_b1'] = jnp.zeros((1, REF_HID), f32)
    ref_w2 = nrm((REF_HID, REF_OUT))
    p['ref_w2'] = jnp.pad(ref_w2, ((0, 0), (0, REF_PAD - REF_OUT))).astype(bf16)
    p['ref_b2'] = jnp.zeros((1, REF_PAD), f32)
    return p


# --------------------------------- main --------------------------------------
if __name__ == "__main__":
    key = jax.random.PRNGKey(0)
    pkey, xkey = jax.random.split(key)
    params = init_params(pkey)
    x = jax.random.normal(xkey, (B, 3, IMG_H, IMG_W), dtype=f32)

    fwd = jax.jit(wilor_forward)
    out = fwd(params, x)
    out = jax.block_until_ready(out)

    assert out['global_orient'].shape == (B, 1, 3, 3)
    assert out['hand_pose'].shape == (B, NUM_HAND_JOINTS, 3, 3)
    assert out['betas'].shape == (B, NUM_BETAS)
    assert out['pred_cam'].shape == (B, 3)
    assert out['pred_keypoints_3d'].shape == (B, NUM_JOINTS_OUT, 3)
    assert out['pred_vertices'].shape == (B, NUM_VERTS, 3)
    assert all(jnp.all(jnp.isfinite(v)) for v in jax.tree_util.tree_leaves(out))

    print("KERNEL_OK")
</pallas_src>

<mosaic_0001>
module attributes {stable_mosaic.version = 11 : i64} {
  func.func @_patch_embed_kernel(%arg0: memref<64x768xbf16, #tpu.memory_space<vmem>>, %arg1: memref<768x128xbf16, #tpu.memory_space<vmem>>, %arg2: memref<1x128xf32, #tpu.memory_space<vmem>>, %arg3: memref<64x128xf32, #tpu.memory_space<vmem>>, %arg4: memref<64x128xf32, #tpu.memory_space<vmem>>) attributes {dimension_semantics = [], scalar_prefetch = 0 : i64, scratch_operands = 0 : i64, tpu.core_type = #tpu.core_type<tc>} {
    %c0 = arith.constant 0 : index
    %c0_0 = arith.constant 0 : index
    %0 = vector.load %arg0[%c0, %c0_0] : memref<64x768xbf16, #tpu.memory_space<vmem>>, vector<64x768xbf16>
    %c0_1 = arith.constant 0 : index
    %c0_2 = arith.constant 0 : index
    %1 = vector.load %arg1[%c0_1, %c0_2] : memref<768x128xbf16, #tpu.memory_space<vmem>>, vector<768x128xbf16>
    %cst = arith.constant dense<0.000000e+00> : vector<64x128xf32>
    %2 = tpu.matmul %0, %1, %cst {dimension_numbers = #tpu.dot_dimension_numbers<[1], [0], [0], [1], [0, 0, 1, 1], [], []>} : vector<64x768xbf16>, vector<768x128xbf16>, vector<64x128xf32> -> vector<64x128xf32>
    %c0_3 = arith.constant 0 : index
    %c0_4 = arith.constant 0 : index
    %3 = vector.load %arg2[%c0_3, %c0_4] : memref<1x128xf32, #tpu.memory_space<vmem>>, vector<1x128xf32>
    %4 = vector.broadcast %3 : vector<1x128xf32> to vector<64x128xf32>
    %5 = arith.addf %2, %4 : vector<64x128xf32>
    %c0_5 = arith.constant 0 : index
    %c0_6 = arith.constant 0 : index
    %6 = vector.load %arg3[%c0_5, %c0_6] : memref<64x128xf32, #tpu.memory_space<vmem>>, vector<64x128xf32>
    %7 = arith.addf %5, %6 : vector<64x128xf32>
    %c0_7 = arith.constant 0 : index
    %c0_8 = arith.constant 0 : index
    %8 = vector.load %arg4[%c0_7, %c0_8] : memref<64x128xf32, #tpu.memory_space<vmem>>, vector<64x128xf32>
    tpu.vector_store %arg4[%c0_7, %c0_8], %7 {strides = array<i32>} : memref<64x128xf32, #tpu.memory_space<vmem>>, vector<64x128xf32>,
    return
  }
}

module attributes {stable_mosaic.version = 11 : i64} {
  func.func @_vit_depth_kernel(%arg0: i32, %arg1: memref<64x128xf32, #tpu.memory_space<vmem>>, %arg2: memref<1x1x128xf32, #tpu.memory_space<vmem>>, %arg3: memref<1x1x128xf32, #tpu.memory_space<vmem>>, %arg4: memref<1x128x384xbf16, #tpu.memory_space<vmem>>, %arg5: memref<1x1x384xf32, #tpu.memory_space<vmem>>, %arg6: memref<1x128x128xbf16, #tpu.memory_space<vmem>>, %arg7: memref<1x1x128xf32, #tpu.memory_space<vmem>>, %arg8: memref<1x1x128xf32, #tpu.memory_space<vmem>>, %arg9: memref<1x1x128xf32, #tpu.memory_space<vmem>>, %arg10: memref<1x128x256xbf16, #tpu.memory_space<vmem>>, %arg11: memref<1x1x256xf32, #tpu.memory_space<vmem>>, %arg12: memref<1x256x128xbf16, #tpu.memory_space<vmem>>, %arg13: memref<1x1x128xf32, #tpu.memory_space<vmem>>, %arg14: memref<1x128xf32, #tpu.memory_space<vmem>>, %arg15: memref<1x128xf32, #tpu.memory_space<vmem>>, %arg16: memref<128x128xbf16, #tpu.memory_space<vmem>>, %arg17: memref<1x128xf32, #tpu.memory_space<vmem>>, %arg18: memref<2x128xf32, #tpu.memory_space<vmem>>, %arg19: memref<2x128xf32, #tpu.memory_space<vmem>>, %arg20: memref<64x128xf32, #tpu.memory_space<vmem>>) attributes {dimension_semantics = [#tpu.dimension_semantics<arbitrary>], iteration_bounds = array<i64: 2>, scalar_prefetch = 0 : i64, scratch_operands = 1 : i64, tpu.core_type = #tpu.core_type<tc>, window_params = [{pipeline_mode = #tpu.pipeline_mode<synchronous>, transform_indices = @transform_0, window_bounds = array<i64: 64, 128>}, {transform_indices = @transform_1, window_bounds = array<i64: 1, 1, 128>}, {transform_indices = @transform_2, window_bounds = array<i64: 1, 1, 128>}, {transform_indices = @transform_3, window_bounds = array<i64: 1, 128, 384>}, {transform_indices = @transform_4, window_bounds = array<i64: 1, 1, 384>}, {transform_indices = @transform_5, window_bounds = array<i64: 1, 128, 128>}, {transform_indices = @transform_6, window_bounds = array<i64: 1, 1, 128>}, {transform_indices = @transform_7, window_bounds = array<i64: 1, 1, 128>}, {transform_indices = @transform_8, window_bounds = array<i64: 1, 1, 128>}, {transform_indices = @transform_9, window_bounds = array<i64: 1, 128, 256>}, {transform_indices = @transform_10, window_bounds = array<i64: 1, 1, 256>}, {transform_indices = @transform_11, window_bounds = array<i64: 1, 256, 128>}, {transform_indices = @transform_12, window_bounds = array<i64: 1, 1, 128>}, {pipeline_mode = #tpu.pipeline_mode<synchronous>, transform_indices = @transform_13, window_bounds = array<i64: 1, 128>}, {pipeline_mode = #tpu.pipeline_mode<synchronous>, transform_indices = @transform_14, window_bounds = array<i64: 1, 128>}, {pipeline_mode = #tpu.pipeline_mode<synchronous>, transform_indices = @transform_15, window_bounds = array<i64: 128, 128>}, {pipeline_mode = #tpu.pipeline_mode<synchronous>, transform_indices = @transform_16, window_bounds = array<i64: 1, 128>}, {pipeline_mode = #tpu.pipeline_mode<synchronous>, transform_indices = @transform_17, window_bounds = array<i64: 2, 128>}, {pipeline_mode = #tpu.pipeline_mode<synchronous>, transform_indices = @transform_18, window_bounds = array<i64: 2, 128>}]} {
    %c0_i32 = arith.constant 0 : i32
    %0 = arith.cmpi eq, %arg0, %c0_i32 : i32
    %1 = arith.extui %0 : i1 to i32
    %c0_i32_0 = arith.constant 0 : i32
    %2 = arith.cmpi ne, %1, %c0_i32_0 : i32
    scf.if %2 {
      %c0_62 = arith.constant 0 : index
      %c0_63 = arith.constant 0 : index
      %145 = vector.load %arg1[%c0_62, %c0_63] : memref<64x128xf32, #tpu.memory_space<vmem>>, vector<64x128xf32>
      %c0_64 = arith.constant 0 : index
      %c0_65 = arith.constant 0 : index
      %146 = vector.load %arg20[%c0_64, %c0_65] : memref<64x128xf32, #tpu.memory_space<vmem>>, vector<64x128xf32>
      tpu.vector_store %arg20[%c0_64, %c0_65], %145 {strides = array<i32>} : memref<64x128xf32, #tpu.memory_space<vmem>>, vector<64x128xf32>,
      %cst_66 = arith.constant 0.000000e+00 : f32
      %147 = vector.broadcast %cst_66 : f32 to vector<2x128xf32>
      %c0_67 = arith.constant 0 : index
      %c0_68 = arith.constant 0 : index
      %148 = vector.load %arg18[%c0_67, %c0_68] : memref<2x128xf32, #tpu.memory_space<vmem>>, vector<2x128xf32>
      tpu.vector_store %arg18[%c0_67, %c0_68], %147 {strides = array<i32>} : memref<2x128xf32, #tpu.memory_space<vmem>>, vector<2x128xf32>,
      %cst_69 = arith.constant 0.000000e+00 : f32
      %149 = vector.broadcast %cst_69 : f32 to vector<2x128xf32>
      %c0_70 = arith.constant 0 : index
      %c0_71 = arith.constant 0 : index
      %150 = vector.load %arg19[%c0_70, %c0_71] : memref<2x128xf32, #tpu.memory_space<vmem>>, vector<2x128xf32>
      tpu.vector_store %arg19[%c0_70, %c0_71], %149 {strides = array<i32>} : memref<2x128xf32, #tpu.memory_space<vmem>>, vector<2x128xf32>,
    } else {
    }
    %c0 = arith.constant 0 : index
    %c0_1 = arith.constant 0 : index
    %3 = vector.load %arg20[%c0, %c0_1] : memref<64x128xf32, #tpu.memory_space<vmem>>, vector<64x128xf32>
    %c0_2 = arith.constant 0 : index
    %c0_3 = arith.constant 0 : index
    %c0_4 = arith.constant 0 : index
    %4 = vector.load %arg2[%c0_2, %c0_3, %c0_4] : memref<1x1x128xf32, #tpu.memory_space<vmem>>, vector<1x1x128xf32>
    %5 = vector.shape_cast %4 : vector<1x1x128xf32> to vector<1x128xf32>
    %c0_5 = arith.constant 0 : index
    %c0_6 = arith.constant 0 : index
    %c0_7 = arith.constant 0 : index
    %6 = vector.load %arg3[%c0_5, %c0_6, %c0_7] : memref<1x1x128xf32, #tpu.memory_space<vmem>>, vector<1x1x128xf32>
    %7 = vector.shape_cast %6 : vector<1x1x128xf32> to vector<1x128xf32>
    %cst = arith.constant dense<0.000000e+00> : vector<64xf32>
    %8 = vector.multi_reduction <add>, %3, %cst [1] : vector<64x128xf32> to vector<64xf32>
    %9 = vector.shape_cast %8 : vector<64xf32> to vector<64x1xf32>
    %cst_8 = arith.constant 1.280000e+02 : f32
    %10 = vector.broadcast %cst_8 : f32 to vector<64x1xf32>
    %11 = arith.divf %9, %10 : vector<64x1xf32>
    %12 = vector.broadcast %11 : vector<64x1xf32> to vector<64x128xf32>
    %13 = arith.subf %3, %12 : vector<64x128xf32>
    %14 = arith.mulf %13, %13 : vector<64x128xf32>
    %cst_9 = arith.constant dense<0.000000e+00> : vector<64xf32>
    %15 = vector.multi_reduction <add>, %14, %cst_9 [1] : vector<64x128xf32> to vector<64xf32>
    %16 = vector.shape_cast %15 : vector<64xf32> to vector<64x1xf32>
    %cst_10 = arith.constant 1.280000e+02 : f32
    %17 = vector.broadcast %cst_10 : f32 to vector<64x1xf32>
    %18 = arith.divf %16, %17 : vector<64x1xf32>
    %19 = vector.broadcast %11 : vector<64x1xf32> to vector<64x128xf32>
    %20 = arith.subf %3, %19 : vector<64x128xf32>
    %cst_11 = arith.constant 9.99999997E-7 : f32
    %21 = vector.broadcast %cst_11 : f32 to vector<64x1xf32>
    %22 = arith.addf %18, %21 : vector<64x1xf32>
    %23 = math.rsqrt %22 : vector<64x1xf32>
    %24 = vector.broadcast %23 : vector<64x1xf32> to vector<64x128xf32>
    %25 = arith.mulf %20, %24 : vector<64x128xf32>
    %26 = vector.broadcast %5 : vector<1x128xf32> to vector<64x128xf32>
    %27 = arith.mulf %25, %26 : vector<64x128xf32>
    %28 = vector.broadcast %7 : vector<1x128xf32> to vector<64x128xf32>
    %29 = arith.addf %27, %28 : vector<64x128xf32>
    %30 = arith.truncf %29 : vector<64x128xf32> to vector<64x128xbf16>
    %c0_12 = arith.constant 0 : index
    %c0_13 = arith.constant 0 : index
    %c0_14 = arith.constant 0 : index
    %31 = vector.load %arg4[%c0_12, %c0_13, %c0_14] : memref<1x128x384xbf16, #tpu.memory_space<vmem>>, vector<1x128x384xbf16>
    %32 = vector.shape_cast %31 : vector<1x128x384xbf16> to vector<128x384xbf16>
    %cst_15 = arith.constant dense<0.000000e+00> : vector<64x384xf32>
    %33 = tpu.matmul %30, %32, %cst_15 {dimension_numbers = #tpu.dot_dimension_numbers<[1], [0], [0], [1], [0, 0, 1, 1], [], []>} : vector<64x128xbf16>, vector<128x384xbf16>, vector<64x384xf32> -> vector<64x384xf32>
    %c0_16 = arith.constant 0 : index
    %c0_17 = arith.constant 0 : index
    %c0_18 = arith.constant 0 : index
    %34 = vector.load %arg5[%c0_16, %c0_17, %c0_18] : memref<1x1x384xf32, #tpu.memory_space<vmem>>, vector<1x1x384xf32>
    %35 = vector.shape_cast %34 : vector<1x1x384xf32> to vector<1x384xf32>
    %36 = vector.broadcast %35 : vector<1x384xf32> to vector<64x384xf32>
    %37 = arith.addf %33, %36 : vector<64x384xf32>
    %38 = vector.shape_cast %37 : vector<64x384xf32> to vector<2x32x384xf32>
    %39 = vector.extract_strided_slice %38 {offsets = [0, 0, 0], sizes = [2, 32, 32], strides = [1, 1, 1]} : vector<2x32x384xf32> to vector<2x32x32xf32>
    %40 = vector.extract_strided_slice %38 {offsets = [0, 0, 128], sizes = [2, 32, 32], strides = [1, 1, 1]} : vector<2x32x384xf32> to vector<2x32x32xf32>
    %41 = vector.extract_strided_slice %38 {offsets = [0, 0, 256], sizes = [2, 32, 32], strides = [1, 1, 1]} : vector<2x32x384xf32> to vector<2x32x32xf32>
    %42 = vector.extract_strided_slice %38 {offsets = [0, 0, 32], sizes = [2, 32, 32], strides = [1, 1, 1]} : vector<2x32x384xf32> to vector<2x32x32xf32>
    %43 = vector.extract_strided_slice %38 {offsets = [0, 0, 160], sizes = [2, 32, 32], strides = [1, 1, 1]} : vector<2x32x384xf32> to vector<2x32x32xf32>
    %44 = vector.extract_strided_slice %38 {offsets = [0, 0, 288], sizes = [2, 32, 32], strides = [1, 1, 1]} : vector<2x32x384xf32> to vector<2x32x32xf32>
    %45 = vector.extract_strided_slice %38 {offsets = [0, 0, 64], sizes = [2, 32, 32], strides = [1, 1, 1]} : vector<2x32x384xf32> to vector<2x32x32xf32>
    %46 = vector.extract_strided_slice %38 {offsets = [0, 0, 192], sizes = [2, 32, 32], strides = [1, 1, 1]} : vector<2x32x384xf32> to vector<2x32x32xf32>
    %47 = vector.extract_strided_slice %38 {offsets = [0, 0, 320], sizes = [2, 32, 32], strides = [1, 1, 1]} : vector<2x32x384xf32> to vector<2x32x32xf32>
    %48 = vector.extract_strided_slice %38 {offsets = [0, 0, 96], sizes = [2, 32, 32], strides = [1, 1, 1]} : vector<2x32x384xf32> to vector<2x32x32xf32>
    %49 = vector.extract_strided_slice %38 {offsets = [0, 0, 224], sizes = [2, 32, 32], strides = [1, 1, 1]} : vector<2x32x384xf32> to vector<2x32x32xf32>
    %50 = vector.extract_strided_slice %38 {offsets = [0, 0, 352], sizes = [2, 32, 32], strides = [1, 1, 1]} : vector<2x32x384xf32> to vector<2x32x32xf32>
    %51 = tpu.concatenate %39, %42, %45, %48 in 0 : vector<2x32x32xf32>, vector<2x32x32xf32>, vector<2x32x32xf32>, vector<2x32x32xf32> -> vector<8x32x32xf32>
    %52 = arith.truncf %51 : vector<8x32x32xf32> to vector<8x32x32xbf16>
    %53 = tpu.concatenate %40, %43, %46, %49 in 0 : vector<2x32x32xf32>, vector<2x32x32xf32>, vector<2x32x32xf32>, vector<2x32x32xf32> -> vector<8x32x32xf32>
    %54 = arith.truncf %53 : vector<8x32x32xf32> to vector<8x32x32xbf16>
    %55 = tpu.concatenate %41, %44, %47, %50 in 0 : vector<2x32x32xf32>, vector<2x32x32xf32>, vector<2x32x32xf32>, vector<2x32x32xf32> -> vector<8x32x32xf32>
    %56 = arith.truncf %55 : vector<8x32x32xf32> to vector<8x32x32xbf16>
    "tpu.trace_start"() <{level = 10 : i32, message = "bqd,bkd->bqk"}> : () -> ()
    %cst_19 = arith.constant dense<0.000000e+00> : vector<8x32x32xf32>
    %57 = tpu.matmul %52, %54, %cst_19 {dimension_numbers = #tpu.dot_dimension_numbers<[2], [2], [1], [1], [0, 0, 0, 1, 1, 1], [0], [0]>} : vector<8x32x32xbf16>, vector<8x32x32xbf16>, vector<8x32x32xf32> -> vector<8x32x32xf32>
    "tpu.trace_stop"() : () -> ()
    %cst_20 = arith.constant dense<0xFF800000> : vector<8x32xf32>
    %58 = vector.multi_reduction <maximumf>, %57, %cst_20 [2] : vector<8x32x32xf32> to vector<8x32xf32>
    %59 = vector.shape_cast %58 : vector<8x32xf32> to vector<8x32x1xf32>
    %60 = vector.broadcast %59 : vector<8x32x1xf32> to vector<8x32x32xf32>
    %61 = arith.subf %57, %60 : vector<8x32x32xf32>
    %62 = math.exp %61 : vector<8x32x32xf32>
    %cst_21 = arith.constant dense<0.000000e+00> : vector<8x32xf32>
    %63 = vector.multi_reduction <add>, %62, %cst_21 [2] : vector<8x32x32xf32> to vector<8x32xf32>
    %64 = vector.shape_cast %63 : vector<8x32xf32> to vector<8x32x1xf32>
    %65 = tpu.reciprocal %64 {approx = true} : vector<8x32x1xf32> -> vector<8x32x1xf32>
    %66 = vector.broadcast %65 : vector<8x32x1xf32> to vector<8x32x32xf32>
    %67 = arith.mulf %62, %66 : vector<8x32x32xf32>
    %68 = arith.truncf %67 : vector<8x32x32xf32> to vector<8x32x32xbf16>
    "tpu.trace_start"() <{level = 10 : i32, message = "bqk,bkd->bqd"}> : () -> ()
    %cst_22 = arith.constant dense<0.000000e+00> : vector<8x32x32xf32>
    %69 = tpu.matmul %68, %56, %cst_22 {dimension_numbers = #tpu.dot_dimension_numbers<[2], [1], [1], [2], [0, 0, 0, 1, 1, 2], [0], [0]>} : vector<8x32x32xbf16>, vector<8x32x32xbf16>, vector<8x32x32xf32> -> vector<8x32x32xf32>
    "tpu.trace_stop"() : () -> ()
    %70 = vector.extract_strided_slice %69 {offsets = [0, 0, 0], sizes = [2, 32, 32], strides = [1, 1, 1]} : vector<8x32x32xf32> to vector<2x32x32xf32>
    %71 = vector.extract_strided_slice %69 {offsets = [2, 0, 0], sizes = [2, 32, 32], strides = [1, 1, 1]} : vector<8x32x32xf32> to vector<2x32x32xf32>
    %72 = vector.extract_strided_slice %69 {offsets = [4, 0, 0], sizes = [2, 32, 32], strides = [1, 1, 1]} : vector<8x32x32xf32> to vector<2x32x32xf32>
    %73 = vector.extract_strided_slice %69 {offsets = [6, 0, 0], sizes = [2, 32, 32], strides = [1, 1, 1]} : vector<8x32x32xf32> to vector<2x32x32xf32>
    %74 = tpu.concatenate %70, %71, %72, %73 in 2 : vector<2x32x32xf32>, vector<2x32x32xf32>, vector<2x32x32xf32>, vector<2x32x32xf32> -> vector<2x32x128xf32>
    %75 = vector.shape_cast %74 : vector<2x32x128xf32> to vector<64x128xf32>
    %76 = arith.truncf %75 : vector<64x128xf32> to vector<64x128xbf16>
    %c0_23 = arith.constant 0 : index
    %c0_24 = arith.constant 0 : index
    %c0_25 = arith.constant 0 : index
    %77 = vector.load %arg6[%c0_23, %c0_24, %c0_25] : memref<1x128x128xbf16, #tpu.memory_space<vmem>>, vector<1x128x128xbf16>
    %78 = vector.shape_cast %77 : vector<1x128x128xbf16> to vector<128x128xbf16>
    %cst_26 = arith.constant dense<0.000000e+00> : vector<64x128xf32>
    %79 = tpu.matmul %76, %78, %cst_26 {dimension_numbers = #tpu.dot_dimension_numbers<[1], [0], [0], [1], [0, 0, 1, 1], [], []>} : vector<64x128xbf16>, vector<128x128xbf16>, vector<64x128xf32> -> vector<64x128xf32>
    %80 = arith.addf %3, %79 : vector<64x128xf32>
    %c0_27 = arith.constant 0 : index
    %c0_28 = arith.constant 0 : index
    %c0_29 = arith.constant 0 : index
    %81 = vector.load %arg7[%c0_27, %c0_28, %c0_29] : memref<1x1x128xf32, #tpu.memory_space<vmem>>, vector<1x1x128xf32>
    %82 = vector.shape_cast %81 : vector<1x1x128xf32> to vector<1x128xf32>
    %83 = vector.broadcast %82 : vector<1x128xf32> to vector<64x128xf32>
    %84 = arith.addf %80, %83 : vector<64x128xf32>
    %c0_30 = arith.constant 0 : index
    %c0_31 = arith.constant 0 : index
    %c0_32 = arith.constant 0 : index
    %85 = vector.load %arg8[%c0_30, %c0_31, %c0_32] : memref<1x1x128xf32, #tpu.memory_space<vmem>>, vector<1x1x128xf32>
    %86 = vector.shape_cast %85 : vector<1x1x128xf32> to vector<1x128xf32>
    %c0_33 = arith.constant 0 : index
    %c0_34 = arith.constant 0 : index
    %c0_35 = arith.constant 0 : index
    %87 = vector.load %arg9[%c0_33, %c0_34, %c0_35] : memref<1x1x128xf32, #tpu.memory_space<vmem>>, vector<1x1x128xf32>
    %88 = vector.shape_cast %87 : vector<1x1x128xf32> to vector<1x128xf32>
    %cst_36 = arith.constant dense<0.000000e+00> : vector<64xf32>
    %89 = vector.multi_reduction <add>, %84, %cst_36 [1] : vector<64x128xf32> to vector<64xf32>
    %90 = vector.shape_cast %89 : vector<64xf32> to vector<64x1xf32>
    %cst_37 = arith.constant 1.280000e+02 : f32
    %91 = vector.broadcast %cst_37 : f32 to vector<64x1xf32>
    %92 = arith.divf %90, %91 : vector<64x1xf32>
    %93 = vector.broadcast %92 : vector<64x1xf32> to vector<64x128xf32>
    %94 = arith.subf %84, %93 : vector<64x128xf32>
    %95 = arith.mulf %94, %94 : vector<64x128xf32>
    %cst_38 = arith.constant dense<0.000000e+00> : vector<64xf32>
    %96 = vector.multi_reduction <add>, %95, %cst_38 [1] : vector<64x128xf32> to vector<64xf32>
    %97 = vector.shape_cast %96 : vector<64xf32> to vector<64x1xf32>
    %cst_39 = arith.constant 1.280000e+02 : f32
    %98 = vector.broadcast %cst_39 : f32 to vector<64x1xf32>
    %99 = arith.divf %97, %98 : vector<64x1xf32>
    %100 = vector.broadcast %92 : vector<64x1xf32> to vector<64x128xf32>
    %101 = arith.subf %84, %100 : vector<64x128xf32>
    %cst_40 = arith.constant 9.99999997E-7 : f32
    %102 = vector.broadcast %cst_40 : f32 to vector<64x1xf32>
    %103 = arith.addf %99, %102 : vector<64x1xf32>
    %104 = math.rsqrt %103 : vector<64x1xf32>
    %105 = vector.broadcast %104 : vector<64x1xf32> to vector<64x128xf32>
    %106 = arith.mulf %101, %105 : vector<64x128xf32>
    %107 = vector.broadcast %86 : vector<1x128xf32> to vector<64x128xf32>
    %108 = arith.mulf %106, %107 : vector<64x128xf32>
    %109 = vector.broadcast %88 : vector<1x128xf32> to vector<64x128xf32>
    %110 = arith.addf %108, %109 : vector<64x128xf32>
    %111 = arith.truncf %110 : vector<64x128xf32> to vector<64x128xbf16>
    %c0_41 = arith.constant 0 : index
    %c0_42 = arith.constant 0 : index
    %c0_43 = arith.constant 0 : index
    %112 = vector.load %arg10[%c0_41, %c0_42, %c0_43] : memref<1x128x256xbf16, #tpu.memory_space<vmem>>, vector<1x128x256xbf16>
    %113 = vector.shape_cast %112 : vector<1x128x256xbf16> to vector<128x256xbf16>
    %cst_44 = arith.constant dense<0.000000e+00> : vector<64x256xf32>
    %114 = tpu.matmul %111, %113, %cst_44 {dimension_numbers = #tpu.dot_dimension_numbers<[1], [0], [0], [1], [0, 0, 1, 1], [], []>} : vector<64x128xbf16>, vector<128x256xbf16>, vector<64x256xf32> -> vector<64x256xf32>
    %c0_45 = arith.constant 0 : index
    %c0_46 = arith.constant 0 : index
    %c0_47 = arith.constant 0 : index
    %115 = vector.load %arg11[%c0_45, %c0_46, %c0_47] : memref<1x1x256xf32, #tpu.memory_space<vmem>>, vector<1x1x256xf32>
    %116 = vector.shape_cast %115 : vector<1x1x256xf32> to vector<1x256xf32>
    %117 = vector.broadcast %116 : vector<1x256xf32> to vector<64x256xf32>
    %118 = arith.addf %114, %117 : vector<64x256xf32>
    %119 = arith.mulf %118, %118 : vector<64x256xf32>
    %120 = arith.mulf %118, %119 : vector<64x256xf32>
    %cst_48 = arith.constant 4.471500e-02 : f32
    %121 = vector.broadcast %cst_48 : f32 to vector<64x256xf32>
    %122 = arith.mulf %121, %120 : vector<64x256xf32>
    %123 = arith.addf %118, %122 : vector<64x256xf32>
    %cst_49 = arith.constant 0.797884583 : f32
    %124 = vector.broadcast %cst_49 : f32 to vector<64x256xf32>
    %125 = arith.mulf %124, %123 : vector<64x256xf32>
    %126 = math.tanh %125 : vector<64x256xf32>
    %cst_50 = arith.constant 1.000000e+00 : f32
    %127 = vector.broadcast %cst_50 : f32 to vector<64x256xf32>
    %128 = arith.addf %127, %126 : vector<64x256xf32>
    %cst_51 = arith.constant 5.000000e-01 : f32
    %129 = vector.broadcast %cst_51 : f32 to vector<64x256xf32>
    %130 = arith.mulf %129, %128 : vector<64x256xf32>
    %131 = arith.mulf %118, %130 : vector<64x256xf32>
    %132 = arith.truncf %131 : vector<64x256xf32> to vector<64x256xbf16>
    %c0_52 = arith.constant 0 : index
    %c0_53 = arith.constant 0 : index
    %c0_54 = arith.constant 0 : index
    %133 = vector.load %arg12[%c0_52, %c0_53, %c0_54] : memref<1x256x128xbf16, #tpu.memory_space<vmem>>, vector<1x256x128xbf16>
    %134 = vector.shape_cast %133 : vector<1x256x128xbf16> to vector<256x128xbf16>
    %cst_55 = arith.constant dense<0.000000e+00> : vector<64x128xf32>
    %135 = tpu.matmul %132, %134, %cst_55 {dimension_numbers = #tpu.dot_dimension_numbers<[1], [0], [0], [1], [0, 0, 1, 1], [], []>} : vector<64x256xbf16>, vector<256x128xbf16>, vector<64x128xf32> -> vector<64x128xf32>
    %c0_56 = arith.constant 0 : index
    %c0_57 = arith.constant 0 : index
    %c0_58 = arith.constant 0 : index
    %136 = vector.load %arg13[%c0_56, %c0_57, %c0_58] : memref<1x1x128xf32, #tpu.memory_space<vmem>>, vector<1x1x128xf32>
    %137 = vector.shape_cast %136 : vector<1x1x128xf32> to vector<1x128xf32>
    %138 = vector.broadcast %137 : vector<1x128xf32> to vector<64x128xf32>
    %139 = arith.addf %135, %138 : vector<64x128xf32>
    %140 = arith.addf %84, %139 : vector<64x128xf32>
    %c0_59 = arith.constant 0 : index
    %c0_60 = arith.constant 0 : index
    %141 = vector.load %arg20[%c0_59, %c0_60] : memref<64x128xf32, #tpu.memory_space<vmem>>, vector<64x128xf32>
    tpu.vector_store %arg20[%c0_59, %c0_60], %140 {strides = array<i32>} : memref<64x128xf32, #tpu.memory_space<vmem>>, vector<64x128xf32>,
    %c1_i32 = arith.constant 1 : i32
    %142 = arith.cmpi eq, %arg0, %c1_i32 : i32
    %143 = arith.extui %142 : i1 to i32
    %c0_i32_61 = arith.constant 0 : i32
    %144 = arith.cmpi ne, %143, %c0_i32_61 : i32
    scf.if %144 {
      %c0_62 = arith.constant 0 : index
      %c0_63 = arith.constant 0 : index
      %145 = vector.load %arg14[%c0_62, %c0_63] : memref<1x128xf32, #tpu.memory_space<vmem>>, vector<1x128xf32>
      %c0_64 = arith.constant 0 : index
      %c0_65 = arith.constant 0 : index
      %146 = vector.load %arg15[%c0_64, %c0_65] : memref<1x128xf32, #tpu.memory_space<vmem>>, vector<1x128xf32>
      %cst_66 = arith.constant dense<0.000000e+00> : vector<64xf32>
      %147 = vector.multi_reduction <add>, %140, %cst_66 [1] : vector<64x128xf32> to vector<64xf32>
      %148 = vector.shape_cast %147 : vector<64xf32> to vector<64x1xf32>
      %cst_67 = arith.constant 1.280000e+02 : f32
      %149 = vector.broadcast %cst_67 : f32 to vector<64x1xf32>
      %150 = arith.divf %148, %149 : vector<64x1xf32>
      %151 = vector.broadcast %150 : vector<64x1xf32> to vector<64x128xf32>
      %152 = arith.subf %140, %151 : vector<64x128xf32>
      %153 = arith.mulf %152, %152 : vector<64x128xf32>
      %cst_68 = arith.constant dense<0.000000e+00> : vector<64xf32>
      %154 = vector.multi_reduction <add>, %153, %cst_68 [1] : vector<64x128xf32> to vector<64xf32>
      %155 = vector.shape_cast %154 : vector<64xf32> to vector<64x1xf32>
      %cst_69 = arith.constant 1.280000e+02 : f32
      %156 = vector.broadcast %cst_69 : f32 to vector<64x1xf32>
      %157 = arith.divf %155, %156 : vector<64x1xf32>
      %158 = vector.broadcast %150 : vector<64x1xf32> to vector<64x128xf32>
      %159 = arith.subf %140, %158 : vector<64x128xf32>
      %cst_70 = arith.constant 9.99999997E-7 : f32
      %160 = vector.broadcast %cst_70 : f32 to vector<64x1xf32>
      %161 = arith.addf %157, %160 : vector<64x1xf32>
      %162 = math.rsqrt %161 : vector<64x1xf32>
      %163 = vector.broadcast %162 : vector<64x1xf32> to vector<64x128xf32>
      %164 = arith.mulf %159, %163 : vector<64x128xf32>
      %165 = vector.broadcast %145 : vector<1x128xf32> to vector<64x128xf32>
      %166 = arith.mulf %164, %165 : vector<64x128xf32>
      %167 = vector.broadcast %146 : vector<1x128xf32> to vector<64x128xf32>
      %168 = arith.addf %166, %167 : vector<64x128xf32>
      %169 = vector.shape_cast %168 : vector<64x128xf32> to vector<2x32x128xf32>
      %cst_71 = arith.constant dense<0.000000e+00> : vector<2x128xf32>
      %170 = vector.multi_reduction <add>, %169, %cst_71 [1] : vector<2x32x128xf32> to vector<2x128xf32>
      %cst_72 = arith.constant 3.200000e+01 : f32
      %171 = vector.broadcast %cst_72 : f32 to vector<2x128xf32>
      %172 = arith.divf %170, %171 : vector<2x128xf32>
      %c0_73 = arith.constant 0 : index
      %c0_74 = arith.constant 0 : index
      %173 = vector.load %arg18[%c0_73, %c0_74] : memref<2x128xf32, #tpu.memory_space<vmem>>, vector<2x128xf32>
      tpu.vector_store %arg18[%c0_73, %c0_74], %172 {strides = array<i32>} : memref<2x128xf32, #tpu.memory_space<vmem>>, vector<2x128xf32>,
      %174 = arith.truncf %172 : vector<2x128xf32> to vector<2x128xbf16>
      %c0_75 = arith.constant 0 : index
      %c0_76 = arith.constant 0 : index
      %175 = vector.load %arg16[%c0_75, %c0_76] : memref<128x128xbf16, #tpu.memory_space<vmem>>, vector<128x128xbf16>
      %cst_77 = arith.constant dense<0.000000e+00> : vector<2x128xf32>
      %176 = tpu.matmul %174, %175, %cst_77 {dimension_numbers = #tpu.dot_dimension_numbers<[1], [0], [0], [1], [0, 0, 1, 1], [], []>} : vector<2x128xbf16>, vector<128x128xbf16>, vector<2x128xf32> -> vector<2x128xf32>
      %c0_78 = arith.constant 0 : index
      %c0_79 = arith.constant 0 : index
      %177 = vector.load %arg17[%c0_78, %c0_79] : memref<1x128xf32, #tpu.memory_space<vmem>>, vector<1x128xf32>
      %178 = vector.broadcast %177 : vector<1x128xf32> to vector<2x128xf32>
      %179 = arith.addf %176, %178 : vector<2x128xf32>
      %c0_80 = arith.constant 0 : index
      %c0_81 = arith.constant 0 : index
      %180 = vector.load %arg19[%c0_80, %c0_81] : memref<2x128xf32, #tpu.memory_space<vmem>>, vector<2x128xf32>
      tpu.vector_store %arg19[%c0_80, %c0_81], %179 {strides = array<i32>} : memref<2x128xf32, #tpu.memory_space<vmem>>, vector<2x128xf32>,
    } else {
    }
    return
  }
  func.func @transform_0(%arg0: i32) -> (i32, i32) {
    %c0_i32 = arith.constant 0 : i32
    %c0_i32_0 = arith.constant 0 : i32
    %c0_i32_1 = arith.constant 0 : i32
    return %c0_i32, %c0_i32_0 : i32, i32
  }
  func.func @transform_1(%arg0: i32) -> (i32, i32, i32) {
    %c0_i32 = arith.constant 0 : i32
    %c0_i32_0 = arith.constant 0 : i32
    %c0_i32_1 = arith.constant 0 : i32
    return %arg0, %c0_i32, %c0_i32_0 : i32, i32, i32
  }
  func.func @transform_2(%arg0: i32) -> (i32, i32, i32) {
    %c0_i32 = arith.constant 0 : i32
    %c0_i32_0 = arith.constant 0 : i32
    %c0_i32_1 = arith.constant 0 : i32
    return %arg0, %c0_i32, %c0_i32_0 : i32, i32, i32
  }
  func.func @transform_3(%arg0: i32) -> (i32, i32, i32) {
    %c0_i32 = arith.constant 0 : i32
    %c0_i32_0 = arith.constant 0 : i32
    %c0_i32_1 = arith.constant 0 : i32
    return %arg0, %c0_i32, %c0_i32_0 : i32, i32, i32
  }
  func.func @transform_4(%arg0: i32) -> (i32, i32, i32) {
    %c0_i32 = arith.constant 0 : i32
    %c0_i32_0 = arith.constant 0 : i32
    %c0_i32_1 = arith.constant 0 : i32
    return %arg0, %c0_i32, %c0_i32_0 : i32, i32, i32
  }
  func.func @transform_5(%arg0: i32) -> (i32, i32, i32) {
    %c0_i32 = arith.constant 0 : i32
    %c0_i32_0 = arith.constant 0 : i32
    %c0_i32_1 = arith.constant 0 : i32
    return %arg0, %c0_i32, %c0_i32_0 : i32, i32, i32
  }
  func.func @transform_6(%arg0: i32) -> (i32, i32, i32) {
    %c0_i32 = arith.constant 0 : i32
    %c0_i32_0 = arith.constant 0 : i32
    %c0_i32_1 = arith.constant 0 : i32
    return %arg0, %c0_i32, %c0_i32_0 : i32, i32, i32
  }
  func.func @transform_7(%arg0: i32) -> (i32, i32, i32) {
    %c0_i32 = arith.constant 0 : i32
    %c0_i32_0 = arith.constant 0 : i32
    %c0_i32_1 = arith.constant 0 : i32
    return %arg0, %c0_i32, %c0_i32_0 : i32, i32, i32
  }
  func.func @transform_8(%arg0: i32) -> (i32, i32, i32) {
    %c0_i32 = arith.constant 0 : i32
    %c0_i32_0 = arith.constant 0 : i32
    %c0_i32_1 = arith.constant 0 : i32
    return %arg0, %c0_i32, %c0_i32_0 : i32, i32, i32
  }
  func.func @transform_9(%arg0: i32) -> (i32, i32, i32) {
    %c0_i32 = arith.constant 0 : i32
    %c0_i32_0 = arith.constant 0 : i32
    %c0_i32_1 = arith.constant 0 : i32
    return %arg0, %c0_i32, %c0_i32_0 : i32, i32, i32
  }
  func.func @transform_10(%arg0: i32) -> (i32, i32, i32) {
    %c0_i32 = arith.constant 0 : i32
    %c0_i32_0 = arith.constant 0 : i32
    %c0_i32_1 = arith.constant 0 : i32
    return %arg0, %c0_i32, %c0_i32_0 : i32, i32, i32
  }
  func.func @transform_11(%arg0: i32) -> (i32, i32, i32) {
    %c0_i32 = arith.constant 0 : i32
    %c0_i32_0 = arith.constant 0 : i32
    %c0_i32_1 = arith.constant 0 : i32
    return %arg0, %c0_i32, %c0_i32_0 : i32, i32, i32
  }
  func.func @transform_12(%arg0: i32) -> (i32, i32, i32) {
    %c0_i32 = arith.constant 0 : i32
    %c0_i32_0 = arith.constant 0 : i32
    %c0_i32_1 = arith.constant 0 : i32
    return %arg0, %c0_i32, %c0_i32_0 : i32, i32, i32
  }
  func.func @transform_13(%arg0: i32) -> (i32, i32) {
    %c0_i32 = arith.constant 0 : i32
    %c0_i32_0 = arith.constant 0 : i32
    %c0_i32_1 = arith.constant 0 : i32
    return %c0_i32, %c0_i32_0 : i32, i32
  }
  func.func @transform_14(%arg0: i32) -> (i32, i32) {
    %c0_i32 = arith.constant 0 : i32
    %c0_i32_0 = arith.constant 0 : i32
    %c0_i32_1 = arith.constant 0 : i32
    return %c0_i32, %c0_i32_0 : i32, i32
  }
  func.func @transform_15(%arg0: i32) -> (i32, i32) {
    %c0_i32 = arith.constant 0 : i32
    %c0_i32_0 = arith.constant 0 : i32
    %c0_i32_1 = arith.constant 0 : i32
    return %c0_i32, %c0_i32_0 : i32, i32
  }
  func.func @transform_16(%arg0: i32) -> (i32, i32) {
    %c0_i32 = arith.constant 0 : i32
    %c0_i32_0 = arith.constant 0 : i32
    %c0_i32_1 = arith.constant 0 : i32
    return %c0_i32, %c0_i32_0 : i32, i32
  }
  func.func @transform_17(%arg0: i32) -> (i32, i32) {
    %c0_i32 = arith.constant 0 : i32
    %c0_i32_0 = arith.constant 0 : i32
    %c0_i32_1 = arith.constant 0 : i32
    return %c0_i32, %c0_i32_0 : i32, i32
  }
  func.func @transform_18(%arg0: i32) -> (i32, i32) {
    %c0_i32 = arith.constant 0 : i32
    %c0_i32_0 = arith.constant 0 : i32
    %c0_i32_1 = arith.constant 0 : i32
    return %c0_i32, %c0_i32_0 : i32, i32
  }
}

module attributes {stable_mosaic.version = 11 : i64} {
  func.func @_refine_mlp_kernel(%arg0: memref<2x512xbf16, #tpu.memory_space<vmem>>, %arg1: memref<512x128xbf16, #tpu.memory_space<vmem>>, %arg2: memref<1x128xf32, #tpu.memory_space<vmem>>, %arg3: memref<128x128xbf16, #tpu.memory_space<vmem>>, %arg4: memref<1x128xf32, #tpu.memory_space<vmem>>, %arg5: memref<2x128xf32, #tpu.memory_space<vmem>>) attributes {dimension_semantics = [], scalar_prefetch = 0 : i64, scratch_operands = 0 : i64, tpu.core_type = #tpu.core_type<tc>} {
    %c0 = arith.constant 0 : index
    %c0_0 = arith.constant 0 : index
    %0 = vector.load %arg0[%c0, %c0_0] : memref<2x512xbf16, #tpu.memory_space<vmem>>, vector<2x512xbf16>
    %c0_1 = arith.constant 0 : index
    %c0_2 = arith.constant 0 : index
    %1 = vector.load %arg1[%c0_1, %c0_2] : memref<512x128xbf16, #tpu.memory_space<vmem>>, vector<512x128xbf16>
    %cst = arith.constant dense<0.000000e+00> : vector<2x128xf32>
    %2 = tpu.matmul %0, %1, %cst {dimension_numbers = #tpu.dot_dimension_numbers<[1], [0], [0], [1], [0, 0, 1, 1], [], []>} : vector<2x512xbf16>, vector<512x128xbf16>, vector<2x128xf32> -> vector<2x128xf32>
    %c0_3 = arith.constant 0 : index
    %c0_4 = arith.constant 0 : index
    %3 = vector.load %arg2[%c0_3, %c0_4] : memref<1x128xf32, #tpu.memory_space<vmem>>, vector<1x128xf32>
    %4 = vector.broadcast %3 : vector<1x128xf32> to vector<2x128xf32>
    %5 = arith.addf %2, %4 : vector<2x128xf32>
    %6 = arith.mulf %5, %5 : vector<2x128xf32>
    %7 = arith.mulf %5, %6 : vector<2x128xf32>
    %cst_5 = arith.constant 4.471500e-02 : f32
    %8 = vector.broadcast %cst_5 : f32 to vector<2x128xf32>
    %9 = arith.mulf %8, %7 : vector<2x128xf32>
    %10 = arith.addf %5, %9 : vector<2x128xf32>
    %cst_6 = arith.constant 0.797884583 : f32
    %11 = vector.broadcast %cst_6 : f32 to vector<2x128xf32>
    %12 = arith.mulf %11, %10 : vector<2x128xf32>
    %13 = math.tanh %12 : vector<2x128xf32>
    %cst_7 = arith.constant 1.000000e+00 : f32
    %14 = vector.broadcast %cst_7 : f32 to vector<2x128xf32>
    %15 = arith.addf %14, %13 : vector<2x128xf32>
    %cst_8 = arith.constant 5.000000e-01 : f32
    %16 = vector.broadcast %cst_8 : f32 to vector<2x128xf32>
    %17 = arith.mulf %16, %15 : vector<2x128xf32>
    %18 = arith.mulf %5, %17 : vector<2x128xf32>
    %19 = arith.truncf %18 : vector<2x128xf32> to vector<2x128xbf16>
    %c0_9 = arith.constant 0 : index
    %c0_10 = arith.constant 0 : index
    %20 = vector.load %arg3[%c0_9, %c0_10] : memref<128x128xbf16, #tpu.memory_space<vmem>>, vector<128x128xbf16>
    %cst_11 = arith.constant dense<0.000000e+00> : vector<2x128xf32>
    %21 = tpu.matmul %19, %20, %cst_11 {dimension_numbers = #tpu.dot_dimension_numbers<[1], [0], [0], [1], [0, 0, 1, 1], [], []>} : vector<2x128xbf16>, vector<128x128xbf16>, vector<2x128xf32> -> vector<2x128xf32>
    %c0_12 = arith.constant 0 : index
    %c0_13 = arith.constant 0 : index
    %22 = vector.load %arg4[%c0_12, %c0_13] : memref<1x128xf32, #tpu.memory_space<vmem>>, vector<1x128xf32>
    %23 = vector.broadcast %22 : vector<1x128xf32> to vector<2x128xf32>
    %24 = arith.addf %21, %23 : vector<2x128xf32>
    %c0_14 = arith.constant 0 : index
    %c0_15 = arith.constant 0 : index
    %25 = vector.load %arg5[%c0_14, %c0_15] : memref<2x128xf32, #tpu.memory_space<vmem>>, vector<2x128xf32>
    tpu.vector_store %arg5[%c0_14, %c0_15], %24 {strides = array<i32>} : memref<2x128xf32, #tpu.memory_space<vmem>>, vector<2x128xf32>,
    return
  }
}

</mosaic_0001>

<llo_original>
// kernel: wilor_forward.3
$region0: #{wilor_forward.3}
  #allocation0 [shape = 'u32[]', space=smem, size = 0x4, offset = 0x4, fixed_abs, tag = 'smem constant byte address 0x4 - core index']
  #allocation1 [shape = 'u32[144,128]{1,0:T(1,128)}', space=vmem, size = 0x12000, scoped, tag = 'internal scratch']
  %s0 = inlined_call_operand.vmem [shape: bf16[64,768], index: 0, kind: input, shape index: {}]
  %s1 = inlined_call_operand.vmem [shape: bf16[768,128], index: 1, kind: input, shape index: {}]
  %s2 = inlined_call_operand.vmem [shape: f32[1,128], index: 2, kind: input, shape index: {}]
  %s3 = inlined_call_operand.vmem [shape: f32[64,128], index: 3, kind: input, shape index: {}]
  %s4 = inlined_call_operand.vmem [shape: f32[64,128], index: 4, kind: output, shape index: {}]
  %s5 = sld [smem:[#allocation0]]
  $region26: #{wilor_forward.3} parent=0
    _
  %s7 = ssub.s32 1, %s5
  %s8 = scalar_select 0, %s7, %s5
  // Predicated region
  $region2: #{wilor_forward.3} parent=0 // pred_check
    _
  $region3: #{wilor_forward.3} parent=0 // pred_check_branch
    %10 = sbr.rel (0) target = $region5
  $region4: #{wilor_forward.3} parent=0 // pred_region
    _
  $region5: #{wilor_forward.3} parent=0 // pred_fallthru
    _
  // Predicated region
  $region6: #{wilor_forward.3} parent=0 // pred_check
    _
  $region7: #{wilor_forward.3} parent=0 // pred_check_branch
    %12 = sbr.rel (0) target = $region9
  $region8: #{wilor_forward.3} parent=0 // pred_region
    _
  $region9: #{wilor_forward.3} parent=0 // pred_fallthru
    _
  // Predicated region
  $region10: #{wilor_forward.3} parent=0 // pred_check
    _
  $region11: #{wilor_forward.3} parent=0 // pred_check_branch
    %14 = sbr.rel (0) target = $region13
  $region12: #{wilor_forward.3} parent=0 // pred_region
    _
  $region13: #{wilor_forward.3} parent=0 // pred_fallthru
    _
  // Predicated region
  $region14: #{wilor_forward.3} parent=0 // pred_check
    _
  $region15: #{wilor_forward.3} parent=0 // pred_check_branch
    %16 = sbr.rel (0) target = $region17
  $region16: #{wilor_forward.3} parent=0 // pred_region
    _
  $region17: #{wilor_forward.3} parent=0 // pred_fallthru
    _
  %v18 = vld [vmem:[%s0] sm:$0xff]
  %v19 = vld [vmem:[%s0 + $0x8] sm:$0xff]
  %v20 = vld [vmem:[%s0 + $0x10] sm:$0xff]
  %v21 = vld [vmem:[%s0 + $0x18] sm:$0xff]
  %v22 = vld [vmem:[%s0 + $0x20] sm:$0xff]
  %v23 = vld [vmem:[%s0 + $0x28] sm:$0xff]
  %v24 = vld [vmem:[%s0 + $0x30] sm:$0xff]
  %v25 = vld [vmem:[%s0 + $0x38] sm:$0xff]
  %v26 = vld [vmem:[%s0 + $0x40] sm:$0xff]
  %v27 = vld [vmem:[%s0 + $0x48] sm:$0xff]
  %v28 = vld [vmem:[%s0 + $0x50] sm:$0xff]
  %v29 = vld [vmem:[%s0 + $0x58] sm:$0xff]
  %v30 = vld [vmem:[%s0 + $0x60] sm:$0xff]
  %v31 = vld [vmem:[%s0 + $0x68] sm:$0xff]
  %v32 = vld [vmem:[%s0 + $0x70] sm:$0xff]
  %v33 = vld [vmem:[%s0 + $0x78] sm:$0xff]
  %v34 = vld [vmem:[%s0 + $0x80] sm:$0xff]
  %v35 = vld [vmem:[%s0 + $0x88] sm:$0xff]
  %v36 = vld [vmem:[%s0 + $0x90] sm:$0xff]
  %v37 = vld [vmem:[%s0 + $0x98] sm:$0xff]
  %v38 = vld [vmem:[%s0 + $0xa0] sm:$0xff]
  %v39 = vld [vmem:[%s0 + $0xa8] sm:$0xff]
  %v40 = vld [vmem:[%s0 + $0xb0] sm:$0xff]
  %v41 = vld [vmem:[%s0 + $0xb8] sm:$0xff]
  %v42 = vld [vmem:[%s1] sm:$0xf]
  %v43 = vld [vmem:[%s1 + $0x4] sm:$0xf]
  %v44 = vld [vmem:[%s1 + $0x8] sm:$0xf]
  %v45 = vld [vmem:[%s1 + $0xc] sm:$0xf]
  %v46 = vld [vmem:[%s1 + $0x10] sm:$0xf]
  %v47 = vld [vmem:[%s1 + $0x14] sm:$0xf]
  %v48 = vld [vmem:[%s1 + $0x18] sm:$0xf]
  %v49 = vld [vmem:[%s1 + $0x1c] sm:$0xf]
  %v50 = vld [vmem:[%s1 + $0x20] sm:$0xf]
  %v51 = vld [vmem:[%s1 + $0x24] sm:$0xf]
  %v52 = vld [vmem:[%s1 + $0x28] sm:$0xf]
  %v53 = vld [vmem:[%s1 + $0x2c] sm:$0xf]
  %v54 = vld [vmem:[%s1 + $0x30] sm:$0xf]
  %v55 = vld [vmem:[%s1 + $0x34] sm:$0xf]
  %v56 = vld [vmem:[%s1 + $0x38] sm:$0xf]
  %v57 = vld [vmem:[%s1 + $0x3c] sm:$0xf]
  %v58 = vld [vmem:[%s1 + $0x40] sm:$0xf]
  %v59 = vld [vmem:[%s1 + $0x44] sm:$0xf]
  %v60 = vld [vmem:[%s1 + $0x48] sm:$0xf]
  %v61 = vld [vmem:[%s1 + $0x4c] sm:$0xf]
  %v62 = vld [vmem:[%s1 + $0x50] sm:$0xf]
  %v63 = vld [vmem:[%s1 + $0x54] sm:$0xf]
  %v64 = vld [vmem:[%s1 + $0x58] sm:$0xf]
  %v65 = vld [vmem:[%s1 + $0x5c] sm:$0xf]
  %v66 = vld [vmem:[%s1 + $0x60] sm:$0xf]
  %v67 = vld [vmem:[%s1 + $0x64] sm:$0xf]
  %v68 = vld [vmem:[%s1 + $0x68] sm:$0xf]
  %v69 = vld [vmem:[%s1 + $0x6c] sm:$0xf]
  %v70 = vld [vmem:[%s1 + $0x70] sm:$0xf]
  %v71 = vld [vmem:[%s1 + $0x74] sm:$0xf]
  %v72 = vld [vmem:[%s1 + $0x78] sm:$0xf]
  %v73 = vld [vmem:[%s1 + $0x7c] sm:$0xf]
  %v74 = vld [vmem:[%s1 + $0x80] sm:$0xf]
  %v75 = vld [vmem:[%s1 + $0x84] sm:$0xf]
  %v76 = vld [vmem:[%s1 + $0x88] sm:$0xf]
  %v77 = vld [vmem:[%s1 + $0x8c] sm:$0xf]
  %v78 = vld [vmem:[%s1 + $0x90] sm:$0xf]
  %v79 = vld [vmem:[%s1 + $0x94] sm:$0xf]
  %v80 = vld [vmem:[%s1 + $0x98] sm:$0xf]
  %v81 = vld [vmem:[%s1 + $0x9c] sm:$0xf]
  %v82 = vld [vmem:[%s1 + $0xa0] sm:$0xf]
  %v83 = vld [vmem:[%s1 + $0xa4] sm:$0xf]
  %v84 = vld [vmem:[%s1 + $0xa8] sm:$0xf]
  %v85 = vld [vmem:[%s1 + $0xac] sm:$0xf]
  %v86 = vld [vmem:[%s1 + $0xb0] sm:$0xf]
  %v87 = vld [vmem:[%s1 + $0xb4] sm:$0xf]
  %v88 = vld [vmem:[%s1 + $0xb8] sm:$0xf]
  %v89 = vld [vmem:[%s1 + $0xbc] sm:$0xf]
  %v90 = vld [vmem:[%s1 + $0xc0] sm:$0xf]
  %v91 = vld [vmem:[%s1 + $0xc4] sm:$0xf]
  %v92 = vld [vmem:[%s1 + $0xc8] sm:$0xf]
  %v93 = vld [vmem:[%s1 + $0xcc] sm:$0xf]
  %v94 = vld [vmem:[%s1 + $0xd0] sm:$0xf]
  %v95 = vld [vmem:[%s1 + $0xd4] sm:$0xf]
  %v96 = vld [vmem:[%s1 + $0xd8] sm:$0xf]
  %v97 = vld [vmem:[%s1 + $0xdc] sm:$0xf]
  %v98 = vld [vmem:[%s1 + $0xe0] sm:$0xf]
  %v99 = vld [vmem:[%s1 + $0xe4] sm:$0xf]
  %v100 = vld [vmem:[%s1 + $0xe8] sm:$0xf]
  %v101 = vld [vmem:[%s1 + $0xec] sm:$0xf]
  %v102 = vld [vmem:[%s1 + $0xf0] sm:$0xf]
  %v103 = vld [vmem:[%s1 + $0xf4] sm:$0xf]
  %v104 = vld [vmem:[%s1 + $0xf8] sm:$0xf]
  %v105 = vld [vmem:[%s1 + $0xfc] sm:$0xf]
  %v106 = vld [vmem:[%s1 + $0x100] sm:$0xf]
  %v107 = vld [vmem:[%s1 + $0x104] sm:$0xf]
  %v108 = vld [vmem:[%s1 + $0x108] sm:$0xf]
  %v109 = vld [vmem:[%s1 + $0x10c] sm:$0xf]
  %v110 = vld [vmem:[%s1 + $0x110] sm:$0xf]
  %v111 = vld [vmem:[%s1 + $0x114] sm:$0xf]
  %v112 = vld [vmem:[%s1 + $0x118] sm:$0xf]
  %v113 = vld [vmem:[%s1 + $0x11c] sm:$0xf]
  %v114 = vld [vmem:[%s1 + $0x120] sm:$0xf]
  %v115 = vld [vmem:[%s1 + $0x124] sm:$0xf]
  %v116 = vld [vmem:[%s1 + $0x128] sm:$0xf]
  %v117 = vld [vmem:[%s1 + $0x12c] sm:$0xf]
  %v118 = vld [vmem:[%s1 + $0x130] sm:$0xf]
  %v119 = vld [vmem:[%s1 + $0x134] sm:$0xf]
  %v120 = vld [vmem:[%s1 + $0x138] sm:$0xf]
  %v121 = vld [vmem:[%s1 + $0x13c] sm:$0xf]
  %v122 = vld [vmem:[%s1 + $0x140] sm:$0xf]
  %v123 = vld [vmem:[%s1 + $0x144] sm:$0xf]
  %v124 = vld [vmem:[%s1 + $0x148] sm:$0xf]
  %v125 = vld [vmem:[%s1 + $0x14c] sm:$0xf]
  %v126 = vld [vmem:[%s1 + $0x150] sm:$0xf]
  %v127 = vld [vmem:[%s1 + $0x154] sm:$0xf]
  %v128 = vld [vmem:[%s1 + $0x158] sm:$0xf]
  %v129 = vld [vmem:[%s1 + $0x15c] sm:$0xf]
  %v130 = vld [vmem:[%s1 + $0x160] sm:$0xf]
  %v131 = vld [vmem:[%s1 + $0x164] sm:$0xf]
  %v132 = vld [vmem:[%s1 + $0x168] sm:$0xf]
  %v133 = vld [vmem:[%s1 + $0x16c] sm:$0xf]
  %v134 = vld [vmem:[%s1 + $0x170] sm:$0xf]
  %v135 = vld [vmem:[%s1 + $0x174] sm:$0xf]
  %v136 = vld [vmem:[%s1 + $0x178] sm:$0xf]
  %v137 = vld [vmem:[%s1 + $0x17c] sm:$0xf]
  %v138 = vld [vmem:[%s2] sm:$0x1]
  %v140 = vlaneseq
  %v141 = vshrl.u32 %v140, 7
  %v142 = vsub.s32 0, %v141
  %v143 = vrot.slane %v138, %v142
  %v169 = vunpack.c.l.b16 %v18
  %v170 = vunpack.c.h.b16 %v18
  %v171 = vunpack.c.l.b16 %v19
  %v172 = vunpack.c.h.b16 %v19
  %v173 = vunpack.c.l.b16 %v20
  %v174 = vunpack.c.h.b16 %v20
  %v175 = vunpack.c.l.b16 %v21
  %v176 = vunpack.c.h.b16 %v21
  %v177 = vunpack.c.l.b16 %v22
  %v178 = vunpack.c.h.b16 %v22
  %v179 = vunpack.c.l.b16 %v23
  %v180 = vunpack.c.h.b16 %v23
  %v181 = vunpack.c.l.b16 %v24
  %v182 = vunpack.c.h.b16 %v24
  %v183 = vunpack.c.l.b16 %v25
  %v184 = vunpack.c.h.b16 %v25
  %v185 = vunpack.c.l.b16 %v26
  %v186 = vunpack.c.h.b16 %v26
  %v187 = vunpack.c.l.b16 %v27
  %v188 = vunpack.c.h.b16 %v27
  %v189 = vunpack.c.l.b16 %v28
  %v190 = vunpack.c.h.b16 %v28
  %v191 = vunpack.c.l.b16 %v29
  %v192 = vunpack.c.h.b16 %v29
  %v193 = vunpack.c.l.b16 %v30
  %v194 = vunpack.c.h.b16 %v30
  %v195 = vunpack.c.l.b16 %v31
  %v196 = vunpack.c.h.b16 %v31
  %v197 = vunpack.c.l.b16 %v32
  %v198 = vunpack.c.h.b16 %v32
  %v199 = vunpack.c.l.b16 %v33
  %v200 = vunpack.c.h.b16 %v33
  %v201 = vunpack.c.l.b16 %v34
  %v202 = vunpack.c.h.b16 %v34
  %v203 = vunpack.c.l.b16 %v35
  %v204 = vunpack.c.h.b16 %v35
  %v205 = vunpack.c.l.b16 %v36
  %v206 = vunpack.c.h.b16 %v36
  %v207 = vunpack.c.l.b16 %v37
  %v208 = vunpack.c.h.b16 %v37
  %v209 = vunpack.c.l.b16 %v38
  %v210 = vunpack.c.h.b16 %v38
  %v211 = vunpack.c.l.b16 %v39
  %v212 = vunpack.c.h.b16 %v39
  %v213 = vunpack.c.l.b16 %v40
  %v214 = vunpack.c.h.b16 %v40
  %v215 = vunpack.c.l.b16 %v41
  %v216 = vunpack.c.h.b16 %v41
  %v217 = vpack.c.b16 %v175, %v169
  %v218 = vpack.c.b16 %v176, %v170
  %v219 = vpack.c.b16 %v177, %v171
  %v220 = vpack.c.b16 %v178, %v172
  %v221 = vpack.c.b16 %v179, %v173
  %v222 = vpack.c.b16 %v180, %v174
  %v223 = vpack.c.b16 %v187, %v181
  %v224 = vpack.c.b16 %v188, %v182
  %v225 = vpack.c.b16 %v189, %v183
  %v226 = vpack.c.b16 %v190, %v184
  %v227 = vpack.c.b16 %v191, %v185
  %v228 = vpack.c.b16 %v192, %v186
  %v229 = vpack.c.b16 %v199, %v193
  %v230 = vpack.c.b16 %v200, %v194
  %v231 = vpack.c.b16 %v201, %v195
  %v232 = vpack.c.b16 %v202, %v196
  %v233 = vpack.c.b16 %v203, %v197
  %v234 = vpack.c.b16 %v204, %v198
  %v235 = vpack.c.b16 %v211, %v205
  %v236 = vpack.c.b16 %v212, %v206
  %v237 = vpack.c.b16 %v213, %v207
  %v238 = vpack.c.b16 %v214, %v208
  %v239 = vpack.c.b16 %v215, %v209
  %v240 = vpack.c.b16 %v216, %v210
  %v361 = vunpack.c.l.b16 %v42
  %v362 = vunpack.c.l.b16 %v43
  %v363 = vunpack.c.l.b16 %v44
  %v364 = vunpack.c.l.b16 %v45
  %v365 = vunpack.c.l.b16 %v46
  %v366 = vunpack.c.l.b16 %v47
  %v367 = vunpack.c.l.b16 %v48
  %v368 = vunpack.c.l.b16 %v49
  %v369 = vunpack.c.l.b16 %v50
  %v370 = vunpack.c.l.b16 %v51
  %v371 = vunpack.c.l.b16 %v52
  %v372 = vunpack.c.l.b16 %v53
  %v373 = vunpack.c.l.b16 %v54
  %v374 = vunpack.c.l.b16 %v55
  %v375 = vunpack.c.l.b16 %v56
  %v376 = vunpack.c.l.b16 %v57
  %v377 = vunpack.c.l.b16 %v58
  %v378 = vunpack.c.l.b16 %v59
  %v379 = vunpack.c.l.b16 %v60
  %v380 = vunpack.c.l.b16 %v61
  %v381 = vunpack.c.l.b16 %v62
  %v382 = vunpack.c.l.b16 %v63
  %v383 = vunpack.c.l.b16 %v64
  %v384 = vunpack.c.l.b16 %v65
  %v385 = vunpack.c.l.b16 %v66
  %v386 = vunpack.c.l.b16 %v67
  %v387 = vunpack.c.l.b16 %v68
  %v388 = vunpack.c.l.b16 %v69
  %v389 = vunpack.c.l.b16 %v70
  %v390 = vunpack.c.l.b16 %v71
  %v391 = vunpack.c.l.b16 %v72
  %v392 = vunpack.c.l.b16 %v73
  %v393 = vunpack.c.l.b16 %v74
  %v394 = vunpack.c.l.b16 %v75
  %v395 = vunpack.c.l.b16 %v76
  %v396 = vunpack.c.l.b16 %v77
  %v397 = vunpack.c.l.b16 %v78
  %v398 = vunpack.c.l.b16 %v79
  %v399 = vunpack.c.l.b16 %v80
  %v400 = vunpack.c.l.b16 %v81
  %v401 = vunpack.c.l.b16 %v82
  %v402 = vunpack.c.l.b16 %v83
  %v403 = vunpack.c.l.b16 %v84
  %v404 = vunpack.c.l.b16 %v85
  %v405 = vunpack.c.l.b16 %v86
  %v406 = vunpack.c.l.b16 %v87
  %v407 = vunpack.c.l.b16 %v88
  %v408 = vunpack.c.l.b16 %v89
  %v409 = vunpack.c.l.b16 %v90
  %v410 = vunpack.c.l.b16 %v91
  %v411 = vunpack.c.l.b16 %v92
  %v412 = vunpack.c.l.b16 %v93
  %v413 = vunpack.c.l.b16 %v94
  %v414 = vunpack.c.l.b16 %v95
  %v415 = vunpack.c.l.b16 %v96
  %v416 = vunpack.c.l.b16 %v97
  %v417 = vunpack.c.l.b16 %v98
  %v418 = vunpack.c.l.b16 %v99
  %v419 = vunpack.c.l.b16 %v100
  %v420 = vunpack.c.l.b16 %v101
  %v421 = vunpack.c.l.b16 %v102
  %v422 = vunpack.c.l.b16 %v103
  %v423 = vunpack.c.l.b16 %v104
  %v424 = vunpack.c.l.b16 %v105
  %v425 = vunpack.c.l.b16 %v106
  %v426 = vunpack.c.l.b16 %v107
  %v427 = vunpack.c.l.b16 %v108
  %v428 = vunpack.c.l.b16 %v109
  %v429 = vunpack.c.l.b16 %v110
  %v430 = vunpack.c.l.b16 %v111
  %v431 = vunpack.c.l.b16 %v112
  %v432 = vunpack.c.l.b16 %v113
  %v433 = vunpack.c.l.b16 %v114
  %v434 = vunpack.c.l.b16 %v115
  %v435 = vunpack.c.l.b16 %v116
  %v436 = vunpack.c.l.b16 %v117
  %v437 = vunpack.c.l.b16 %v118
  %v438 = vunpack.c.l.b16 %v119
  %v439 = vunpack.c.l.b16 %v120
  %v440 = vunpack.c.l.b16 %v121
  %v441 = vunpack.c.l.b16 %v122
  %v442 = vunpack.c.l.b16 %v123
  %v443 = vunpack.c.l.b16 %v124
  %v444 = vunpack.c.l.b16 %v125
  %v445 = vunpack.c.l.b16 %v126
  %v446 = vunpack.c.l.b16 %v127
  %v447 = vunpack.c.l.b16 %v128
  %v448 = vunpack.c.l.b16 %v129
  %v449 = vunpack.c.l.b16 %v130
  %v450 = vunpack.c.l.b16 %v131
  %v451 = vunpack.c.l.b16 %v132
  %v452 = vunpack.c.l.b16 %v133
  %v453 = vunpack.c.l.b16 %v134
  %v454 = vunpack.c.l.b16 %v135
  %v455 = vunpack.c.l.b16 %v136
  %v456 = vunpack.c.l.b16 %v137
  %v457 = vpack.c.b16 %v362, %v361
  %v458 = vpack.c.b16 %v364, %v363
  %v459 = vpack.c.b16 %v366, %v365
  %v460 = vpack.c.b16 %v368, %v367
  %v461 = vpack.c.b16 %v370, %v369
  %v462 = vpack.c.b16 %v372, %v371
  %v463 = vpack.c.b16 %v374, %v373
  %v464 = vpack.c.b16 %v376, %v375
  %v465 = vpack.c.b16 %v378, %v377
  %v466 = vpack.c.b16 %v380, %v379
  %v467 = vpack.c.b16 %v382, %v381
  %v468 = vpack.c.b16 %v384, %v383
  %v469 = vpack.c.b16 %v386, %v385
  %v470 = vpack.c.b16 %v388, %v387
  %v471 = vpack.c.b16 %v390, %v389
  %v472 = vpack.c.b16 %v392, %v391
  %v473 = vpack.c.b16 %v394, %v393
  %v474 = vpack.c.b16 %v396, %v395
  %v475 = vpack.c.b16 %v398, %v397
  %v476 = vpack.c.b16 %v400, %v399
  %v477 = vpack.c.b16 %v402, %v401
  %v478 = vpack.c.b16 %v404, %v403
  %v479 = vpack.c.b16 %v406, %v405
  %v480 = vpack.c.b16 %v408, %v407
  %v481 = vpack.c.b16 %v410, %v409
  %v482 = vpack.c.b16 %v412, %v411
  %v483 = vpack.c.b16 %v414, %v413
  %v484 = vpack.c.b16 %v416, %v415
  %v485 = vpack.c.b16 %v418, %v417
  %v486 = vpack.c.b16 %v420, %v419
  %v487 = vpack.c.b16 %v422, %v421
  %v488 = vpack.c.b16 %v424, %v423
  %v489 = vpack.c.b16 %v426, %v425
  %v490 = vpack.c.b16 %v428, %v427
  %v491 = vpack.c.b16 %v430, %v429
  %v492 = vpack.c.b16 %v432, %v431
  %v493 = vpack.c.b16 %v434, %v433
  %v494 = vpack.c.b16 %v436, %v435
  %v495 = vpack.c.b16 %v438, %v437
  %v496 = vpack.c.b16 %v440, %v439
  %v497 = vpack.c.b16 %v442, %v441
  %v498 = vpack.c.b16 %v444, %v443
  %v499 = vpack.c.b16 %v446, %v445
  %v500 = vpack.c.b16 %v448, %v447
  %v501 = vpack.c.b16 %v450, %v449
  %v502 = vpack.c.b16 %v452, %v451
  %v503 = vpack.c.b16 %v454, %v453
  %v504 = vpack.c.b16 %v456, %v455
  %553 = vmatprep.subr.bf16.mxu0 0
  %554 = vmatpush1.bf16.msra.mxu0 %v457
  %555 = vmatprep.subr.bf16.mxu0 0
  %556 = vmatpush1.bf16.msra.mxu0 %v458
  %557 = vmatprep.subr.bf16.mxu0 0
  %558 = vmatpush1.bf16.msra.mxu0 %v459
  %559 = vmatprep.subr.bf16.mxu0 0
  %560 = vmatpush1.bf16.msra.mxu0 %v460
  %561 = vmatprep.subr.bf16.mxu0 0
  %562 = vmatpush1.bf16.msra.mxu0 %v461
  %563 = vmatprep.subr.bf16.mxu0 0
  %564 = vmatpush1.bf16.msra.mxu0 %v462
  %565 = vmatprep.subr.bf16.mxu0 0
  %566 = vmatpush1.bf16.msra.mxu0 %v463
  %567 = vmatprep.subr.bf16.mxu0 0
  %568 = vmatpush1.bf16.msra.mxu0 %v464
  %569 = vmatprep.subr.bf16.mxu0 0
  %570 = vmatpush1.bf16.msra.mxu0 %v465
  %571 = vmatprep.subr.bf16.mxu0 0
  %572 = vmatpush1.bf16.msra.mxu0 %v466
  %573 = vmatprep.subr.bf16.mxu0 0
  %574 = vmatpush1.bf16.msra.mxu0 %v467
  %575 = vmatprep.subr.bf16.mxu0 0
  %576 = vmatpush1.bf16.msra.mxu0 %v468
  %577 = vmatprep.subr.bf16.mxu0 0
  %578 = vmatpush1.bf16.msra.mxu0 %v469
  %579 = vmatprep.subr.bf16.mxu0 0
  %580 = vmatpush1.bf16.msra.mxu0 %v470
  %581 = vmatprep.subr.bf16.mxu0 0
  %582 = vmatpush1.bf16.msra.mxu0 %v471
  %583 = vmatprep.subr.bf16.mxu0 0
  %584 = vmatpush1.bf16.msra.mxu0 %v472
  %585 = vmatprep.mubr.bf16.mxu0 %v218
  %586 = vmatmul.mubr.bf16.gmra.mrb[0].mxu0 %v217
  %v587 = vpop.f32.mrb[0].mxu0
  %v588 = vadd.f32 %v143, %v587
  %v589 = vpop.f32.mrb[0].mxu0
  %v590 = vpop.f32.mrb[0].mxu0
  %v591 = vadd.f32 %v143, %v590
  %v592 = vpop.f32.mrb[0].mxu0
  %593 = vmatprep.mubr.bf16.mxu0 %v224
  %594 = vmatmul.mubr.bf16.gmra.mrb[0].mxu0 %v223
  %v595 = vpop.f32.mrb[0].mxu0
  %v596 = vadd.f32 %v143, %v595
  %v597 = vpop.f32.mrb[0].mxu0
  %v598 = vpop.f32.mrb[0].mxu0
  %v599 = vadd.f32 %v143, %v598
  %v600 = vpop.f32.mrb[0].mxu0
  %601 = vmatprep.mubr.bf16.mxu0 %v230
  %602 = vmatmul.mubr.bf16.gmra.mrb[0].mxu0 %v229
  %v603 = vpop.f32.mrb[0].mxu0
  %v604 = vadd.f32 %v143, %v603
  %v605 = vpop.f32.mrb[0].mxu0
  %v606 = vpop.f32.mrb[0].mxu0
  %v607 = vadd.f32 %v143, %v606
  %v608 = vpop.f32.mrb[0].mxu0
  %609 = vmatprep.mubr.bf16.mxu0 %v236
  %610 = vmatmul.mubr.bf16.gmra.mrb[0].mxu0 %v235
  %v611 = vpop.f32.mrb[0].mxu0
  %v612 = vadd.f32 %v143, %v611
  %v613 = vpop.f32.mrb[0].mxu0
  %v614 = vpop.f32.mrb[0].mxu0
  %v615 = vadd.f32 %v143, %v614
  %v616 = vpop.f32.mrb[0].mxu0
  %617 = vdwg.mxu0
  %618 = vmatprep.subr.bf16.mxu0 0
  %619 = vmatpush1.bf16.msra.mxu0 %v473
  %620 = vmatprep.subr.bf16.mxu0 0
  %621 = vmatpush1.bf16.msra.mxu0 %v474
  %622 = vmatprep.subr.bf16.mxu0 0
  %623 = vmatpush1.bf16.msra.mxu0 %v475
  %624 = vmatprep.subr.bf16.mxu0 0
  %625 = vmatpush1.bf16.msra.mxu0 %v476
  %626 = vmatprep.subr.bf16.mxu0 0
  %627 = vmatpush1.bf16.msra.mxu0 %v477
  %628 = vmatprep.subr.bf16.mxu0 0
  %629 = vmatpush1.bf16.msra.mxu0 %v478
  %630 = vmatprep.subr.bf16.mxu0 0
  %631 = vmatpush1.bf16.msra.mxu0 %v479
  %632 = vmatprep.subr.bf16.mxu0 0
  %633 = vmatpush1.bf16.msra.mxu0 %v480
  %634 = vmatprep.subr.bf16.mxu0 0
  %635 = vmatpush1.bf16.msra.mxu0 %v481
  %636 = vmatprep.subr.bf16.mxu0 0
  %637 = vmatpush1.bf16.msra.mxu0 %v482
  %638 = vmatprep.subr.bf16.mxu0 0
  %639 = vmatpush1.bf16.msra.mxu0 %v483
  %640 = vmatprep.subr.bf16.mxu0 0
  %641 = vmatpush1.bf16.msra.mxu0 %v484
  %642 = vmatprep.subr.bf16.mxu0 0
  %643 = vmatpush1.bf16.msra.mxu0 %v485
  %644 = vmatprep.subr.bf16.mxu0 0
  %645 = vmatpush1.bf16.msra.mxu0 %v486
  %646 = vmatprep.subr.bf16.mxu0 0
  %647 = vmatpush1.bf16.msra.mxu0 %v487
  %648 = vmatprep.subr.bf16.mxu0 0
  %649 = vmatpush1.bf16.msra.mxu0 %v488
  %650 = vmatprep.mubr.bf16.mxu0 %v220
  %651 = vmatmul.mubr.bf16.gmra.mrb[0].mxu0 %v219
  %v652 = vpop.f32.mrb[0].mxu0
  %v653 = vadd.f32 %v588, %v652
  %v654 = vpop.f32.mrb[0].mxu0
  %v655 = vpop.f32.mrb[0].mxu0
  %v656 = vadd.f32 %v591, %v655
  %v657 = vpop.f32.mrb[0].mxu0
  %658 = vmatprep.mubr.bf16.mxu0 %v226
  %659 = vmatmul.mubr.bf16.gmra.mrb[0].mxu0 %v225
  %v660 = vpop.f32.mrb[0].mxu0
  %v661 = vadd.f32 %v596, %v660
  %v662 = vpop.f32.mrb[0].mxu0
  %v663 = vpop.f32.mrb[0].mxu0
  %v664 = vadd.f32 %v599, %v663
  %v665 = vpop.f32.mrb[0].mxu0
  %666 = vmatprep.mubr.bf16.mxu0 %v232
  %667 = vmatmul.mubr.bf16.gmra.mrb[0].mxu0 %v231
  %v668 = vpop.f32.mrb[0].mxu0
  %v669 = vadd.f32 %v604, %v668
  %v670 = vpop.f32.mrb[0].mxu0
  %v671 = vpop.f32.mrb[0].mxu0
  %v672 = vadd.f32 %v607, %v671
  %v673 = vpop.f32.mrb[0].mxu0
  %674 = vmatprep.mubr.bf16.mxu0 %v238
  %675 = vmatmul.mubr.bf16.gmra.mrb[0].mxu0 %v237
  %v676 = vpop.f32.mrb[0].mxu0
  %v677 = vadd.f32 %v612, %v676
  %v678 = vpop.f32.mrb[0].mxu0
  %v679 = vpop.f32.mrb[0].mxu0
  %v680 = vadd.f32 %v615, %v679
  %v681 = vpop.f32.mrb[0].mxu0
  %682 = vdwg.mxu0
  %683 = vmatprep.subr.bf16.mxu0 0
  %684 = vmatpush1.bf16.msra.mxu0 %v489
  %685 = vmatprep.subr.bf16.mxu0 0
  %686 = vmatpush1.bf16.msra.mxu0 %v490
  %687 = vmatprep.subr.bf16.mxu0 0
  %688 = vmatpush1.bf16.msra.mxu0 %v491
  %689 = vmatprep.subr.bf16.mxu0 0
  %690 = vmatpush1.bf16.msra.mxu0 %v492
  %691 = vmatprep.subr.bf16.mxu0 0
  %692 = vmatpush1.bf16.msra.mxu0 %v493
  %693 = vmatprep.subr.bf16.mxu0 0
  %694 = vmatpush1.bf16.msra.mxu0 %v494
  %695 = vmatprep.subr.bf16.mxu0 0
  %696 = vmatpush1.bf16.msra.mxu0 %v495
  %697 = vmatprep.subr.bf16.mxu0 0
  %698 = vmatpush1.bf16.msra.mxu0 %v496
  %699 = vmatprep.subr.bf16.mxu0 0
  %700 = vmatpush1.bf16.msra.mxu0 %v497
  %701 = vmatprep.subr.bf16.mxu0 0
  %702 = vmatpush1.bf16.msra.mxu0 %v498
  %703 = vmatprep.subr.bf16.mxu0 0
  %704 = vmatpush1.bf16.msra.mxu0 %v499
  %705 = vmatprep.subr.bf16.mxu0 0
  %706 = vmatpush1.bf16.msra.mxu0 %v500
  %707 = vmatprep.subr.bf16.mxu0 0
  %708 = vmatpush1.bf16.msra.mxu0 %v501
  %709 = vmatprep.subr.bf16.mxu0 0
  %710 = vmatpush1.bf16.msra.mxu0 %v502
  %711 = vmatprep.subr.bf16.mxu0 0
  %712 = vmatpush1.bf16.msra.mxu0 %v503
  %713 = vmatprep.subr.bf16.mxu0 0
  %714 = vmatpush1.bf16.msra.mxu0 %v504
  %715 = vmatprep.mubr.bf16.mxu0 %v222
  %716 = vmatmul.mubr.bf16.gmra.mrb[0].mxu0 %v221
  %v717 = vpop.f32.mrb[0].mxu0
  %v718 = vadd.f32 %v653, %v717
  %v719 = vpop.f32.mrb[0].mxu0
  %v720 = vpop.f32.mrb[0].mxu0
  %v721 = vadd.f32 %v656, %v720
  %v722 = vpop.f32.mrb[0].mxu0
  %723 = vmatprep.mubr.bf16.mxu0 %v228
  %724 = vmatmul.mubr.bf16.gmra.mrb[0].mxu0 %v227
  %v725 = vpop.f32.mrb[0].mxu0
  %v726 = vadd.f32 %v661, %v725
  %v727 = vpop.f32.mrb[0].mxu0
  %v728 = vpop.f32.mrb[0].mxu0
  %v729 = vadd.f32 %v664, %v728
  %v730 = vpop.f32.mrb[0].mxu0
  %731 = vmatprep.mubr.bf16.mxu0 %v234
  %732 = vmatmul.mubr.bf16.gmra.mrb[0].mxu0 %v233
  %v733 = vpop.f32.mrb[0].mxu0
  %v734 = vadd.f32 %v669, %v733
  %v735 = vpop.f32.mrb[0].mxu0
  %v736 = vpop.f32.mrb[0].mxu0
  %v737 = vadd.f32 %v672, %v736
  %v738 = vpop.f32.mrb[0].mxu0
  %739 = vmatprep.mubr.bf16.mxu0 %v240
  %740 = vmatmul.mubr.bf16.gmra.mrb[0].mxu0 %v239
  %v741 = vpop.f32.mrb[0].mxu0
  %v742 = vadd.f32 %v677, %v741
  %v743 = vpop.f32.mrb[0].mxu0
  %v744 = vpop.f32.mrb[0].mxu0
  %v745 = vadd.f32 %v680, %v744
  %v746 = vpop.f32.mrb[0].mxu0
  %747 = vdwg.mxu0
  %v748 = vld [vmem:[%s3] sm:$0xff]
  %v749 = vld [vmem:[%s3 + $0x8] sm:$0xff]
  %v750 = vld [vmem:[%s3 + $0x10] sm:$0xff]
  %v751 = vld [vmem:[%s3 + $0x18] sm:$0xff]
  %v752 = vld [vmem:[%s3 + $0x20] sm:$0xff]
  %v753 = vld [vmem:[%s3 + $0x28] sm:$0xff]
  %v754 = vld [vmem:[%s3 + $0x30] sm:$0xff]
  %v755 = vld [vmem:[%s3 + $0x38] sm:$0xff]
  %v756 = vadd.f32 %v718, %v748
  %v757 = vadd.f32 %v721, %v749
  %v758 = vadd.f32 %v726, %v750
  %v759 = vadd.f32 %v729, %v751
  %v760 = vadd.f32 %v734, %v752
  %v761 = vadd.f32 %v737, %v753
  %v762 = vadd.f32 %v742, %v754
  %v763 = vadd.f32 %v745, %v755
  %764 = vst [vmem:[%s4] sm:$0xff] %v756
  %765 = vst [vmem:[%s4 + $0x8] sm:$0xff] %v757
  %766 = vst [vmem:[%s4 + $0x10] sm:$0xff] %v758
  %767 = vst [vmem:[%s4 + $0x18] sm:$0xff] %v759
  %768 = vst [vmem:[%s4 + $0x20] sm:$0xff] %v760
  %769 = vst [vmem:[%s4 + $0x28] sm:$0xff] %v761
  %770 = vst [vmem:[%s4 + $0x30] sm:$0xff] %v762
  %771 = vst [vmem:[%s4 + $0x38] sm:$0xff] %v763
  // Predicated region
  $region18: #{wilor_forward.3} parent=0 // pred_check
    _
  $region19: #{wilor_forward.3} parent=0 // pred_check_branch
    %773 = sbr.rel (0) target = $region21
  $region20: #{wilor_forward.3} parent=0 // pred_region
    _
  $region21: #{wilor_forward.3} parent=0 // pred_fallthru
    _
  // Predicated region
  $region22: #{wilor_forward.3} parent=0 // pred_check
    _
  $region23: #{wilor_forward.3} parent=0 // pred_check_branch
    %775 = sbr.rel (0) target = $region25
  $region24: #{wilor_forward.3} parent=0 // pred_region
    _
  $region25: #{wilor_forward.3} parent=0 // pred_fallthru
    _

// kernel: wilor_forward.4
$region0: #{wilor_forward.4}
  #allocation0 [shape = 'u32[]', space=smem, size = 0x4, offset = 0x4, fixed_abs, tag = 'smem constant byte address 0x4 - core index']
  #allocation1 [shape = 'u32[144,128]{1,0:T(1,128)}', space=vmem, size = 0x12000, scoped, tag = 'internal scratch']
  #allocation2 [shape = 'f32[64,128]{1,0:T(8,128)}', space=vmem, size = 0x8000, scoped, tag = 'scratch operand']
  %s0 = inlined_call_operand.vmem [shape: f32[64,128], index: 0, kind: input, shape index: {}]
  %s1 = inlined_call_operand.vmem [shape: f32[2,1,128], index: 1, kind: input, shape index: {}]
  %s2 = inlined_call_operand.vmem [shape: f32[2,1,128], index: 2, kind: input, shape index: {}]
  %s3 = inlined_call_operand.vmem [shape: bf16[2,128,384], index: 3, kind: input, shape index: {}]
  %s4 = inlined_call_operand.vmem [shape: f32[2,1,384], index: 4, kind: input, shape index: {}]
  %s5 = inlined_call_operand.vmem [shape: bf16[2,128,128], index: 5, kind: input, shape index: {}]
  %s6 = inlined_call_operand.vmem [shape: f32[2,1,128], index: 6, kind: input, shape index: {}]
  %s7 = inlined_call_operand.vmem [shape: f32[2,1,128], index: 7, kind: input, shape index: {}]
  %s8 = inlined_call_operand.vmem [shape: f32[2,1,128], index: 8, kind: input, shape index: {}]
  %s9 = inlined_call_operand.vmem [shape: bf16[2,128,256], index: 9, kind: input, shape index: {}]
  %s10 = inlined_call_operand.vmem [shape: f32[2,1,256], index: 10, kind: input, shape index: {}]
  %s11 = inlined_call_operand.vmem [shape: bf16[2,256,128], index: 11, kind: input, shape index: {}]
  %s12 = inlined_call_operand.vmem [shape: f32[2,1,128], index: 12, kind: input, shape index: {}]
  %s13 = inlined_call_operand.vmem [shape: f32[1,128], index: 13, kind: input, shape index: {}]
  %s14 = inlined_call_operand.vmem [shape: f32[1,128], index: 14, kind: input, shape index: {}]
  %s15 = inlined_call_operand.vmem [shape: bf16[128,128], index: 15, kind: input, shape index: {}]
  %s16 = inlined_call_operand.vmem [shape: f32[1,128], index: 16, kind: input, shape index: {}]
  %s17 = inlined_call_operand.vmem [shape: f32[2,128], index: 17, kind: output, shape index: {0}]
  %s18 = inlined_call_operand.vmem [shape: f32[2,128], index: 18, kind: output, shape index: {1}]
  %19 = xla_tuple %s17, %s18
  %s20 = sld [smem:[#allocation0]]
  $region117: #{wilor_forward.4} parent=0
    _
  %s22 = ssub.s32 1, %s20
  %s23 = scalar_select 0, %s22, %s20
  loop: start=0, step=1, limit=4
  $region2: #{wilor_forward.4} parent=0 // loop_pre_header
    _
  $region3: #{wilor_forward.4} parent=0 // loop_header
    %s25 = sphi 0, %s29
    %p26 = scmp.ge.s32.totalorder %s25, 4
    %s33 = sphi 0, %s33
    %s35 = sphi 0, %s33
    %s36 = sphi 0, %s35
    %s50 = sphi 0, %s36
    %s56 = sphi 0, %s58
    %s59 = sphi 0, %s56
    %s60 = sphi 0, %s59
    %s76 = sphi 0, %s60
    %s82 = sphi 0, %s84
    %s85 = sphi 0, %s82
    %s86 = sphi 0, %s85
    %s102 = sphi 0, %s86
    %s108 = sphi 0, %s110
    %s111 = sphi 0, %s108
    %s112 = sphi 0, %s111
    %s128 = sphi 0, %s112
    %s134 = sphi 0, %s136
    %s137 = sphi 0, %s134
    %s138 = sphi 0, %s137
    %s154 = sphi 0, %s138
    %s160 = sphi 0, %s162
    %s163 = sphi 0, %s160
    %s164 = sphi 0, %s163
    %s180 = sphi 0, %s164
    %s186 = sphi 0, %s188
    %s189 = sphi 0, %s186
    %s190 = sphi 0, %s189
    %s206 = sphi 0, %s190
    %s212 = sphi 0, %s214
    %s215 = sphi 0, %s212
    %s216 = sphi 0, %s215
    %s232 = sphi 0, %s216
    %s238 = sphi 0, %s240
    %s241 = sphi 0, %s238
    %s242 = sphi 0, %s241
    %s258 = sphi 0, %s242
    %s264 = sphi 0, %s266
    %s267 = sphi 0, %s264
    %s268 = sphi 0, %s267
    %s284 = sphi 0, %s268
    %s290 = sphi 0, %s292
    %s293 = sphi 0, %s290
    %s294 = sphi 0, %s293
    %s310 = sphi 0, %s294
    %s316 = sphi 0, %s318
    %s319 = sphi 0, %s316
    %s320 = sphi 0, %s319
    %s336 = sphi 0, %s320
    %s342 = sphi 0, %s344
    %s345 = sphi 0, %s342
    %s346 = sphi 0, %s345
    %s362 = sphi 0, %s346
    %s366 = sphi 0, %s366
    %s368 = sphi 0, %s366
    %s369 = sphi 0, %s368
    %s383 = sphi 0, %s369
    %s387 = sphi 0, %s387
    %s389 = sphi 0, %s387
    %s390 = sphi 0, %s389
    %s404 = sphi 0, %s390
    %s408 = sphi 0, %s408
    %s410 = sphi 0, %s408
    %s411 = sphi 0, %s410
    %s425 = sphi 0, %s411
    %s429 = sphi 0, %s429
    %s431 = sphi 0, %s429
    %s432 = sphi 0, %s431
    %s446 = sphi 0, %s432
    %s450 = sphi 0, %s450
    %s452 = sphi 0, %s450
    %s453 = sphi 0, %s452
    %s467 = sphi 0, %s453
    %s471 = sphi 0, %s471
    %s473 = sphi 0, %s471
    %s474 = sphi 0, %s473
    %s488 = sphi 0, %s474
  $region4: #{wilor_forward.4} parent=0 // loop_header_branch
    %28 = sbr.rel (%p26) target = $region8
  $region5: #{wilor_forward.4} parent=0 // loop_body
    %s30 = ssub.s32 %s25, 1
    %s31 = ssub.s32 %s25, 2
    %s32 = sadd.s32 %s25, 1
    %s34 = sadd.s32 %s33, 1
    %p37 = scmp.eq.s32.totalorder %s25, 1
    %p38 = scmp.ne.s32.totalorder %s33, %s35
    %p39 = scmp.eq.s32.totalorder %s25, 0
    %p40 = por %p38, %p39
    %p41 = scmp.ne.s32.totalorder %s33, %s35
    %p42 = scmp.eq.s32.totalorder %s30, 1
    %p43 = por %p41, %p42
    %p44 = scmp.ne.s32.totalorder %s35, %s36
    %p45 = scmp.eq.s32.totalorder %s30, 0
    %p46 = por %p44, %p45
    %p47 = scmp.ne.s32.totalorder %s35, %s36
    %p48 = scmp.eq.s32.totalorder %s31, 1
    %p49 = por %p47, %p48
    %p51 = scmp.ne.s32.totalorder %s36, %s50
    %p52 = scmp.eq.s32.totalorder %s31, 0
    %p53 = por %p51, %p52
    %s54 = ssub.s32 %s25, %s32
    %p55 = scmp.eq.s32.totalorder %s54, 0
    %s57 = sadd.s32 %s56, 1
    %s58 = scalar_select %p55, %s56, %s57
    %p61 = pneg %p55
    %p62 = scmp.eq.s32.totalorder %s25, 1
    %p63 = por %p61, %p62
    %p64 = scmp.ne.s32.totalorder %s56, %s59
    %p65 = scmp.eq.s32.totalorder %s25, 0
    %p66 = por %p64, %p65
    %p67 = scmp.ne.s32.totalorder %s56, %s59
    %p68 = scmp.eq.s32.totalorder %s30, 1
    %p69 = por %p67, %p68
    %p70 = scmp.ne.s32.totalorder %s59, %s60
    %p71 = scmp.eq.s32.totalorder %s30, 0
    %p72 = por %p70, %p71
    %p73 = scmp.ne.s32.totalorder %s59, %s60
    %p74 = scmp.eq.s32.totalorder %s31, 1
    %p75 = por %p73, %p74
    %p77 = scmp.ne.s32.totalorder %s60, %s76
    %p78 = scmp.eq.s32.totalorder %s31, 0
    %p79 = por %p77, %p78
    %s80 = ssub.s32 %s25, %s32
    %p81 = scmp.eq.s32.totalorder %s80, 0
    %s83 = sadd.s32 %s82, 1
    %s84 = scalar_select %p81, %s82, %s83
    %p87 = pneg %p81
    %p88 = scmp.eq.s32.totalorder %s25, 1
    %p89 = por %p87, %p88
    %p90 = scmp.ne.s32.totalorder %s82, %s85
    %p91 = scmp.eq.s32.totalorder %s25, 0
    %p92 = por %p90, %p91
    %p93 = scmp.ne.s32.totalorder %s82, %s85
    %p94 = scmp.eq.s32.totalorder %s30, 1
    %p95 = por %p93, %p94
    %p96 = scmp.ne.s32.totalorder %s85, %s86
    %p97 = scmp.eq.s32.totalorder %s30, 0
    %p98 = por %p96, %p97
    %p99 = scmp.ne.s32.totalorder %s85, %s86
    %p100 = scmp.eq.s32.totalorder %s31, 1
    %p101 = por %p99, %p100
    %p103 = scmp.ne.s32.totalorder %s86, %s102
    %p104 = scmp.eq.s32.totalorder %s31, 0
    %p105 = por %p103, %p104
    %s106 = ssub.s32 %s25, %s32
    %p107 = scmp.eq.s32.totalorder %s106, 0
    %s109 = sadd.s32 %s108, 1
    %s110 = scalar_select %p107, %s108, %s109
    %p113 = pneg %p107
    %p114 = scmp.eq.s32.totalorder %s25, 1
    %p115 = por %p113, %p114
    %p116 = scmp.ne.s32.totalorder %s108, %s111
    %p117 = scmp.eq.s32.totalorder %s25, 0
    %p118 = por %p116, %p117
    %p119 = scmp.ne.s32.totalorder %s108, %s111
    %p120 = scmp.eq.s32.totalorder %s30, 1
    %p121 = por %p119, %p120
    %p122 = scmp.ne.s32.totalorder %s111, %s112
    %p123 = scmp.eq.s32.totalorder %s30, 0
    %p124 = por %p122, %p123
    %p125 = scmp.ne.s32.totalorder %s111, %s112
    %p126 = scmp.eq.s32.totalorder %s31, 1
    %p127 = por %p125, %p126
    %p129 = scmp.ne.s32.totalorder %s112, %s128
    %p130 = scmp.eq.s32.totalorder %s31, 0
    %p131 = por %p129, %p130
    %s132 = ssub.s32 %s25, %s32
    %p133 = scmp.eq.s32.totalorder %s132, 0
    %s135 = sadd.s32 %s134, 1
    %s136 = scalar_select %p133, %s134, %s135
    %p139 = pneg %p133
    %p140 = scmp.eq.s32.totalorder %s25, 1
    %p141 = por %p139, %p140
    %p142 = scmp.ne.s32.totalorder %s134, %s137
    %p143 = scmp.eq.s32.totalorder %s25, 0
    %p144 = por %p142, %p143
    %p145 = scmp.ne.s32.totalorder %s134, %s137
    %p146 = scmp.eq.s32.totalorder %s30, 1
    %p147 = por %p145, %p146
    %p148 = scmp.ne.s32.totalorder %s137, %s138
    %p149 = scmp.eq.s32.totalorder %s30, 0
    %p150 = por %p148, %p149
    %p151 = scmp.ne.s32.totalorder %s137, %s138
    %p152 = scmp.eq.s32.totalorder %s31, 1
    %p153 = por %p151, %p152
    %p155 = scmp.ne.s32.totalorder %s138, %s154
    %p156 = scmp.eq.s32.totalorder %s31, 0
    %p157 = por %p155, %p156
    %s158 = ssub.s32 %s25, %s32
    %p159 = scmp.eq.s32.totalorder %s158, 0
    %s161 = sadd.s32 %s160, 1
    %s162 = scalar_select %p159, %s160, %s161
    %p165 = pneg %p159
    %p166 = scmp.eq.s32.totalorder %s25, 1
    %p167 = por %p165, %p166
    %p168 = scmp.ne.s32.totalorder %s160, %s163
    %p169 = scmp.eq.s32.totalorder %s25, 0
    %p170 = por %p168, %p169
    %p171 = scmp.ne.s32.totalorder %s160, %s163
    %p172 = scmp.eq.s32.totalorder %s30, 1
    %p173 = por %p171, %p172
    %p174 = scmp.ne.s32.totalorder %s163, %s164
    %p175 = scmp.eq.s32.totalorder %s30, 0
    %p176 = por %p174, %p175
    %p177 = scmp.ne.s32.totalorder %s163, %s164
    %p178 = scmp.eq.s32.totalorder %s31, 1
    %p179 = por %p177, %p178
    %p181 = scmp.ne.s32.totalorder %s164, %s180
    %p182 = scmp.eq.s32.totalorder %s31, 0
    %p183 = por %p181, %p182
    %s184 = ssub.s32 %s25, %s32
    %p185 = scmp.eq.s32.totalorder %s184, 0
    %s187 = sadd.s32 %s186, 1
    %s188 = scalar_select %p185, %s186, %s187
    %p191 = pneg %p185
    %p192 = scmp.eq.s32.totalorder %s25, 1
    %p193 = por %p191, %p192
    %p194 = scmp.ne.s32.totalorder %s186, %s189
    %p195 = scmp.eq.s32.totalorder %s25, 0
    %p196 = por %p194, %p195
    %p197 = scmp.ne.s32.totalorder %s186, %s189
    %p198 = scmp.eq.s32.totalorder %s30, 1
    %p199 = por %p197, %p198
    %p200 = scmp.ne.s32.totalorder %s189, %s190
    %p201 = scmp.eq.s32.totalorder %s30, 0
    %p202 = por %p200, %p201
    %p203 = scmp.ne.s32.totalorder %s189, %s190
    %p204 = scmp.eq.s32.totalorder %s31, 1
    %p205 = por %p203, %p204
    %p207 = scmp.ne.s32.totalorder %s190, %s206
    %p208 = scmp.eq.s32.totalorder %s31, 0
    %p209 = por %p207, %p208
    %s210 = ssub.s32 %s25, %s32
    %p211 = scmp.eq.s32.totalorder %s210, 0
    %s213 = sadd.s32 %s212, 1
    %s214 = scalar_select %p211, %s212, %s213
    %p217 = pneg %p211
    %p218 = scmp.eq.s32.totalorder %s25, 1
    %p219 = por %p217, %p218
    %p220 = scmp.ne.s32.totalorder %s212, %s215
    %p221 = scmp.eq.s32.totalorder %s25, 0
    %p222 = por %p220, %p221
    %p223 = scmp.ne.s32.totalorder %s212, %s215
    %p224 = scmp.eq.s32.totalorder %s30, 1
    %p225 = por %p223, %p224
    %p226 = scmp.ne.s32.totalorder %s215, %s216
    %p227 = scmp.eq.s32.totalorder %s30, 0
    %p228 = por %p226, %p227
    %p229 = scmp.ne.s32.totalorder %s215, %s216
    %p230 = scmp.eq.s32.totalorder %s31, 1
    %p231 = por %p229, %p230
    %p233 = scmp.ne.s32.totalorder %s216, %s232
    %p234 = scmp.eq.s32.totalorder %s31, 0
    %p235 = por %p233, %p234
    %s236 = ssub.s32 %s25, %s32
    %p237 = scmp.eq.s32.totalorder %s236, 0
    %s239 = sadd.s32 %s238, 1
    %s240 = scalar_select %p237, %s238, %s239
    %p243 = pneg %p237
    %p244 = scmp.eq.s32.totalorder %s25, 1
    %p245 = por %p243, %p244
    %p246 = scmp.ne.s32.totalorder %s238, %s241
    %p247 = scmp.eq.s32.totalorder %s25, 0
    %p248 = por %p246, %p247
    %p249 = scmp.ne.s32.totalorder %s238, %s241
    %p250 = scmp.eq.s32.totalorder %s30, 1
    %p251 = por %p249, %p250
    %p252 = scmp.ne.s32.totalorder %s241, %s242
    %p253 = scmp.eq.s32.totalorder %s30, 0
    %p254 = por %p252, %p253
    %p255 = scmp.ne.s32.totalorder %s241, %s242
    %p256 = scmp.eq.s32.totalorder %s31, 1
    %p257 = por %p255, %p256
    %p259 = scmp.ne.s32.totalorder %s242, %s258
    %p260 = scmp.eq.s32.totalorder %s31, 0
    %p261 = por %p259, %p260
    %s262 = ssub.s32 %s25, %s32
    %p263 = scmp.eq.s32.totalorder %s262, 0
    %s265 = sadd.s32 %s264, 1
    %s266 = scalar_select %p263, %s264, %s265
    %p269 = pneg %p263
    %p270 = scmp.eq.s32.totalorder %s25, 1
    %p271 = por %p269, %p270
    %p272 = scmp.ne.s32.totalorder %s264, %s267
    %p273 = scmp.eq.s32.totalorder %s25, 0
    %p274 = por %p272, %p273
    %p275 = scmp.ne.s32.totalorder %s264, %s267
    %p276 = scmp.eq.s32.totalorder %s30, 1
    %p277 = por %p275, %p276
    %p278 = scmp.ne.s32.totalorder %s267, %s268
    %p279 = scmp.eq.s32.totalorder %s30, 0
    %p280 = por %p278, %p279
    %p281 = scmp.ne.s32.totalorder %s267, %s268
    %p282 = scmp.eq.s32.totalorder %s31, 1
    %p283 = por %p281, %p282
    %p285 = scmp.ne.s32.totalorder %s268, %s284
    %p286 = scmp.eq.s32.totalorder %s31, 0
    %p287 = por %p285, %p286
    %s288 = ssub.s32 %s25, %s32
    %p289 = scmp.eq.s32.totalorder %s288, 0
    %s291 = sadd.s32 %s290, 1
    %s292 = scalar_select %p289, %s290, %s291
    %p295 = pneg %p289
    %p296 = scmp.eq.s32.totalorder %s25, 1
    %p297 = por %p295, %p296
    %p298 = scmp.ne.s32.totalorder %s290, %s293
    %p299 = scmp.eq.s32.totalorder %s25, 0
    %p300 = por %p298, %p299
    %p301 = scmp.ne.s32.totalorder %s290, %s293
    %p302 = scmp.eq.s32.totalorder %s30, 1
    %p303 = por %p301, %p302
    %p304 = scmp.ne.s32.totalorder %s293, %s294
    %p305 = scmp.eq.s32.totalorder %s30, 0
    %p306 = por %p304, %p305
    %p307 = scmp.ne.s32.totalorder %s293, %s294
    %p308 = scmp.eq.s32.totalorder %s31, 1
    %p309 = por %p307, %p308
    %p311 = scmp.ne.s32.totalorder %s294, %s310
    %p312 = scmp.eq.s32.totalorder %s31, 0
    %p313 = por %p311, %p312
    %s314 = ssub.s32 %s25, %s32
    %p315 = scmp.eq.s32.totalorder %s314, 0
    %s317 = sadd.s32 %s316, 1
    %s318 = scalar_select %p315, %s316, %s317
    %p321 = pneg %p315
    %p322 = scmp.eq.s32.totalorder %s25, 1
    %p323 = por %p321, %p322
    %p324 = scmp.ne.s32.totalorder %s316, %s319
    %p325 = scmp.eq.s32.totalorder %s25, 0
    %p326 = por %p324, %p325
    %p327 = scmp.ne.s32.totalorder %s316, %s319
    %p328 = scmp.eq.s32.totalorder %s30, 1
    %p329 = por %p327, %p328
    %p330 = scmp.ne.s32.totalorder %s319, %s320
    %p331 = scmp.eq.s32.totalorder %s30, 0
    %p332 = por %p330, %p331
    %p333 = scmp.ne.s32.totalorder %s319, %s320
    %p334 = scmp.eq.s32.totalorder %s31, 1
    %p335 = por %p333, %p334
    %p337 = scmp.ne.s32.totalorder %s320, %s336
    %p338 = scmp.eq.s32.totalorder %s31, 0
    %p339 = por %p337, %p338
    %s340 = ssub.s32 %s25, %s32
    %p341 = scmp.eq.s32.totalorder %s340, 0
    %s343 = sadd.s32 %s342, 1
    %s344 = scalar_select %p341, %s342, %s343
    %p347 = pneg %p341
    %p348 = scmp.eq.s32.totalorder %s25, 1
    %p349 = por %p347, %p348
    %p350 = scmp.ne.s32.totalorder %s342, %s345
    %p351 = scmp.eq.s32.totalorder %s25, 0
    %p352 = por %p350, %p351
    %p353 = scmp.ne.s32.totalorder %s342, %s345
    %p354 = scmp.eq.s32.totalorder %s30, 1
    %p355 = por %p353, %p354
    %p356 = scmp.ne.s32.totalorder %s345, %s346
    %p357 = scmp.eq.s32.totalorder %s30, 0
    %p358 = por %p356, %p357
    %p359 = scmp.ne.s32.totalorder %s345, %s346
    %p360 = scmp.eq.s32.totalorder %s31, 1
    %p361 = por %p359, %p360
    %p363 = scmp.ne.s32.totalorder %s346, %s362
    %p364 = scmp.eq.s32.totalorder %s31, 0
    %p365 = por %p363, %p364
    %s367 = sadd.s32 %s366, 1
    %p370 = scmp.eq.s32.totalorder %s25, 1
    %p371 = scmp.ne.s32.totalorder %s366, %s368
    %p372 = scmp.eq.s32.totalorder %s25, 0
    %p373 = por %p371, %p372
    %p374 = scmp.ne.s32.totalorder %s366, %s368
    %p375 = scmp.eq.s32.totalorder %s30, 1
    %p376 = por %p374, %p375
    %p377 = scmp.ne.s32.totalorder %s368, %s369
    %p378 = scmp.eq.s32.totalorder %s30, 0
    %p379 = por %p377, %p378
    %p380 = scmp.ne.s32.totalorder %s368, %s369
    %p381 = scmp.eq.s32.totalorder %s31, 1
    %p382 = por %p380, %p381
    %p384 = scmp.ne.s32.totalorder %s369, %s383
    %p385 = scmp.eq.s32.totalorder %s31, 0
    %p386 = por %p384, %p385
    %s388 = sadd.s32 %s387, 1
    %p391 = scmp.eq.s32.totalorder %s25, 1
    %p392 = scmp.ne.s32.totalorder %s387, %s389
    %p393 = scmp.eq.s32.totalorder %s25, 0
    %p394 = por %p392, %p393
    %p395 = scmp.ne.s32.totalorder %s387, %s389
    %p396 = scmp.eq.s32.totalorder %s30, 1
    %p397 = por %p395, %p396
    %p398 = scmp.ne.s32.totalorder %s389, %s390
    %p399 = scmp.eq.s32.totalorder %s30, 0
    %p400 = por %p398, %p399
    %p401 = scmp.ne.s32.totalorder %s389, %s390
    %p402 = scmp.eq.s32.totalorder %s31, 1
    %p403 = por %p401, %p402
    %p405 = scmp.ne.s32.totalorder %s390, %s404
    %p406 = scmp.eq.s32.totalorder %s31, 0
    %p407 = por %p405, %p406
    %s409 = sadd.s32 %s408, 1
    %p412 = scmp.eq.s32.totalorder %s25, 1
    %p413 = scmp.ne.s32.totalorder %s408, %s410
    %p414 = scmp.eq.s32.totalorder %s25, 0
    %p415 = por %p413, %p414
    %p416 = scmp.ne.s32.totalorder %s408, %s410
    %p417 = scmp.eq.s32.totalorder %s30, 1
    %p418 = por %p416, %p417
    %p419 = scmp.ne.s32.totalorder %s410, %s411
    %p420 = scmp.eq.s32.totalorder %s30, 0
    %p421 = por %p419, %p420
    %p422 = scmp.ne.s32.totalorder %s410, %s411
    %p423 = scmp.eq.s32.totalorder %s31, 1
    %p424 = por %p422, %p423
    %p426 = scmp.ne.s32.totalorder %s411, %s425
    %p427 = scmp.eq.s32.totalorder %s31, 0
    %p428 = por %p426, %p427
    %s430 = sadd.s32 %s429, 1
    %p433 = scmp.eq.s32.totalorder %s25, 1
    %p434 = scmp.ne.s32.totalorder %s429, %s431
    %p435 = scmp.eq.s32.totalorder %s25, 0
    %p436 = por %p434, %p435
    %p437 = scmp.ne.s32.totalorder %s429, %s431
    %p438 = scmp.eq.s32.totalorder %s30, 1
    %p439 = por %p437, %p438
    %p440 = scmp.ne.s32.totalorder %s431, %s432
    %p441 = scmp.eq.s32.totalorder %s30, 0
    %p442 = por %p440, %p441
    %p443 = scmp.ne.s32.totalorder %s431, %s432
    %p444 = scmp.eq.s32.totalorder %s31, 1
    %p445 = por %p443, %p444
    %p447 = scmp.ne.s32.totalorder %s432, %s446
    %p448 = scmp.eq.s32.totalorder %s31, 0
    %p449 = por %p447, %p448
    %s451 = sadd.s32 %s450, 1
    %p454 = scmp.eq.s32.totalorder %s25, 1
    %p455 = scmp.ne.s32.totalorder %s450, %s452
    %p456 = scmp.eq.s32.totalorder %s25, 0
    %p457 = por %p455, %p456
    %p458 = scmp.ne.s32.totalorder %s450, %s452
    %p459 = scmp.eq.s32.totalorder %s30, 1
    %p460 = por %p458, %p459
    %p461 = scmp.ne.s32.totalorder %s452, %s453
    %p462 = scmp.eq.s32.totalorder %s30, 0
    %p463 = por %p461, %p462
    %p464 = scmp.ne.s32.totalorder %s452, %s453
    %p465 = scmp.eq.s32.totalorder %s31, 1
    %p466 = por %p464, %p465
    %p468 = scmp.ne.s32.totalorder %s453, %s467
    %p469 = scmp.eq.s32.totalorder %s31, 0
    %p470 = por %p468, %p469
    %s472 = sadd.s32 %s471, 1
    %p475 = scmp.eq.s32.totalorder %s25, 1
    %p476 = scmp.ne.s32.totalorder %s471, %s473
    %p477 = scmp.eq.s32.totalorder %s25, 0
    %p478 = por %p476, %p477
    %p479 = scmp.ne.s32.totalorder %s471, %s473
    %p480 = scmp.eq.s32.totalorder %s30, 1
    %p481 = por %p479, %p480
    %p482 = scmp.ne.s32.totalorder %s473, %s474
    %p483 = scmp.eq.s32.totalorder %s30, 0
    %p484 = por %p482, %p483
    %p485 = scmp.ne.s32.totalorder %s473, %s474
    %p486 = scmp.eq.s32.totalorder %s31, 1
    %p487 = por %p485, %p486
    %p489 = scmp.ne.s32.totalorder %s474, %s488
    %p490 = scmp.eq.s32.totalorder %s31, 0
    %p491 = por %p489, %p490
    %p492 = scmp.le.s32.totalorder 1, %s25
    %p493 = scmp.lt.s32.totalorder %s25, 3
    %p494 = pnand %p492, %p493
    %p495 = pneg %p494
    // Predicated region
    $region9: #{wilor_forward.4} parent=5 // pred_check
      _
    $region10: #{wilor_forward.4} parent=5 // pred_check_branch
      %497 = sbr.rel (%p494) target = $region12
    $region11: #{wilor_forward.4} parent=5 // pred_region
      %s498 = ssub.s32 %s25, 1
      // Predicated region
      $region13: #{wilor_forward.4} parent=11 // pred_check
        %p499 = pneg %p46
      $region14: #{wilor_forward.4} parent=11 // pred_check_branch
        %501 = sbr.rel (%p499) target = $region16
      $region15: #{wilor_forward.4} parent=11 // pred_region
        _
      $region16: #{wilor_forward.4} parent=11 // pred_fallthru
        _
      // Predicated region
      $region17: #{wilor_forward.4} parent=11 // pred_check
        %p502 = pneg %p379
      $region18: #{wilor_forward.4} parent=11 // pred_check_branch
        %504 = sbr.rel (%p502) target = $region20
      $region19: #{wilor_forward.4} parent=11 // pred_region
        _
      $region20: #{wilor_forward.4} parent=11 // pred_fallthru
        _
      // Predicated region
      $region21: #{wilor_forward.4} parent=11 // pred_check
        %p505 = pneg %p400
      $region22: #{wilor_forward.4} parent=11 // pred_check_branch
        %507 = sbr.rel (%p505) target = $region24
      $region23: #{wilor_forward.4} parent=11 // pred_region
        _
      $region24: #{wilor_forward.4} parent=11 // pred_fallthru
        _
      // Predicated region
      $region25: #{wilor_forward.4} parent=11 // pred_check
        %p508 = pneg %p421
      $region26: #{wilor_forward.4} parent=11 // pred_check_branch
        %510 = sbr.rel (%p508) target = $region28
      $region27: #{wilor_forward.4} parent=11 // pred_region
        _
      $region28: #{wilor_forward.4} parent=11 // pred_fallthru
        _
      // Predicated region
      $region29: #{wilor_forward.4} parent=11 // pred_check
        %p511 = pneg %p442
      $region30: #{wilor_forward.4} parent=11 // pred_check_branch
        %513 = sbr.rel (%p511) target = $region32
      $region31: #{wilor_forward.4} parent=11 // pred_region
        _
      $region32: #{wilor_forward.4} parent=11 // pred_fallthru
        _
    $region12: #{wilor_forward.4} parent=5 // pred_fallthru
      _
    %p514 = scmp.lt.s32.totalorder %s25, 2
    // Predicated region
    $region33: #{wilor_forward.4} parent=5 // pred_check
      %p515 = pneg %p514
    $region34: #{wilor_forward.4} parent=5 // pred_check_branch
      %517 = sbr.rel (%p515) target = $region36
    $region35: #{wilor_forward.4} parent=5 // pred_region
      // Predicated region
      $region37: #{wilor_forward.4} parent=35 // pred_check
        %p518 = pneg %p66
      $region38: #{wilor_forward.4} parent=35 // pred_check_branch
        %520 = sbr.rel (%p518) target = $region40
      $region39: #{wilor_forward.4} parent=35 // pred_region
        %p521 = scmp.lt.s32.totalorder %s25, 1
        %s522 = scalar_select %p521, %s25, 1
        %s523 = scalar_lea.vmem %s1, %s522
      $region40: #{wilor_forward.4} parent=35 // pred_fallthru
        _
      // Predicated region
      $region41: #{wilor_forward.4} parent=35 // pred_check
        %p524 = pneg %p92
      $region42: #{wilor_forward.4} parent=35 // pred_check_branch
        %526 = sbr.rel (%p524) target = $region44
      $region43: #{wilor_forward.4} parent=35 // pred_region
        %p527 = scmp.lt.s32.totalorder %s25, 1
        %s528 = scalar_select %p527, %s25, 1
        %s529 = scalar_lea.vmem %s2, %s528
      $region44: #{wilor_forward.4} parent=35 // pred_fallthru
        _
      // Predicated region
      $region45: #{wilor_forward.4} parent=35 // pred_check
        %p530 = pneg %p118
      $region46: #{wilor_forward.4} parent=35 // pred_check_branch
        %532 = sbr.rel (%p530) target = $region48
      $region47: #{wilor_forward.4} parent=35 // pred_region
        %p533 = scmp.lt.s32.totalorder %s25, 1
        %s534 = scalar_select %p533, %s25, 1
        %s535 = smul.addr %s534, 48
        %s536 = smul.addr %s535, 4
        %s537 = scalar_lea.vmem %s3, %s536
      $region48: #{wilor_forward.4} parent=35 // pred_fallthru
        _
      // Predicated region
      $region49: #{wilor_forward.4} parent=35 // pred_check
        %p538 = pneg %p144
      $region50: #{wilor_forward.4} parent=35 // pred_check_branch
        %540 = sbr.rel (%p538) target = $region52
      $region51: #{wilor_forward.4} parent=35 // pred_region
        %p541 = scmp.lt.s32.totalorder %s25, 1
        %s542 = scalar_select %p541, %s25, 1
        %s543 = smul.addr %s542, 3
        %s544 = scalar_lea.vmem %s4, %s543
      $region52: #{wilor_forward.4} parent=35 // pred_fallthru
        _
      // Predicated region
      $region53: #{wilor_forward.4} parent=35 // pred_check
        %p545 = pneg %p170
      $region54: #{wilor_forward.4} parent=35 // pred_check_branch
        %547 = sbr.rel (%p545) target = $region56
      $region55: #{wilor_forward.4} parent=35 // pred_region
        %p548 = scmp.lt.s32.totalorder %s25, 1
        %s549 = scalar_select %p548, %s25, 1
        %s550 = smul.addr %s549, 16
        %s551 = smul.addr %s550, 4
        %s552 = scalar_lea.vmem %s5, %s551
      $region56: #{wilor_forward.4} parent=35 // pred_fallthru
        _
      // Predicated region
      $region57: #{wilor_forward.4} parent=35 // pred_check
        %p553 = pneg %p196
      $region58: #{wilor_forward.4} parent=35 // pred_check_branch
        %555 = sbr.rel (%p553) target = $region60
      $region59: #{wilor_forward.4} parent=35 // pred_region
        %p556 = scmp.lt.s32.totalorder %s25, 1
        %s557 = scalar_select %p556, %s25, 1
        %s558 = scalar_lea.vmem %s6, %s557
      $region60: #{wilor_forward.4} parent=35 // pred_fallthru
        _
      // Predicated region
      $region61: #{wilor_forward.4} parent=35 // pred_check
        %p559 = pneg %p222
      $region62: #{wilor_forward.4} parent=35 // pred_check_branch
        %561 = sbr.rel (%p559) target = $region64
      $region63: #{wilor_forward.4} parent=35 // pred_region
        %p562 = scmp.lt.s32.totalorder %s25, 1
        %s563 = scalar_select %p562, %s25, 1
        %s564 = scalar_lea.vmem %s7, %s563
      $region64: #{wilor_forward.4} parent=35 // pred_fallthru
        _
      // Predicated region
      $region65: #{wilor_forward.4} parent=35 // pred_check
        %p565 = pneg %p248
      $region66: #{wilor_forward.4} parent=35 // pred_check_branch
        %567 = sbr.rel (%p565) target = $region68
      $region67: #{wilor_forward.4} parent=35 // pred_region
        %p568 = scmp.lt.s32.totalorder %s25, 1
        %s569 = scalar_select %p568, %s25, 1
        %s570 = scalar_lea.vmem %s8, %s569
      $region68: #{wilor_forward.4} parent=35 // pred_fallthru
        _
      // Predicated region
      $region69: #{wilor_forward.4} parent=35 // pred_check
        %p571 = pneg %p274
      $region70: #{wilor_forward.4} parent=35 // pred_check_branch
        %573 = sbr.rel (%p571) target = $region72
      $region71: #{wilor_forward.4} parent=35 // pred_region
        %p574 = scmp.lt.s32.totalorder %s25, 1
        %s575 = scalar_select %p574, %s25, 1
        %s576 = smul.addr %s575, 32
        %s577 = smul.addr %s576, 4
        %s578 = scalar_lea.vmem %s9, %s577
      $region72: #{wilor_forward.4} parent=35 // pred_fallthru
        _
      // Predicated region
      $region73: #{wilor_forward.4} parent=35 // pred_check
        %p579 = pneg %p300
      $region74: #{wilor_forward.4} parent=35 // pred_check_branch
        %581 = sbr.rel (%p579) target = $region76
      $region75: #{wilor_forward.4} parent=35 // pred_region
        %p582 = scmp.lt.s32.totalorder %s25, 1
        %s583 = scalar_select %p582, %s25, 1
        %s584 = smul.addr %s583, 2
        %s585 = scalar_lea.vmem %s10, %s584
      $region76: #{wilor_forward.4} parent=35 // pred_fallthru
        _
      // Predicated region
      $region77: #{wilor_forward.4} parent=35 // pred_check
        %p586 = pneg %p326
      $region78: #{wilor_forward.4} parent=35 // pred_check_branch
        %588 = sbr.rel (%p586) target = $region80
      $region79: #{wilor_forward.4} parent=35 // pred_region
        %p589 = scmp.lt.s32.totalorder %s25, 1
        %s590 = scalar_select %p589, %s25, 1
        %s591 = smul.addr %s590, 32
        %s592 = smul.addr %s591, 4
        %s593 = scalar_lea.vmem %s11, %s592
      $region80: #{wilor_forward.4} parent=35 // pred_fallthru
        _
      // Predicated region
      $region81: #{wilor_forward.4} parent=35 // pred_check
        %p594 = pneg %p352
      $region82: #{wilor_forward.4} parent=35 // pred_check_branch
        %596 = sbr.rel (%p594) target = $region84
      $region83: #{wilor_forward.4} parent=35 // pred_region
        %p597 = scmp.lt.s32.totalorder %s25, 1
        %s598 = scalar_select %p597, %s25, 1
        %s599 = scalar_lea.vmem %s12, %s598
      $region84: #{wilor_forward.4} parent=35 // pred_fallthru
        _
    $region36: #{wilor_forward.4} parent=5 // pred_fallthru
      _
    %p600 = scmp.le.s32.totalorder 1, %s25
    %p601 = scmp.lt.s32.totalorder %s25, 3
    %p602 = pnand %p600, %p601
    %p603 = pneg %p602
    // Predicated region
    $region85: #{wilor_forward.4} parent=5 // pred_check
      _
    $region86: #{wilor_forward.4} parent=5 // pred_check_branch
      %605 = sbr.rel (%p602) target = $region88
    $region87: #{wilor_forward.4} parent=5 // pred_region
      %s606 = ssub.s32 %s25, 1
      %p607 = pneg %p46
      %p608 = pneg %p43
      %p609 = scmp.lt.s32.totalorder %s30, 1
      %s610 = scalar_select %p609, %s30, 1
      %s611 = scalar_lea.vmem %s1, %s610
      %p612 = pneg %p72
      %p613 = pneg %p69
      %p614 = scmp.lt.s32.totalorder %s30, 1
      %s615 = scalar_select %p614, %s30, 1
      %s616 = scalar_lea.vmem %s2, %s615
      %p617 = pneg %p98
      %p618 = pneg %p95
      %p619 = scmp.lt.s32.totalorder %s30, 1
      %s620 = scalar_select %p619, %s30, 1
      %s621 = smul.addr %s620, 48
      %s622 = smul.addr %s621, 4
      %s623 = scalar_lea.vmem %s3, %s622
      %p624 = pneg %p124
      %p625 = pneg %p121
      %p626 = scmp.lt.s32.totalorder %s30, 1
      %s627 = scalar_select %p626, %s30, 1
      %s628 = smul.addr %s627, 3
      %s629 = scalar_lea.vmem %s4, %s628
      %p630 = pneg %p150
      %p631 = pneg %p147
      %p632 = scmp.lt.s32.totalorder %s30, 1
      %s633 = scalar_select %p632, %s30, 1
      %s634 = smul.addr %s633, 16
      %s635 = smul.addr %s634, 4
      %s636 = scalar_lea.vmem %s5, %s635
      %p637 = pneg %p176
      %p638 = pneg %p173
      %p639 = scmp.lt.s32.totalorder %s30, 1
      %s640 = scalar_select %p639, %s30, 1
      %s641 = scalar_lea.vmem %s6, %s640
      %p642 = pneg %p202
      %p643 = pneg %p199
      %p644 = scmp.lt.s32.totalorder %s30, 1
      %s645 = scalar_select %p644, %s30, 1
      %s646 = scalar_lea.vmem %s7, %s645
      %p647 = pneg %p228
      %p648 = pneg %p225
      %p649 = scmp.lt.s32.totalorder %s30, 1
      %s650 = scalar_select %p649, %s30, 1
      %s651 = scalar_lea.vmem %s8, %s650
      %p652 = pneg %p254
      %p653 = pneg %p251
      %p654 = scmp.lt.s32.totalorder %s30, 1
      %s655 = scalar_select %p654, %s30, 1
      %s656 = smul.addr %s655, 32
      %s657 = smul.addr %s656, 4
      %s658 = scalar_lea.vmem %s9, %s657
      %p659 = pneg %p280
      %p660 = pneg %p277
      %p661 = scmp.lt.s32.totalorder %s30, 1
      %s662 = scalar_select %p661, %s30, 1
      %s663 = smul.addr %s662, 2
      %s664 = scalar_lea.vmem %s10, %s663
      %p665 = pneg %p306
      %p666 = pneg %p303
      %p667 = scmp.lt.s32.totalorder %s30, 1
      %s668 = scalar_select %p667, %s30, 1
      %s669 = smul.addr %s668, 32
      %s670 = smul.addr %s669, 4
      %s671 = scalar_lea.vmem %s11, %s670
      %p672 = pneg %p332
      %p673 = pneg %p329
      %p674 = scmp.lt.s32.totalorder %s30, 1
      %s675 = scalar_select %p674, %s30, 1
      %s676 = scalar_lea.vmem %s12, %s675
      %p677 = pneg %p358
      %p678 = pneg %p355
      %p679 = pneg %p379
      %p680 = pneg %p376
      %p681 = pneg %p400
      %p682 = pneg %p397
      %p683 = pneg %p421
      %p684 = pneg %p418
      %p685 = pneg %p442
      %p686 = pneg %p439
      %p687 = pneg %p463
      %p688 = pneg %p460
      %p689 = pneg %p484
      %p690 = pneg %p481
      %p691 = scmp.lt.s32.totalorder %s30, 1
      %s692 = scalar_select %p691, %s30, 1
      %s693 = scalar_lea.vmem %s1, %s692
      %p694 = scmp.lt.s32.totalorder %s30, 1
      %s695 = scalar_select %p694, %s30, 1
      %s696 = scalar_lea.vmem %s2, %s695
      %p697 = scmp.lt.s32.totalorder %s30, 1
      %s698 = scalar_select %p697, %s30, 1
      %s699 = smul.addr %s698, 48
      %s700 = smul.addr %s699, 4
      %s701 = scalar_lea.vmem %s3, %s700
      %p702 = scmp.lt.s32.totalorder %s30, 1
      %s703 = scalar_select %p702, %s30, 1
      %s704 = smul.addr %s703, 3
      %s705 = scalar_lea.vmem %s4, %s704
      %p706 = scmp.lt.s32.totalorder %s30, 1
      %s707 = scalar_select %p706, %s30, 1
      %s708 = smul.addr %s707, 16
      %s709 = smul.addr %s708, 4
      %s710 = scalar_lea.vmem %s5, %s709
      %p711 = scmp.lt.s32.totalorder %s30, 1
      %s712 = scalar_select %p711, %s30, 1
      %s713 = scalar_lea.vmem %s6, %s712
      %p714 = scmp.lt.s32.totalorder %s30, 1
      %s715 = scalar_select %p714, %s30, 1
      %s716 = scalar_lea.vmem %s7, %s715
      %p717 = scmp.lt.s32.totalorder %s30, 1
      %s718 = scalar_select %p717, %s30, 1
      %s719 = scalar_lea.vmem %s8, %s718
      %p720 = scmp.lt.s32.totalorder %s30, 1
      %s721 = scalar_select %p720, %s30, 1
      %s722 = smul.addr %s721, 32
      %s723 = smul.addr %s722, 4
      %s724 = scalar_lea.vmem %s9, %s723
      %p725 = scmp.lt.s32.totalorder %s30, 1
      %s726 = scalar_select %p725, %s30, 1
      %s727 = smul.addr %s726, 2
      %s728 = scalar_lea.vmem %s10, %s727
      %p729 = scmp.lt.s32.totalorder %s30, 1
      %s730 = scalar_select %p729, %s30, 1
      %s731 = smul.addr %s730, 32
      %s732 = smul.addr %s731, 4
      %s733 = scalar_lea.vmem %s11, %s732
      %p734 = scmp.lt.s32.totalorder %s30, 1
      %s735 = scalar_select %p734, %s30, 1
      %s736 = scalar_lea.vmem %s12, %s735
      %p738 = scmp.eq.s32.totalorder %s30, 0
      // Predicated region
      $region89: #{wilor_forward.4} parent=87 // pred_check
        %p739 = pneg %p738
      $region90: #{wilor_forward.4} parent=87 // pred_check_branch
        %741 = sbr.rel (%p739) target = $region92
      $region91: #{wilor_forward.4} parent=87 // pred_region
        %v742 = vld [vmem:[%s0] sm:$0xff]
        %v743 = vld [vmem:[%s0 + $0x8] sm:$0xff]
        %v744 = vld [vmem:[%s0 + $0x10] sm:$0xff]
        %v745 = vld [vmem:[%s0 + $0x18] sm:$0xff]
        %v746 = vld [vmem:[%s0 + $0x20] sm:$0xff]
        %v747 = vld [vmem:[%s0 + $0x28] sm:$0xff]
        %v748 = vld [vmem:[%s0 + $0x30] sm:$0xff]
        %v749 = vld [vmem:[%s0 + $0x38] sm:$0xff]
        %750 = vst [vmem:[#allocation2] sm:$0xff] %v742
        %751 = vst [vmem:[#allocation2 + $0x8] sm:$0xff] %v743
        %752 = vst [vmem:[#allocation2 + $0x10] sm:$0xff] %v744
        %753 = vst [vmem:[#allocation2 + $0x18] sm:$0xff] %v745
        %754 = vst [vmem:[#allocation2 + $0x20] sm:$0xff] %v746
        %755 = vst [vmem:[#allocation2 + $0x28] sm:$0xff] %v747
        %756 = vst [vmem:[#allocation2 + $0x30] sm:$0xff] %v748
        %757 = vst [vmem:[#allocation2 + $0x38] sm:$0xff] %v749
        %758 = vst [vmem:[%s17] sm:$0x3] 0.0
        %759 = vst [vmem:[%s18] sm:$0x3] 0.0
      $region92: #{wilor_forward.4} parent=87 // pred_fallthru
        _
      %v760 = vld [vmem:[#allocation2] sm:$0xff]
      %v761 = vld [vmem:[#allocation2 + $0x8] sm:$0xff]
      %v762 = vld [vmem:[#allocation2 + $0x10] sm:$0xff]
      %v763 = vld [vmem:[#allocation2 + $0x18] sm:$0xff]
      %v764 = vld [vmem:[#allocation2 + $0x20] sm:$0xff]
      %v765 = vld [vmem:[#allocation2 + $0x28] sm:$0xff]
      %v766 = vld [vmem:[#allocation2 + $0x30] sm:$0xff]
      %v767 = vld [vmem:[#allocation2 + $0x38] sm:$0xff]
      %v768 = vld [vmem:[%s693] sm:$0x1]
      %v769 = vld [vmem:[%s696] sm:$0x1]
      %770 = vadd.xlane.f32.xlu0 %v760
      %v771 = vpop.xlane.xlu0 %770
      %772 = vadd.xlane.f32.xlu0 %v761
      %v773 = vpop.xlane.xlu0 %772
      %774 = vadd.xlane.f32.xlu0 %v762
      %v775 = vpop.xlane.xlu0 %774
      %776 = vadd.xlane.f32.xlu0 %v763
      %v777 = vpop.xlane.xlu0 %776
      %778 = vadd.xlane.f32.xlu0 %v764
      %v779 = vpop.xlane.xlu0 %778
      %780 = vadd.xlane.f32.xlu0 %v765
      %v781 = vpop.xlane.xlu0 %780
      %782 = vadd.xlane.f32.xlu0 %v766
      %v783 = vpop.xlane.xlu0 %782
      %784 = vadd.xlane.f32.xlu0 %v767
      %v785 = vpop.xlane.xlu0 %784
      %v786 = vrcp.pop 128.0
      %v787 = vmul.f32 %v771, %v786
      %v788 = vmul.f32 %v773, %v786
      %v789 = vmul.f32 %v775, %v786
      %v790 = vmul.f32 %v777, %v786
      %v791 = vmul.f32 %v779, %v786
      %v792 = vmul.f32 %v781, %v786
      %v793 = vmul.f32 %v783, %v786
      %v794 = vmul.f32 %v785, %v786
      %v795 = vsub.f32 %v760, %v787
      %v796 = vsub.f32 %v761, %v788
      %v797 = vsub.f32 %v762, %v789
      %v798 = vsub.f32 %v763, %v790
      %v799 = vsub.f32 %v764, %v791
      %v800 = vsub.f32 %v765, %v792
      %v801 = vsub.f32 %v766, %v793
      %v802 = vsub.f32 %v767, %v794
      %v803 = vmul.f32 %v795, %v795
      %v804 = vmul.f32 %v796, %v796
      %v805 = vmul.f32 %v797, %v797
      %v806 = vmul.f32 %v798, %v798
      %v807 = vmul.f32 %v799, %v799
      %v808 = vmul.f32 %v800, %v800
      %v809 = vmul.f32 %v801, %v801
      %v810 = vmul.f32 %v802, %v802
      %811 = vadd.xlane.f32.xlu0 %v803
      %v812 = vpop.xlane.xlu0 %811
      %813 = vadd.xlane.f32.xlu0 %v804
      %v814 = vpop.xlane.xlu0 %813
      %815 = vadd.xlane.f32.xlu0 %v805
      %v816 = vpop.xlane.xlu0 %815
      %817 = vadd.xlane.f32.xlu0 %v806
      %v818 = vpop.xlane.xlu0 %817
      %819 = vadd.xlane.f32.xlu0 %v807
      %v820 = vpop.xlane.xlu0 %819
      %821 = vadd.xlane.f32.xlu0 %v808
      %v822 = vpop.xlane.xlu0 %821
      %823 = vadd.xlane.f32.xlu0 %v809
      %v824 = vpop.xlane.xlu0 %823
      %825 = vadd.xlane.f32.xlu0 %v810
      %v826 = vpop.xlane.xlu0 %825
      %v827 = vmul.f32 %v812, %v786
      %v828 = vmul.f32 %v814, %v786
      %v829 = vmul.f32 %v816, %v786
      %v830 = vmul.f32 %v818, %v786
      %v831 = vmul.f32 %v820, %v786
      %v832 = vmul.f32 %v822, %v786
      %v833 = vmul.f32 %v824, %v786
      %v834 = vmul.f32 %v826, %v786
      %v835 = vadd.f32 %v827, 1e-06
      %v836 = vadd.f32 %v828, 1e-06
      %v837 = vadd.f32 %v829, 1e-06
      %v838 = vadd.f32 %v830, 1e-06
      %v839 = vadd.f32 %v831, 1e-06
      %v840 = vadd.f32 %v832, 1e-06
      %v841 = vadd.f32 %v833, 1e-06
      %v842 = vadd.f32 %v834, 1e-06
      %v843 = vrsqrt.pop %v835
      %v844 = vrsqrt.pop %v836
      %v845 = vrsqrt.pop %v837
      %v846 = vrsqrt.pop %v838
      %v847 = vrsqrt.pop %v839
      %v848 = vrsqrt.pop %v840
      %v849 = vrsqrt.pop %v841
      %v850 = vrsqrt.pop %v842
      %v851 = vmul.f32 %v795, %v843
      %v852 = vmul.f32 %v796, %v844
      %v853 = vmul.f32 %v797, %v845
      %v854 = vmul.f32 %v798, %v846
      %v855 = vmul.f32 %v799, %v847
      %v856 = vmul.f32 %v800, %v848
      %v857 = vmul.f32 %v801, %v849
      %v858 = vmul.f32 %v802, %v850
      %v860 = vlaneseq
      %v861 = vshrl.u32 %v860, 7
      %v862 = vsub.s32 0, %v861
      %v863 = vrot.slane %v768, %v862
      %v865 = vmul.f32 %v851, %v863
      %v866 = vmul.f32 %v852, %v863
      %v867 = vmul.f32 %v853, %v863
      %v868 = vmul.f32 %v854, %v863
      %v869 = vmul.f32 %v855, %v863
      %v870 = vmul.f32 %v856, %v863
      %v871 = vmul.f32 %v857, %v863
      %v872 = vmul.f32 %v858, %v863
      %v874 = vlaneseq
      %v875 = vshrl.u32 %v874, 7
      %v876 = vsub.s32 0, %v875
      %v877 = vrot.slane %v769, %v876
      %v879 = vadd.f32 %v865, %v877
      %v880 = vadd.f32 %v866, %v877
      %v881 = vadd.f32 %v867, %v877
      %v882 = vadd.f32 %v868, %v877
      %v883 = vadd.f32 %v869, %v877
      %v884 = vadd.f32 %v870, %v877
      %v885 = vadd.f32 %v871, %v877
      %v886 = vadd.f32 %v872, %v877
      %v887 = vpack.c.bf16 %v880, %v879
      %v888 = vpack.c.bf16 %v882, %v881
      %v889 = vpack.c.bf16 %v884, %v883
      %v890 = vpack.c.bf16 %v886, %v885
      %v891 = vld [vmem:[%s701] sm:$0xff]
      %v892 = vld [vmem:[%s701 + $0x8] sm:$0xf]
      %v893 = vld [vmem:[%s701 + $0xc] sm:$0xff]
      %v894 = vld [vmem:[%s701 + $0x14] sm:$0xf]
      %v895 = vld [vmem:[%s701 + $0x18] sm:$0xff]
      %v896 = vld [vmem:[%s701 + $0x20] sm:$0xf]
      %v897 = vld [vmem:[%s701 + $0x24] sm:$0xff]
      %v898 = vld [vmem:[%s701 + $0x2c] sm:$0xf]
      %v899 = vld [vmem:[%s701 + $0x30] sm:$0xff]
      %v900 = vld [vmem:[%s701 + $0x38] sm:$0xf]
      %v901 = vld [vmem:[%s701 + $0x3c] sm:$0xff]
      %v902 = vld [vmem:[%s701 + $0x44] sm:$0xf]
      %v903 = vld [vmem:[%s701 + $0x48] sm:$0xff]
      %v904 = vld [vmem:[%s701 + $0x50] sm:$0xf]
      %v905 = vld [vmem:[%s701 + $0x54] sm:$0xff]
      %v906 = vld [vmem:[%s701 + $0x5c] sm:$0xf]
      %v907 = vld [vmem:[%s701 + $0x60] sm:$0xff]
      %v908 = vld [vmem:[%s701 + $0x68] sm:$0xf]
      %v909 = vld [vmem:[%s701 + $0x6c] sm:$0xff]
      %v910 = vld [vmem:[%s701 + $0x74] sm:$0xf]
      %v911 = vld [vmem:[%s701 + $0x78] sm:$0xff]
      %v912 = vld [vmem:[%s701 + $0x80] sm:$0xf]
      %v913 = vld [vmem:[%s701 + $0x84] sm:$0xff]
      %v914 = vld [vmem:[%s701 + $0x8c] sm:$0xf]
      %v915 = vld [vmem:[%s701 + $0x90] sm:$0xff]
      %v916 = vld [vmem:[%s701 + $0x98] sm:$0xf]
      %v917 = vld [vmem:[%s701 + $0x9c] sm:$0xff]
      %v918 = vld [vmem:[%s701 + $0xa4] sm:$0xf]
      %v919 = vld [vmem:[%s701 + $0xa8] sm:$0xff]
      %v920 = vld [vmem:[%s701 + $0xb0] sm:$0xf]
      %v921 = vld [vmem:[%s701 + $0xb4] sm:$0xff]
      %v922 = vld [vmem:[%s701 + $0xbc] sm:$0xf]
      %v923 = vld [vmem:[%s705] sm:$0x7]
      %v925 = vlaneseq
      %v926 = vshrl.u32 %v925, 7
      %v927 = vsub.s32 0, %v926
      %v928 = vrot.slane %v923, %v927
      %v929 = vlaneseq
      %v930 = vshrl.u32 %v929, 7
      %v931 = vsub.s32 1, %v930
      %v932 = vrot.slane %v923, %v931
      %v933 = vlaneseq
      %v934 = vshrl.u32 %v933, 7
      %v935 = vsub.s32 2, %v934
      %v936 = vrot.slane %v923, %v935
      %v972 = vunpack.c.l.b16 %v891
      %v973 = vunpack.c.h.b16 %v891
      %v974 = vunpack.c.l.b16 %v892
      %v975 = vunpack.c.l.b16 %v893
      %v976 = vunpack.c.h.b16 %v893
      %v977 = vunpack.c.l.b16 %v894
      %v978 = vunpack.c.l.b16 %v895
      %v979 = vunpack.c.h.b16 %v895
      %v980 = vunpack.c.l.b16 %v896
      %v981 = vunpack.c.l.b16 %v897
      %v982 = vunpack.c.h.b16 %v897
      %v983 = vunpack.c.l.b16 %v898
      %v984 = vunpack.c.l.b16 %v899
      %v985 = vunpack.c.h.b16 %v899
      %v986 = vunpack.c.l.b16 %v900
      %v987 = vunpack.c.l.b16 %v901
      %v988 = vunpack.c.h.b16 %v901
      %v989 = vunpack.c.l.b16 %v902
      %v990 = vunpack.c.l.b16 %v903
      %v991 = vunpack.c.h.b16 %v903
      %v992 = vunpack.c.l.b16 %v904
      %v993 = vunpack.c.l.b16 %v905
      %v994 = vunpack.c.h.b16 %v905
      %v995 = vunpack.c.l.b16 %v906
      %v996 = vunpack.c.l.b16 %v907
      %v997 = vunpack.c.h.b16 %v907
      %v998 = vunpack.c.l.b16 %v908
      %v999 = vunpack.c.l.b16 %v909
      %v1000 = vunpack.c.h.b16 %v909
      %v1001 = vunpack.c.l.b16 %v910
      %v1002 = vunpack.c.l.b16 %v911
      %v1003 = vunpack.c.h.b16 %v911
      %v1004 = vunpack.c.l.b16 %v912
      %v1005 = vunpack.c.l.b16 %v913
      %v1006 = vunpack.c.h.b16 %v913
      %v1007 = vunpack.c.l.b16 %v914
      %v1008 = vunpack.c.l.b16 %v915
      %v1009 = vunpack.c.h.b16 %v915
      %v1010 = vunpack.c.l.b16 %v916
      %v1011 = vunpack.c.l.b16 %v917
      %v1012 = vunpack.c.h.b16 %v917
      %v1013 = vunpack.c.l.b16 %v918
      %v1014 = vunpack.c.l.b16 %v919
      %v1015 = vunpack.c.h.b16 %v919
      %v1016 = vunpack.c.l.b16 %v920
      %v1017 = vunpack.c.l.b16 %v921
      %v1018 = vunpack.c.h.b16 %v921
      %v1019 = vunpack.c.l.b16 %v922
      %v1020 = vpack.c.b16 %v975, %v972
      %v1021 = vpack.c.b16 %v976, %v973
      %v1022 = vpack.c.b16 %v977, %v974
      %v1023 = vpack.c.b16 %v981, %v978
      %v1024 = vpack.c.b16 %v982, %v979
      %v1025 = vpack.c.b16 %v983, %v980
      %v1026 = vpack.c.b16 %v987, %v984
      %v1027 = vpack.c.b16 %v988, %v985
      %v1028 = vpack.c.b16 %v989, %v986
      %v1029 = vpack.c.b16 %v993, %v990
      %v1030 = vpack.c.b16 %v994, %v991
      %v1031 = vpack.c.b16 %v995, %v992
      %v1032 = vpack.c.b16 %v999, %v996
      %v1033 = vpack.c.b16 %v1000, %v997
      %v1034 = vpack.c.b16 %v1001, %v998
      %v1035 = vpack.c.b16 %v1005, %v1002
      %v1036 = vpack.c.b16 %v1006, %v1003
      %v1037 = vpack.c.b16 %v1007, %v1004
      %v1038 = vpack.c.b16 %v1011, %v1008
      %v1039 = vpack.c.b16 %v1012, %v1009
      %v1040 = vpack.c.b16 %v1013, %v1010
      %v1041 = vpack.c.b16 %v1017, %v1014
      %v1042 = vpack.c.b16 %v1018, %v1015
      %v1043 = vpack.c.b16 %v1019, %v1016
      %1068 = vmatprep.subr.bf16.mxu0 %v1021
      %1069 = vmatpush1.bf16.msra.mxu0 %v1020
      %1070 = vmatprep.subr.bf16.mxu0 %v1024
      %1071 = vmatpush1.bf16.msra.mxu0 %v1023
      %1072 = vmatprep.subr.bf16.mxu0 %v1027
      %1073 = vmatpush1.bf16.msra.mxu0 %v1026
      %1074 = vmatprep.subr.bf16.mxu0 %v1030
      %1075 = vmatpush1.bf16.msra.mxu0 %v1029
      %1076 = vmatprep.subr.bf16.mxu0 %v1033
      %1077 = vmatpush1.bf16.msra.mxu0 %v1032
      %1078 = vmatprep.subr.bf16.mxu0 %v1036
      %1079 = vmatpush1.bf16.msra.mxu0 %v1035
      %1080 = vmatprep.subr.bf16.mxu0 %v1039
      %1081 = vmatpush1.bf16.msra.mxu0 %v1038
      %1082 = vmatprep.subr.bf16.mxu0 %v1042
      %1083 = vmatpush1.bf16.msra.mxu0 %v1041
      %1084 = vmatprep.subr.bf16.mxu0 0
      %1085 = vmatpush1.bf16.msra.mxu0 0
      %1086 = vmatprep.subr.bf16.mxu0 0
      %1087 = vmatpush1.bf16.msra.mxu0 0
      %1088 = vmatprep.subr.bf16.mxu0 0
      %1089 = vmatpush1.bf16.msra.mxu0 0
      %1090 = vmatprep.subr.bf16.mxu0 0
      %1091 = vmatpush1.bf16.msra.mxu0 0
      %1092 = vmatprep.subr.bf16.mxu0 0
      %1093 = vmatpush1.bf16.msra.mxu0 0
      %1094 = vmatprep.subr.bf16.mxu0 0
      %1095 = vmatpush1.bf16.msra.mxu0 0
      %1096 = vmatprep.subr.bf16.mxu0 0
      %1097 = vmatpush1.bf16.msra.mxu0 0
      %1098 = vmatprep.subr.bf16.mxu0 0
      %1099 = vmatpush1.bf16.msra.mxu0 0
      %1100 = vmatprep.mubr.bf16.mxu0 0
      %1101 = vmatmul.mubr.bf16.gmra.mrb[0].mxu0 %v887
      %v1102 = vpop.f32.mrb[0].mxu0
      %v1103 = vadd.f32 %v928, %v1102
      %v1104 = vpop.f32.mrb[0].mxu0
      %v1105 = vadd.f32 %v932, %v1104
      %v1106 = vpop.f32.mrb[0].mxu0
      %v1107 = vadd.f32 %v928, %v1106
      %v1108 = vpop.f32.mrb[0].mxu0
      %v1109 = vadd.f32 %v932, %v1108
      %1110 = vmatprep.mubr.bf16.mxu0 0
      %1111 = vmatmul.mubr.bf16.gmra.mrb[0].mxu0 %v888
      %v1112 = vpop.f32.mrb[0].mxu0
      %v1113 = vadd.f32 %v928, %v1112
      %v1114 = vpop.f32.mrb[0].mxu0
      %v1115 = vadd.f32 %v932, %v1114
      %v1116 = vpop.f32.mrb[0].mxu0
      %v1117 = vadd.f32 %v928, %v1116
      %v1118 = vpop.f32.mrb[0].mxu0
      %v1119 = vadd.f32 %v932, %v1118
      %1120 = vmatprep.mubr.bf16.mxu0 0
      %1121 = vmatmul.mubr.bf16.gmra.mrb[0].mxu0 %v889
      %v1122 = vpop.f32.mrb[0].mxu0
      %v1123 = vadd.f32 %v928, %v1122
      %v1124 = vpop.f32.mrb[0].mxu0
      %v1125 = vadd.f32 %v932, %v1124
      %v1126 = vpop.f32.mrb[0].mxu0
      %v1127 = vadd.f32 %v928, %v1126
      %v1128 = vpop.f32.mrb[0].mxu0
      %v1129 = vadd.f32 %v932, %v1128
      %1130 = vmatprep.mubr.bf16.mxu0 0
      %1131 = vmatmul.mubr.bf16.gmra.mrb[0].mxu0 %v890
      %v1132 = vpop.f32.mrb[0].mxu0
      %v1133 = vadd.f32 %v928, %v1132
      %v1134 = vpop.f32.mrb[0].mxu0
      %v1135 = vadd.f32 %v932, %v1134
      %v1136 = vpop.f32.mrb[0].mxu0
      %v1137 = vadd.f32 %v928, %v1136
      %v1138 = vpop.f32.mrb[0].mxu0
      %v1139 = vadd.f32 %v932, %v1138
      %1140 = vdwg.mxu0
      %1141 = vmatprep.subr.bf16.mxu0 0
      %1142 = vmatpush1.bf16.msra.mxu0 %v1022
      %1143 = vmatprep.subr.bf16.mxu0 0
      %1144 = vmatpush1.bf16.msra.mxu0 %v1025
      %1145 = vmatprep.subr.bf16.mxu0 0
      %1146 = vmatpush1.bf16.msra.mxu0 %v1028
      %1147 = vmatprep.subr.bf16.mxu0 0
      %1148 = vmatpush1.bf16.msra.mxu0 %v1031
      %1149 = vmatprep.subr.bf16.mxu0 0
      %1150 = vmatpush1.bf16.msra.mxu0 %v1034
      %1151 = vmatprep.subr.bf16.mxu0 0
      %1152 = vmatpush1.bf16.msra.mxu0 %v1037
      %1153 = vmatprep.subr.bf16.mxu0 0
      %1154 = vmatpush1.bf16.msra.mxu0 %v1040
      %1155 = vmatprep.subr.bf16.mxu0 0
      %1156 = vmatpush1.bf16.msra.mxu0 %v1043
      %1157 = vmatprep.subr.bf16.mxu0 0
      %1158 = vmatpush1.bf16.msra.mxu0 0
      %1159 = vmatprep.subr.bf16.mxu0 0
      %1160 = vmatpush1.bf16.msra.mxu0 0
      %1161 = vmatprep.subr.bf16.mxu0 0
      %1162 = vmatpush1.bf16.msra.mxu0 0
      %1163 = vmatprep.subr.bf16.mxu0 0
      %1164 = vmatpush1.bf16.msra.mxu0 0
      %1165 = vmatprep.subr.bf16.mxu0 0
      %1166 = vmatpush1.bf16.msra.mxu0 0
      %1167 = vmatprep.subr.bf16.mxu0 0
      %1168 = vmatpush1.bf16.msra.mxu0 0
      %1169 = vmatprep.subr.bf16.mxu0 0
      %1170 = vmatpush1.bf16.msra.mxu0 0
      %1171 = vmatprep.subr.bf16.mxu0 0
      %1172 = vmatpush1.bf16.msra.mxu0 0
      %1173 = vmatprep.mubr.bf16.mxu0 0
      %1174 = vmatmul.mubr.bf16.gmra.mrb[0].mxu0 %v887
      %v1175 = vpop.f32.mrb[0].mxu0
      %v1176 = vadd.f32 %v936, %v1175
      %v1177 = vpop.f32.mrb[0].mxu0
      %v1178 = vpop.f32.mrb[0].mxu0
      %v1179 = vadd.f32 %v936, %v1178
      %v1180 = vpop.f32.mrb[0].mxu0
      %1181 = vmatprep.mubr.bf16.mxu0 0
      %1182 = vmatmul.mubr.bf16.gmra.mrb[0].mxu0 %v888
      %v1183 = vpop.f32.mrb[0].mxu0
      %v1184 = vadd.f32 %v936, %v1183
      %v1185 = vpop.f32.mrb[0].mxu0
      %v1186 = vpop.f32.mrb[0].mxu0
      %v1187 = vadd.f32 %v936, %v1186
      %v1188 = vpop.f32.mrb[0].mxu0
      %1189 = vmatprep.mubr.bf16.mxu0 0
      %1190 = vmatmul.mubr.bf16.gmra.mrb[0].mxu0 %v889
      %v1191 = vpop.f32.mrb[0].mxu0
      %v1192 = vadd.f32 %v936, %v1191
      %v1193 = vpop.f32.mrb[0].mxu0
      %v1194 = vpop.f32.mrb[0].mxu0
      %v1195 = vadd.f32 %v936, %v1194
      %v1196 = vpop.f32.mrb[0].mxu0
      %1197 = vmatprep.mubr.bf16.mxu0 0
      %1198 = vmatmul.mubr.bf16.gmra.mrb[0].mxu0 %v890
      %v1199 = vpop.f32.mrb[0].mxu0
      %v1200 = vadd.f32 %v936, %v1199
      %v1201 = vpop.f32.mrb[0].mxu0
      %v1202 = vpop.f32.mrb[0].mxu0
      %v1203 = vadd.f32 %v936, %v1202
      %v1204 = vpop.f32.mrb[0].mxu0
      %1205 = vdwg.mxu0
      %1214 = vrot.lane.b32.xlu0 %v1103, 96
      %v1215 = vpop.permute.xlu0 %1214
      %1216 = vrot.lane.b32.xlu0 %v1107, 96
      %v1217 = vpop.permute.xlu0 %1216
      %1218 = vrot.lane.b32.xlu0 %v1113, 96
      %v1219 = vpop.permute.xlu0 %1218
      %1220 = vrot.lane.b32.xlu0 %v1117, 96
      %v1221 = vpop.permute.xlu0 %1220
      %1222 = vrot.lane.b32.xlu0 %v1123, 96
      %v1223 = vpop.permute.xlu0 %1222
      %1224 = vrot.lane.b32.xlu0 %v1127, 96
      %v1225 = vpop.permute.xlu0 %1224
      %1226 = vrot.lane.b32.xlu0 %v1133, 96
      %v1227 = vpop.permute.xlu0 %1226
      %1228 = vrot.lane.b32.xlu0 %v1137, 96
      %v1229 = vpop.permute.xlu0 %1228
      %1238 = vrot.lane.b32.xlu0 %v1103, 64
      %v1239 = vpop.permute.xlu0 %1238
      %1240 = vrot.lane.b32.xlu0 %v1107, 64
      %v1241 = vpop.permute.xlu0 %1240
      %1242 = vrot.lane.b32.xlu0 %v1113, 64
      %v1243 = vpop.permute.xlu0 %1242
      %1244 = vrot.lane.b32.xlu0 %v1117, 64
      %v1245 = vpop.permute.xlu0 %1244
      %1246 = vrot.lane.b32.xlu0 %v1123, 64
      %v1247 = vpop.permute.xlu0 %1246
      %1248 = vrot.lane.b32.xlu0 %v1127, 64
      %v1249 = vpop.permute.xlu0 %1248
      %1250 = vrot.lane.b32.xlu0 %v1133, 64
      %v1251 = vpop.permute.xlu0 %1250
      %1252 = vrot.lane.b32.xlu0 %v1137, 64
      %v1253 = vpop.permute.xlu0 %1252
      %1262 = vrot.lane.b32.xlu0 %v1103, 32
      %v1263 = vpop.permute.xlu0 %1262
      %1264 = vrot.lane.b32.xlu0 %v1107, 32
      %v1265 = vpop.permute.xlu0 %1264
      %1266 = vrot.lane.b32.xlu0 %v1113, 32
      %v1267 = vpop.permute.xlu0 %1266
      %1268 = vrot.lane.b32.xlu0 %v1117, 32
      %v1269 = vpop.permute.xlu0 %1268
      %1270 = vrot.lane.b32.xlu0 %v1123, 32
      %v1271 = vpop.permute.xlu0 %1270
      %1272 = vrot.lane.b32.xlu0 %v1127, 32
      %v1273 = vpop.permute.xlu0 %1272
      %1274 = vrot.lane.b32.xlu0 %v1133, 32
      %v1275 = vpop.permute.xlu0 %1274
      %1276 = vrot.lane.b32.xlu0 %v1137, 32
      %v1277 = vpop.permute.xlu0 %1276
      %v1286 = vpack.c.bf16 %v1107, %v1103
      %v1287 = vpack.c.bf16 %v1117, %v1113
      %v1288 = vpack.c.bf16 %v1127, %v1123
      %v1289 = vpack.c.bf16 %v1137, %v1133
      %v1290 = vpack.c.bf16 %v1217, %v1215
      %v1291 = vpack.c.bf16 %v1221, %v1219
      %v1292 = vpack.c.bf16 %v1225, %v1223
      %v1293 = vpack.c.bf16 %v1229, %v1227
      %v1294 = vpack.c.bf16 %v1241, %v1239
      %v1295 = vpack.c.bf16 %v1245, %v1243
      %v1296 = vpack.c.bf16 %v1249, %v1247
      %v1297 = vpack.c.bf16 %v1253, %v1251
      %v1298 = vpack.c.bf16 %v1265, %v1263
      %v1299 = vpack.c.bf16 %v1269, %v1267
      %v1300 = vpack.c.bf16 %v1273, %v1271
      %v1301 = vpack.c.bf16 %v1277, %v1275
      %1310 = vrot.lane.b32.xlu0 %v1105, 96
      %v1311 = vpop.permute.xlu0 %1310
      %1312 = vrot.lane.b32.xlu0 %v1109, 96
      %v1313 = vpop.permute.xlu0 %1312
      %1314 = vrot.lane.b32.xlu0 %v1115, 96
      %v1315 = vpop.permute.xlu0 %1314
      %1316 = vrot.lane.b32.xlu0 %v1119, 96
      %v1317 = vpop.permute.xlu0 %1316
      %1318 = vrot.lane.b32.xlu0 %v1125, 96
      %v1319 = vpop.permute.xlu0 %1318
      %1320 = vrot.lane.b32.xlu0 %v1129, 96
      %v1321 = vpop.permute.xlu0 %1320
      %1322 = vrot.lane.b32.xlu0 %v1135, 96
      %v1323 = vpop.permute.xlu0 %1322
      %1324 = vrot.lane.b32.xlu0 %v1139, 96
      %v1325 = vpop.permute.xlu0 %1324
      %1334 = vrot.lane.b32.xlu0 %v1105, 64
      %v1335 = vpop.permute.xlu0 %1334
      %1336 = vrot.lane.b32.xlu0 %v1109, 64
      %v1337 = vpop.permute.xlu0 %1336
      %1338 = vrot.lane.b32.xlu0 %v1115, 64
      %v1339 = vpop.permute.xlu0 %1338
      %1340 = vrot.lane.b32.xlu0 %v1119, 64
      %v1341 = vpop.permute.xlu0 %1340
      %1342 = vrot.lane.b32.xlu0 %v1125, 64
      %v1343 = vpop.permute.xlu0 %1342
      %1344 = vrot.lane.b32.xlu0 %v1129, 64
      %v1345 = vpop.permute.xlu0 %1344
      %1346 = vrot.lane.b32.xlu0 %v1135, 64
      %v1347 = vpop.permute.xlu0 %1346
      %1348 = vrot.lane.b32.xlu0 %v1139, 64
      %v1349 = vpop.permute.xlu0 %1348
      %1358 = vrot.lane.b32.xlu0 %v1105, 32
      %v1359 = vpop.permute.xlu0 %1358
      %1360 = vrot.lane.b32.xlu0 %v1109, 32
      %v1361 = vpop.permute.xlu0 %1360
      %1362 = vrot.lane.b32.xlu0 %v1115, 32
      %v1363 = vpop.permute.xlu0 %1362
      %1364 = vrot.lane.b32.xlu0 %v1119, 32
      %v1365 = vpop.permute.xlu0 %1364
      %1366 = vrot.lane.b32.xlu0 %v1125, 32
      %v1367 = vpop.permute.xlu0 %1366
      %1368 = vrot.lane.b32.xlu0 %v1129, 32
      %v1369 = vpop.permute.xlu0 %1368
      %1370 = vrot.lane.b32.xlu0 %v1135, 32
      %v1371 = vpop.permute.xlu0 %1370
      %1372 = vrot.lane.b32.xlu0 %v1139, 32
      %v1373 = vpop.permute.xlu0 %1372
      %v1382 = vpack.c.bf16 %v1109, %v1105
      %v1383 = vpack.c.bf16 %v1119, %v1115
      %v1384 = vpack.c.bf16 %v1129, %v1125
      %v1385 = vpack.c.bf16 %v1139, %v1135
      %v1386 = vpack.c.bf16 %v1313, %v1311
      %v1387 = vpack.c.bf16 %v1317, %v1315
      %v1388 = vpack.c.bf16 %v1321, %v1319
      %v1389 = vpack.c.bf16 %v1325, %v1323
      %v1390 = vpack.c.bf16 %v1337, %v1335
      %v1391 = vpack.c.bf16 %v1341, %v1339
      %v1392 = vpack.c.bf16 %v1345, %v1343
      %v1393 = vpack.c.bf16 %v1349, %v1347
      %v1394 = vpack.c.bf16 %v1361, %v1359
      %v1395 = vpack.c.bf16 %v1365, %v1363
      %v1396 = vpack.c.bf16 %v1369, %v1367
      %v1397 = vpack.c.bf16 %v1373, %v1371
      %1406 = vrot.lane.b32.xlu0 %v1176, 96
      %v1407 = vpop.permute.xlu0 %1406
      %1408 = vrot.lane.b32.xlu0 %v1179, 96
      %v1409 = vpop.permute.xlu0 %1408
      %1410 = vrot.lane.b32.xlu0 %v1184, 96
      %v1411 = vpop.permute.xlu0 %1410
      %1412 = vrot.lane.b32.xlu0 %v1187, 96
      %v1413 = vpop.permute.xlu0 %1412
      %1414 = vrot.lane.b32.xlu0 %v1192, 96
      %v1415 = vpop.permute.xlu0 %1414
      %1416 = vrot.lane.b32.xlu0 %v1195, 96
      %v1417 = vpop.permute.xlu0 %1416
      %1418 = vrot.lane.b32.xlu0 %v1200, 96
      %v1419 = vpop.permute.xlu0 %1418
      %1420 = vrot.lane.b32.xlu0 %v1203, 96
      %v1421 = vpop.permute.xlu0 %1420
      %1430 = vrot.lane.b32.xlu0 %v1176, 64
      %v1431 = vpop.permute.xlu0 %1430
      %1432 = vrot.lane.b32.xlu0 %v1179, 64
      %v1433 = vpop.permute.xlu0 %1432
      %1434 = vrot.lane.b32.xlu0 %v1184, 64
      %v1435 = vpop.permute.xlu0 %1434
      %1436 = vrot.lane.b32.xlu0 %v1187, 64
      %v1437 = vpop.permute.xlu0 %1436
      %1438 = vrot.lane.b32.xlu0 %v1192, 64
      %v1439 = vpop.permute.xlu0 %1438
      %1440 = vrot.lane.b32.xlu0 %v1195, 64
      %v1441 = vpop.permute.xlu0 %1440
      %1442 = vrot.lane.b32.xlu0 %v1200, 64
      %v1443 = vpop.permute.xlu0 %1442
      %1444 = vrot.lane.b32.xlu0 %v1203, 64
      %v1445 = vpop.permute.xlu0 %1444
      %1454 = vrot.lane.b32.xlu0 %v1176, 32
      %v1455 = vpop.permute.xlu0 %1454
      %1456 = vrot.lane.b32.xlu0 %v1179, 32
      %v1457 = vpop.permute.xlu0 %1456
      %1458 = vrot.lane.b32.xlu0 %v1184, 32
      %v1459 = vpop.permute.xlu0 %1458
      %1460 = vrot.lane.b32.xlu0 %v1187, 32
      %v1461 = vpop.permute.xlu0 %1460
      %1462 = vrot.lane.b32.xlu0 %v1192, 32
      %v1463 = vpop.permute.xlu0 %1462
      %1464 = vrot.lane.b32.xlu0 %v1195, 32
      %v1465 = vpop.permute.xlu0 %1464
      %1466 = vrot.lane.b32.xlu0 %v1200, 32
      %v1467 = vpop.permute.xlu0 %1466
      %1468 = vrot.lane.b32.xlu0 %v1203, 32
      %v1469 = vpop.permute.xlu0 %1468
      %v1478 = vpack.c.bf16 %v1179, %v1176
      %v1479 = vpack.c.bf16 %v1187, %v1184
      %v1480 = vpack.c.bf16 %v1195, %v1192
      %v1481 = vpack.c.bf16 %v1203, %v1200
      %v1482 = vpack.c.bf16 %v1409, %v1407
      %v1483 = vpack.c.bf16 %v1413, %v1411
      %v1484 = vpack.c.bf16 %v1417, %v1415
      %v1485 = vpack.c.bf16 %v1421, %v1419
      %v1486 = vpack.c.bf16 %v1433, %v1431
      %v1487 = vpack.c.bf16 %v1437, %v1435
      %v1488 = vpack.c.bf16 %v1441, %v1439
      %v1489 = vpack.c.bf16 %v1445, %v1443
      %v1490 = vpack.c.bf16 %v1457, %v1455
      %v1491 = vpack.c.bf16 %v1461, %v1459
      %v1492 = vpack.c.bf16 %v1465, %v1463
      %v1493 = vpack.c.bf16 %v1469, %v1467
      %vm1494 = vcmask 261120
      %v1496 = vsel %vm1494, %v1286, 0
      %v1499 = vsel %vm1494, %v1287, 0
      %v1502 = vsel %vm1494, %v1382, 0
      %v1505 = vsel %vm1494, %v1383, 0
      %1507 = vmatprep.subr.bf16.mxu0 0
      %1508 = vmatpush1.bf16.xpose.msra.mxu0 %v1502
      %1509 = vmatprep.subr.bf16.mxu0 0
      %1510 = vmatpush1.bf16.xpose.msra.mxu0 %v1505
      %1511 = vmatprep.subr.bf16.mxu0 0
      %1512 = vmatpush1.bf16.xpose.msra.mxu0 0
      %1513 = vmatprep.subr.bf16.mxu0 0
      %1514 = vmatpush1.bf16.xpose.msra.mxu0 0
      %1515 = vmatprep.subr.bf16.mxu0 0
      %1516 = vmatpush1.bf16.xpose.msra.mxu0 0
      %1517 = vmatprep.subr.bf16.mxu0 0
      %1518 = vmatpush1.bf16.xpose.msra.mxu0 0
      %1519 = vmatprep.subr.bf16.mxu0 0
      %1520 = vmatpush1.bf16.xpose.msra.mxu0 0
      %1521 = vmatprep.subr.bf16.mxu0 0
      %1522 = vmatpush1.bf16.xpose.msra.mxu0 0
      %1523 = vmatprep.subr.bf16.mxu0 0
      %1524 = vmatpush1.bf16.xpose.msra.mxu0 0
      %1525 = vmatprep.subr.bf16.mxu0 0
      %1526 = vmatpush1.bf16.xpose.msra.mxu0 0
      %1527 = vmatprep.subr.bf16.mxu0 0
      %1528 = vmatpush1.bf16.xpose.msra.mxu0 0
      %1529 = vmatprep.subr.bf16.mxu0 0
      %1530 = vmatpush1.bf16.xpose.msra.mxu0 0
      %1531 = vmatprep.subr.bf16.mxu0 0
      %1532 = vmatpush1.bf16.xpose.msra.mxu0 0
      %1533 = vmatprep.subr.bf16.mxu0 0
      %1534 = vmatpush1.bf16.xpose.msra.mxu0 0
      %1535 = vmatprep.subr.bf16.mxu0 0
      %1536 = vmatpush1.bf16.xpose.msra.mxu0 0
      %1537 = vmatprep.subr.bf16.mxu0 0
      %1538 = vmatpush1.bf16.xpose.msra.mxu0 0
      %1539 = vmatprep.mubr.bf16.mxu0 0
      %1540 = vmatmul.mubr.bf16.gmra.mrb[0].mxu0 %v1496
      %v1541 = vpop.f32.mrb[0].mxu0
      %v1542 = vadd.f32 0.0, %v1541
      %v1543 = vpop.f32.mrb[0].mxu0
      %v1544 = vpop.f32.mrb[0].mxu0
      %v1545 = vadd.f32 0.0, %v1544
      %v1546 = vpop.f32.mrb[0].mxu0
      %1547 = vmatprep.mubr.bf16.mxu0 0
      %1548 = vmatmul.mubr.bf16.gmra.mrb[0].mxu0 %v1499
      %v1549 = vpop.f32.mrb[0].mxu0
      %v1550 = vadd.f32 0.0, %v1549
      %v1551 = vpop.f32.mrb[0].mxu0
      %v1552 = vpop.f32.mrb[0].mxu0
      %v1553 = vadd.f32 0.0, %v1552
      %v1554 = vpop.f32.mrb[0].mxu0
      %1555 = vdwg.mxu0
      %v1557 = vsel %vm1494, %v1288, 0
      %v1560 = vsel %vm1494, %v1289, 0
      %v1563 = vsel %vm1494, %v1384, 0
      %v1566 = vsel %vm1494, %v1385, 0
      %1568 = vmatprep.subr.bf16.mxu0 0
      %1569 = vmatpush1.bf16.xpose.msra.mxu0 %v1563
      %1570 = vmatprep.subr.bf16.mxu0 0
      %1571 = vmatpush1.bf16.xpose.msra.mxu0 %v1566
      %1572 = vmatprep.subr.bf16.mxu0 0
      %1573 = vmatpush1.bf16.xpose.msra.mxu0 0
      %1574 = vmatprep.subr.bf16.mxu0 0
      %1575 = vmatpush1.bf16.xpose.msra.mxu0 0
      %1576 = vmatprep.subr.bf16.mxu0 0
      %1577 = vmatpush1.bf16.xpose.msra.mxu0 0
      %1578 = vmatprep.subr.bf16.mxu0 0
      %1579 = vmatpush1.bf16.xpose.msra.mxu0 0
      %1580 = vmatprep.subr.bf16.mxu0 0
      %1581 = vmatpush1.bf16.xpose.msra.mxu0 0
      %1582 = vmatprep.subr.bf16.mxu0 0
      %1583 = vmatpush1.bf16.xpose.msra.mxu0 0
      %1584 = vmatprep.subr.bf16.mxu0 0
      %1585 = vmatpush1.bf16.xpose.msra.mxu0 0
      %1586 = vmatprep.subr.bf16.mxu0 0
      %1587 = vmatpush1.bf16.xpose.msra.mxu0 0
      %1588 = vmatprep.subr.bf16.mxu0 0
      %1589 = vmatpush1.bf16.xpose.msra.mxu0 0
      %1590 = vmatprep.subr.bf16.mxu0 0
      %1591 = vmatpush1.bf16.xpose.msra.mxu0 0
      %1592 = vmatprep.subr.bf16.mxu0 0
      %1593 = vmatpush1.bf16.xpose.msra.mxu0 0
      %1594 = vmatprep.subr.bf16.mxu0 0
      %1595 = vmatpush1.bf16.xpose.msra.mxu0 0
      %1596 = vmatprep.subr.bf16.mxu0 0
      %1597 = vmatpush1.bf16.xpose.msra.mxu0 0
      %1598 = vmatprep.subr.bf16.mxu0 0
      %1599 = vmatpush1.bf16.xpose.msra.mxu0 0
      %1600 = vmatprep.mubr.bf16.mxu0 0
      %1601 = vmatmul.mubr.bf16.gmra.mrb[0].mxu0 %v1557
      %v1602 = vpop.f32.mrb[0].mxu0
      %v1603 = vadd.f32 0.0, %v1602
      %v1604 = vpop.f32.mrb[0].mxu0
      %v1605 = vpop.f32.mrb[0].mxu0
      %v1606 = vadd.f32 0.0, %v1605
      %v1607 = vpop.f32.mrb[0].mxu0
      %1608 = vmatprep.mubr.bf16.mxu0 0
      %1609 = vmatmul.mubr.bf16.gmra.mrb[0].mxu0 %v1560
      %v1610 = vpop.f32.mrb[0].mxu0
      %v1611 = vadd.f32 0.0, %v1610
      %v1612 = vpop.f32.mrb[0].mxu0
      %v1613 = vpop.f32.mrb[0].mxu0
      %v1614 = vadd.f32 0.0, %v1613
      %v1615 = vpop.f32.mrb[0].mxu0
      %1616 = vdwg.mxu0
      %v1618 = vsel %vm1494, %v1290, 0
      %v1621 = vsel %vm1494, %v1291, 0
      %v1624 = vsel %vm1494, %v1386, 0
      %v1627 = vsel %vm1494, %v1387, 0
      %1629 = vmatprep.subr.bf16.mxu0 0
      %1630 = vmatpush1.bf16.xpose.msra.mxu0 %v1624
      %1631 = vmatprep.subr.bf16.mxu0 0
      %1632 = vmatpush1.bf16.xpose.msra.mxu0 %v1627
      %1633 = vmatprep.subr.bf16.mxu0 0
      %1634 = vmatpush1.bf16.xpose.msra.mxu0 0
      %1635 = vmatprep.subr.bf16.mxu0 0
      %1636 = vmatpush1.bf16.xpose.msra.mxu0 0
      %1637 = vmatprep.subr.bf16.mxu0 0
      %1638 = vmatpush1.bf16.xpose.msra.mxu0 0
      %1639 = vmatprep.subr.bf16.mxu0 0
      %1640 = vmatpush1.bf16.xpose.msra.mxu0 0
      %1641 = vmatprep.subr.bf16.mxu0 0
      %1642 = vmatpush1.bf16.xpose.msra.mxu0 0
      %1643 = vmatprep.subr.bf16.mxu0 0
      %1644 = vmatpush1.bf16.xpose.msra.mxu0 0
      %1645 = vmatprep.subr.bf16.mxu0 0
      %1646 = vmatpush1.bf16.xpose.msra.mxu0 0
      %1647 = vmatprep.subr.bf16.mxu0 0
      %1648 = vmatpush1.bf16.xpose.msra.mxu0 0
      %1649 = vmatprep.subr.bf16.mxu0 0
      %1650 = vmatpush1.bf16.xpose.msra.mxu0 0
      %1651 = vmatprep.subr.bf16.mxu0 0
      %1652 = vmatpush1.bf16.xpose.msra.mxu0 0
      %1653 = vmatprep.subr.bf16.mxu0 0
      %1654 = vmatpush1.bf16.xpose.msra.mxu0 0
      %1655 = vmatprep.subr.bf16.mxu0 0
      %1656 = vmatpush1.bf16.xpose.msra.mxu0 0
      %1657 = vmatprep.subr.bf16.mxu0 0
      %1658 = vmatpush1.bf16.xpose.msra.mxu0 0
      %1659 = vmatprep.subr.bf16.mxu0 0
      %1660 = vmatpush1.bf16.xpose.msra.mxu0 0
      %1661 = vmatprep.mubr.bf16.mxu0 0
      %1662 = vmatmul.mubr.bf16.gmra.mrb[0].mxu0 %v1618
      %v1663 = vpop.f32.mrb[0].mxu0
      %v1664 = vadd.f32 0.0, %v1663
      %v1665 = vpop.f32.mrb[0].mxu0
      %v1666 = vpop.f32.mrb[0].mxu0
      %v1667 = vadd.f32 0.0, %v1666
      %v1668 = vpop.f32.mrb[0].mxu0
      %1669 = vmatprep.mubr.bf16.mxu0 0
      %1670 = vmatmul.mubr.bf16.gmra.mrb[0].mxu0 %v1621
      %v1671 = vpop.f32.mrb[0].mxu0
      %v1672 = vadd.f32 0.0, %v1671
      %v1673 = vpop.f32.mrb[0].mxu0
      %v1674 = vpop.f32.mrb[0].mxu0
      %v1675 = vadd.f32 0.0, %v1674
      %v1676 = vpop.f32.mrb[0].mxu0
      %1677 = vdwg.mxu0
      %v1679 = vsel %vm1494, %v1292, 0
      %v1682 = vsel %vm1494, %v1293, 0
      %v1685 = vsel %vm1494, %v1388, 0
      %v1688 = vsel %vm1494, %v1389, 0
      %1690 = vmatprep.subr.bf16.mxu0 0
      %1691 = vmatpush1.bf16.xpose.msra.mxu0 %v1685
      %1692 = vmatprep.subr.bf16.mxu0 0
      %1693 = vmatpush1.bf16.xpose.msra.mxu0 %v1688
      %1694 = vmatprep.subr.bf16.mxu0 0
      %1695 = vmatpush1.bf16.xpose.msra.mxu0 0
      %1696 = vmatprep.subr.bf16.mxu0 0
      %1697 = vmatpush1.bf16.xpose.msra.mxu0 0
      %1698 = vmatprep.subr.bf16.mxu0 0
      %1699 = vmatpush1.bf16.xpose.msra.mxu0 0
      %1700 = vmatprep.subr.bf16.mxu0 0
      %1701 = vmatpush1.bf16.xpose.msra.mxu0 0
      %1702 = vmatprep.subr.bf16.mxu0 0
      %1703 = vmatpush1.bf16.xpose.msra.mxu0 0
      %1704 = vmatprep.subr.bf16.mxu0 0
      %1705 = vmatpush1.bf16.xpose.msra.mxu0 0
      %1706 = vmatprep.subr.bf16.mxu0 0
      %1707 = vmatpush1.bf16.xpose.msra.mxu0 0
      %1708 = vmatprep.subr.bf16.mxu0 0
      %1709 = vmatpush1.bf16.xpose.msra.mxu0 0
      %1710 = vmatprep.subr.bf16.mxu0 0
      %1711 = vmatpush1.bf16.xpose.msra.mxu0 0
      %1712 = vmatprep.subr.bf16.mxu0 0
      %1713 = vmatpush1.bf16.xpose.msra.mxu0 0
      %1714 = vmatprep.subr.bf16.mxu0 0
      %1715 = vmatpush1.bf16.xpose.msra.mxu0 0
      %1716 = vmatprep.subr.bf16.mxu0 0
      %1717 = vmatpush1.bf16.xpose.msra.mxu0 0
      %1718 = vmatprep.subr.bf16.mxu0 0
      %1719 = vmatpush1.bf16.xpose.msra.mxu0 0
      %1720 = vmatprep.subr.bf16.mxu0 0
      %1721 = vmatpush1.bf16.xpose.msra.mxu0 0
      %1722 = vmatprep.mubr.bf16.mxu0 0
      %1723 = vmatmul.mubr.bf16.gmra.mrb[0].mxu0 %v1679
      %v1724 = vpop.f32.mrb[0].mxu0
      %v1725 = vadd.f32 0.0, %v1724
      %v1726 = vpop.f32.mrb[0].mxu0
      %v1727 = vpop.f32.mrb[0].mxu0
      %v1728 = vadd.f32 0.0, %v1727
      %v1729 = vpop.f32.mrb[0].mxu0
      %1730 = vmatprep.mubr.bf16.mxu0 0
      %1731 = vmatmul.mubr.bf16.gmra.mrb[0].mxu0 %v1682
      %v1732 = vpop.f32.mrb[0].mxu0
      %v1733 = vadd.f32 0.0, %v1732
      %v1734 = vpop.f32.mrb[0].mxu0
      %v1735 = vpop.f32.mrb[0].mxu0
      %v1736 = vadd.f32 0.0, %v1735
      %v1737 = vpop.f32.mrb[0].mxu0
      %1738 = vdwg.mxu0
      %v1740 = vsel %vm1494, %v1294, 0
      %v1743 = vsel %vm1494, %v1295, 0
      %v1746 = vsel %vm1494, %v1390, 0
      %v1749 = vsel %vm1494, %v1391, 0
      %1751 = vmatprep.subr.bf16.mxu0 0
      %1752 = vmatpush1.bf16.xpose.msra.mxu0 %v1746
      %1753 = vmatprep.subr.bf16.mxu0 0
      %1754 = vmatpush1.bf16.xpose.msra.mxu0 %v1749
      %1755 = vmatprep.subr.bf16.mxu0 0
      %1756 = vmatpush1.bf16.xpose.msra.mxu0 0
      %1757 = vmatprep.subr.bf16.mxu0 0
      %1758 = vmatpush1.bf16.xpose.msra.mxu0 0
      %1759 = vmatprep.subr.bf16.mxu0 0
      %1760 = vmatpush1.bf16.xpose.msra.mxu0 0
      %1761 = vmatprep.subr.bf16.mxu0 0
      %1762 = vmatpush1.bf16.xpose.msra.mxu0 0
      %1763 = vmatprep.subr.bf16.mxu0 0
      %1764 = vmatpush1.bf16.xpose.msra.mxu0 0
      %1765 = vmatprep.subr.bf16.mxu0 0
      %1766 = vmatpush1.bf16.xpose.msra.mxu0 0
      %1767 = vmatprep.subr.bf16.mxu0 0
      %1768 = vmatpush1.bf16.xpose.msra.mxu0 0
      %1769 = vmatprep.subr.bf16.mxu0 0
      %1770 = vmatpush1.bf16.xpose.msra.mxu0 0
      %1771 = vmatprep.subr.bf16.mxu0 0
      %1772 = vmatpush1.bf16.xpose.msra.mxu0 0
      %1773 = vmatprep.subr.bf16.mxu0 0
      %1774 = vmatpush1.bf16.xpose.msra.mxu0 0
      %1775 = vmatprep.subr.bf16.mxu0 0
      %1776 = vmatpush1.bf16.xpose.msra.mxu0 0
      %1777 = vmatprep.subr.bf16.mxu0 0
      %1778 = vmatpush1.bf16.xpose.msra.mxu0 0
      %1779 = vmatprep.subr.bf16.mxu0 0
      %1780 = vmatpush1.bf16.xpose.msra.mxu0 0
      %1781 = vmatprep.subr.bf16.mxu0 0
      %1782 = vmatpush1.bf16.xpose.msra.mxu0 0
      %1783 = vmatprep.mubr.bf16.mxu0 0
      %1784 = vmatmul.mubr.bf16.gmra.mrb[0].mxu0 %v1740
      %v1785 = vpop.f32.mrb[0].mxu0
      %v1786 = vadd.f32 0.0, %v1785
      %v1787 = vpop.f32.mrb[0].mxu0
      %v1788 = vpop.f32.mrb[0].mxu0
      %v1789 = vadd.f32 0.0, %v1788
      %v1790 = vpop.f32.mrb[0].mxu0
      %1791 = vmatprep.mubr.bf16.mxu0 0
      %1792 = vmatmul.mubr.bf16.gmra.mrb[0].mxu0 %v1743
      %v1793 = vpop.f32.mrb[0].mxu0
      %v1794 = vadd.f32 0.0, %v1793
      %v1795 = vpop.f32.mrb[0].mxu0
      %v1796 = vpop.f32.mrb[0].mxu0
      %v1797 = vadd.f32 0.0, %v1796
      %v1798 = vpop.f32.mrb[0].mxu0
      %1799 = vdwg.mxu0
      %v1801 = vsel %vm1494, %v1296, 0
      %v1804 = vsel %vm1494, %v1297, 0
      %v1807 = vsel %vm1494, %v1392, 0
      %v1810 = vsel %vm1494, %v1393, 0
      %1812 = vmatprep.subr.bf16.mxu0 0
      %1813 = vmatpush1.bf16.xpose.msra.mxu0 %v1807
      %1814 = vmatprep.subr.bf16.mxu0 0
      %1815 = vmatpush1.bf16.xpose.msra.mxu0 %v1810
      %1816 = vmatprep.subr.bf16.mxu0 0
      %1817 = vmatpush1.bf16.xpose.msra.mxu0 0
      %1818 = vmatprep.subr.bf16.mxu0 0
      %1819 = vmatpush1.bf16.xpose.msra.mxu0 0
      %1820 = vmatprep.subr.bf16.mxu0 0
      %1821 = vmatpush1.bf16.xpose.msra.mxu0 0
      %1822 = vmatprep.subr.bf16.mxu0 0
      %1823 = vmatpush1.bf16.xpose.msra.mxu0 0
      %1824 = vmatprep.subr.bf16.mxu0 0
      %1825 = vmatpush1.bf16.xpose.msra.mxu0 0
      %1826 = vmatprep.subr.bf16.mxu0 0
      %1827 = vmatpush1.bf16.xpose.msra.mxu0 0
      %1828 = vmatprep.subr.bf16.mxu0 0
      %1829 = vmatpush1.bf16.xpose.msra.mxu0 0
      %1830 = vmatprep.subr.bf16.mxu0 0
      %1831 = vmatpush1.bf16.xpose.msra.mxu0 0
      %1832 = vmatprep.subr.bf16.mxu0 0
      %1833 = vmatpush1.bf16.xpose.msra.mxu0 0
      %1834 = vmatprep.subr.bf16.mxu0 0
      %1835 = vmatpush1.bf16.xpose.msra.mxu0 0
      %1836 = vmatprep.subr.bf16.mxu0 0
      %1837 = vmatpush1.bf16.xpose.msra.mxu0 0
      %1838 = vmatprep.subr.bf16.mxu0 0
      %1839 = vmatpush1.bf16.xpose.msra.mxu0 0
      %1840 = vmatprep.subr.bf16.mxu0 0
      %1841 = vmatpush1.bf16.xpose.msra.mxu0 0
      %1842 = vmatprep.subr.bf16.mxu0 0
      %1843 = vmatpush1.bf16.xpose.msra.mxu0 0
      %1844 = vmatprep.mubr.bf16.mxu0 0
      %1845 = vmatmul.mubr.bf16.gmra.mrb[0].mxu0 %v1801
      %v1846 = vpop.f32.mrb[0].mxu0
      %v1847 = vadd.f32 0.0, %v1846
      %v1848 = vpop.f32.mrb[0].mxu0
      %v1849 = vpop.f32.mrb[0].mxu0
      %v1850 = vadd.f32 0.0, %v1849
      %v1851 = vpop.f32.mrb[0].mxu0
      %1852 = vmatprep.mubr.bf16.mxu0 0
      %1853 = vmatmul.mubr.bf16.gmra.mrb[0].mxu0 %v1804
      %v1854 = vpop.f32.mrb[0].mxu0
      %v1855 = vadd.f32 0.0, %v1854
      %v1856 = vpop.f32.mrb[0].mxu0
      %v1857 = vpop.f32.mrb[0].mxu0
      %v1858 = vadd.f32 0.0, %v1857
      %v1859 = vpop.f32.mrb[0].mxu0
      %1860 = vdwg.mxu0
      %v1862 = vsel %vm1494, %v1298, 0
      %v1865 = vsel %vm1494, %v1299, 0
      %v1868 = vsel %vm1494, %v1394, 0
      %v1871 = vsel %vm1494, %v1395, 0
      %1873 = vmatprep.subr.bf16.mxu0 0
      %1874 = vmatpush1.bf16.xpose.msra.mxu0 %v1868
      %1875 = vmatprep.subr.bf16.mxu0 0
      %1876 = vmatpush1.bf16.xpose.msra.mxu0 %v1871
      %1877 = vmatprep.subr.bf16.mxu0 0
      %1878 = vmatpush1.bf16.xpose.msra.mxu0 0
      %1879 = vmatprep.subr.bf16.mxu0 0
      %1880 = vmatpush1.bf16.xpose.msra.mxu0 0
      %1881 = vmatprep.subr.bf16.mxu0 0
      %1882 = vmatpush1.bf16.xpose.msra.mxu0 0
      %1883 = vmatprep.subr.bf16.mxu0 0
      %1884 = vmatpush1.bf16.xpose.msra.mxu0 0
      %1885 = vmatprep.subr.bf16.mxu0 0
      %1886 = vmatpush1.bf16.xpose.msra.mxu0 0
      %1887 = vmatprep.subr.bf16.mxu0 0
      %1888 = vmatpush1.bf16.xpose.msra.mxu0 0
      %1889 = vmatprep.subr.bf16.mxu0 0
      %1890 = vmatpush1.bf16.xpose.msra.mxu0 0
      %1891 = vmatprep.subr.bf16.mxu0 0
      %1892 = vmatpush1.bf16.xpose.msra.mxu0 0
      %1893 = vmatprep.subr.bf16.mxu0 0
      %1894 = vmatpush1.bf16.xpose.msra.mxu0 0
      %1895 = vmatprep.subr.bf16.mxu0 0
      %1896 = vmatpush1.bf16.xpose.msra.mxu0 0
      %1897 = vmatprep.subr.bf16.mxu0 0
      %1898 = vmatpush1.bf16.xpose.msra.mxu0 0
      %1899 = vmatprep.subr.bf16.mxu0 0
      %1900 = vmatpush1.bf16.xpose.msra.mxu0 0
      %1901 = vmatprep.subr.bf16.mxu0 0
      %1902 = vmatpush1.bf16.xpose.msra.mxu0 0
      %1903 = vmatprep.subr.bf16.mxu0 0
      %1904 = vmatpush1.bf16.xpose.msra.mxu0 0
      %1905 = vmatprep.mubr.bf16.mxu0 0
      %1906 = vmatmul.mubr.bf16.gmra.mrb[0].mxu0 %v1862
      %v1907 = vpop.f32.mrb[0].mxu0
      %v1908 = vadd.f32 0.0, %v1907
      %v1909 = vpop.f32.mrb[0].mxu0
      %v1910 = vpop.f32.mrb[0].mxu0
      %v1911 = vadd.f32 0.0, %v1910
      %v1912 = vpop.f32.mrb[0].mxu0
      %1913 = vmatprep.mubr.bf16.mxu0 0
      %1914 = vmatmul.mubr.bf16.gmra.mrb[0].mxu0 %v1865
      %v1915 = vpop.f32.mrb[0].mxu0
      %v1916 = vadd.f32 0.0, %v1915
      %v1917 = vpop.f32.mrb[0].mxu0
      %v1918 = vpop.f32.mrb[0].mxu0
      %v1919 = vadd.f32 0.0, %v1918
      %v1920 = vpop.f32.mrb[0].mxu0
      %1921 = vdwg.mxu0
      %v1923 = vsel %vm1494, %v1300, 0
      %v1926 = vsel %vm1494, %v1301, 0
      %v1929 = vsel %vm1494, %v1396, 0
      %v1932 = vsel %vm1494, %v1397, 0
      %1934 = vmatprep.subr.bf16.mxu0 0
      %1935 = vmatpush1.bf16.xpose.msra.mxu0 %v1929
      %1936 = vmatprep.subr.bf16.mxu0 0
      %1937 = vmatpush1.bf16.xpose.msra.mxu0 %v1932
      %1938 = vmatprep.subr.bf16.mxu0 0
      %1939 = vmatpush1.bf16.xpose.msra.mxu0 0
      %1940 = vmatprep.subr.bf16.mxu0 0
      %1941 = vmatpush1.bf16.xpose.msra.mxu0 0
      %1942 = vmatprep.subr.bf16.mxu0 0
      %1943 = vmatpush1.bf16.xpose.msra.mxu0 0
      %1944 = vmatprep.subr.bf16.mxu0 0
      %1945 = vmatpush1.bf16.xpose.msra.mxu0 0
      %1946 = vmatprep.subr.bf16.mxu0 0
      %1947 = vmatpush1.bf16.xpose.msra.mxu0 0
      %1948 = vmatprep.subr.bf16.mxu0 0
      %1949 = vmatpush1.bf16.xpose.msra.mxu0 0
      %1950 = vmatprep.subr.bf16.mxu0 0
      %1951 = vmatpush1.bf16.xpose.msra.mxu0 0
      %1952 = vmatprep.subr.bf16.mxu0 0
      %1953 = vmatpush1.bf16.xpose.msra.mxu0 0
      %1954 = vmatprep.subr.bf16.mxu0 0
      %1955 = vmatpush1.bf16.xpose.msra.mxu0 0
      %1956 = vmatprep.subr.bf16.mxu0 0
      %1957 = vmatpush1.bf16.xpose.msra.mxu0 0
      %1958 = vmatprep.subr.bf16.mxu0 0
      %1959 = vmatpush1.bf16.xpose.msra.mxu0 0
      %1960 = vmatprep.subr.bf16.mxu0 0
      %1961 = vmatpush1.bf16.xpose.msra.mxu0 0
      %1962 = vmatprep.subr.bf16.mxu0 0
      %1963 = vmatpush1.bf16.xpose.msra.mxu0 0
      %1964 = vmatprep.subr.bf16.mxu0 0
      %1965 = vmatpush1.bf16.xpose.msra.mxu0 0
      %1966 = vmatprep.mubr.bf16.mxu0 0
      %1967 = vmatmul.mubr.bf16.gmra.mrb[0].mxu0 %v1923
      %v1968 = vpop.f32.mrb[0].mxu0
      %v1969 = vadd.f32 0.0, %v1968
      %v1970 = vpop.f32.mrb[0].mxu0
      %v1971 = vpop.f32.mrb[0].mxu0
      %v1972 = vadd.f32 0.0, %v1971
      %v1973 = vpop.f32.mrb[0].mxu0
      %1974 = vmatprep.mubr.bf16.mxu0 0
      %1975 = vmatmul.mubr.bf16.gmra.mrb[0].mxu0 %v1926
      %v1976 = vpop.f32.mrb[0].mxu0
      %v1977 = vadd.f32 0.0, %v1976
      %v1978 = vpop.f32.mrb[0].mxu0
      %v1979 = vpop.f32.mrb[0].mxu0
      %v1980 = vadd.f32 0.0, %v1979
      %v1981 = vpop.f32.mrb[0].mxu0
      %1982 = vdwg.mxu0
      %v1983 = vsel %vm1494, %v1542, -inf
      %1984 = vmax.xlane.f32.xlu0 %v1983
      %v1985 = vpop.xlane.xlu0 %1984
      %v1986 = vsel %vm1494, %v1545, -inf
      %1987 = vmax.xlane.f32.xlu0 %v1986
      %v1988 = vpop.xlane.xlu0 %1987
      %v1989 = vsel %vm1494, %v1550, -inf
      %1990 = vmax.xlane.f32.xlu0 %v1989
      %v1991 = vpop.xlane.xlu0 %1990
      %v1992 = vsel %vm1494, %v1553, -inf
      %1993 = vmax.xlane.f32.xlu0 %v1992
      %v1994 = vpop.xlane.xlu0 %1993
      %v1995 = vsel %vm1494, %v1603, -inf
      %1996 = vmax.xlane.f32.xlu0 %v1995
      %v1997 = vpop.xlane.xlu0 %1996
      %v1998 = vsel %vm1494, %v1606, -inf
      %1999 = vmax.xlane.f32.xlu0 %v1998
      %v2000 = vpop.xlane.xlu0 %1999
      %v2001 = vsel %vm1494, %v1611, -inf
      %2002 = vmax.xlane.f32.xlu0 %v2001
      %v2003 = vpop.xlane.xlu0 %2002
      %v2004 = vsel %vm1494, %v1614, -inf
      %2005 = vmax.xlane.f32.xlu0 %v2004
      %v2006 = vpop.xlane.xlu0 %2005
      %v2007 = vsel %vm1494, %v1664, -inf
      %2008 = vmax.xlane.f32.xlu0 %v2007
      %v2009 = vpop.xlane.xlu0 %2008
      %v2010 = vsel %vm1494, %v1667, -inf
      %2011 = vmax.xlane.f32.xlu0 %v2010
      %v2012 = vpop.xlane.xlu0 %2011
      %v2013 = vsel %vm1494, %v1672, -inf
      %2014 = vmax.xlane.f32.xlu0 %v2013
      %v2015 = vpop.xlane.xlu0 %2014
      %v2016 = vsel %vm1494, %v1675, -inf
      %2017 = vmax.xlane.f32.xlu0 %v2016
      %v2018 = vpop.xlane.xlu0 %2017
      %v2019 = vsel %vm1494, %v1725, -inf
      %2020 = vmax.xlane.f32.xlu0 %v2019
      %v2021 = vpop.xlane.xlu0 %2020
      %v2022 = vsel %vm1494, %v1728, -inf
      %2023 = vmax.xlane.f32.xlu0 %v2022
      %v2024 = vpop.xlane.xlu0 %2023
      %v2025 = vsel %vm1494, %v1733, -inf
      %2026 = vmax.xlane.f32.xlu0 %v2025
      %v2027 = vpop.xlane.xlu0 %2026
      %v2028 = vsel %vm1494, %v1736, -inf
      %2029 = vmax.xlane.f32.xlu0 %v2028
      %v2030 = vpop.xlane.xlu0 %2029
      %v2031 = vsel %vm1494, %v1786, -inf
      %2032 = vmax.xlane.f32.xlu0 %v2031
      %v2033 = vpop.xlane.xlu0 %2032
      %v2034 = vsel %vm1494, %v1789, -inf
      %2035 = vmax.xlane.f32.xlu0 %v2034
      %v2036 = vpop.xlane.xlu0 %2035
      %v2037 = vsel %vm1494, %v1794, -inf
      %2038 = vmax.xlane.f32.xlu0 %v2037
      %v2039 = vpop.xlane.xlu0 %2038
      %v2040 = vsel %vm1494, %v1797, -inf
      %2041 = vmax.xlane.f32.xlu0 %v2040
      %v2042 = vpop.xlane.xlu0 %2041
      %v2043 = vsel %vm1494, %v1847, -inf
      %2044 = vmax.xlane.f32.xlu0 %v2043
      %v2045 = vpop.xlane.xlu0 %2044
      %v2046 = vsel %vm1494, %v1850, -inf
      %2047 = vmax.xlane.f32.xlu0 %v2046
      %v2048 = vpop.xlane.xlu0 %2047
      %v2049 = vsel %vm1494, %v1855, -inf
      %2050 = vmax.xlane.f32.xlu0 %v2049
      %v2051 = vpop.xlane.xlu0 %2050
      %v2052 = vsel %vm1494, %v1858, -inf
      %2053 = vmax.xlane.f32.xlu0 %v2052
      %v2054 = vpop.xlane.xlu0 %2053
      %v2055 = vsel %vm1494, %v1908, -inf
      %2056 = vmax.xlane.f32.xlu0 %v2055
      %v2057 = vpop.xlane.xlu0 %2056
      %v2058 = vsel %vm1494, %v1911, -inf
      %2059 = vmax.xlane.f32.xlu0 %v2058
      %v2060 = vpop.xlane.xlu0 %2059
      %v2061 = vsel %vm1494, %v1916, -inf
      %2062 = vmax.xlane.f32.xlu0 %v2061
      %v2063 = vpop.xlane.xlu0 %2062
      %v2064 = vsel %vm1494, %v1919, -inf
      %2065 = vmax.xlane.f32.xlu0 %v2064
      %v2066 = vpop.xlane.xlu0 %2065
      %v2067 = vsel %vm1494, %v1969, -inf
      %2068 = vmax.xlane.f32.xlu0 %v2067
      %v2069 = vpop.xlane.xlu0 %2068
      %v2070 = vsel %vm1494, %v1972, -inf
      %2071 = vmax.xlane.f32.xlu0 %v2070
      %v2072 = vpop.xlane.xlu0 %2071
      %v2073 = vsel %vm1494, %v1977, -inf
      %2074 = vmax.xlane.f32.xlu0 %v2073
      %v2075 = vpop.xlane.xlu0 %2074
      %v2076 = vsel %vm1494, %v1980, -inf
      %2077 = vmax.xlane.f32.xlu0 %v2076
      %v2078 = vpop.xlane.xlu0 %2077
      %v2079 = vsub.f32 %v1542, %v1985
      %v2080 = vsub.f32 %v1545, %v1988
      %v2081 = vsub.f32 %v1550, %v1991
      %v2082 = vsub.f32 %v1553, %v1994
      %v2083 = vsub.f32 %v1603, %v1997
      %v2084 = vsub.f32 %v1606, %v2000
      %v2085 = vsub.f32 %v1611, %v2003
      %v2086 = vsub.f32 %v1614, %v2006
      %v2087 = vsub.f32 %v1664, %v2009
      %v2088 = vsub.f32 %v1667, %v2012
      %v2089 = vsub.f32 %v1672, %v2015
      %v2090 = vsub.f32 %v1675, %v2018
      %v2091 = vsub.f32 %v1725, %v2021
      %v2092 = vsub.f32 %v1728, %v2024
      %v2093 = vsub.f32 %v1733, %v2027
      %v2094 = vsub.f32 %v1736, %v2030
      %v2095 = vsub.f32 %v1786, %v2033
      %v2096 = vsub.f32 %v1789, %v2036
      %v2097 = vsub.f32 %v1794, %v2039
      %v2098 = vsub.f32 %v1797, %v2042
      %v2099 = vsub.f32 %v1847, %v2045
      %v2100 = vsub.f32 %v1850, %v2048
      %v2101 = vsub.f32 %v1855, %v2051
      %v2102 = vsub.f32 %v1858, %v2054
      %v2103 = vsub.f32 %v1908, %v2057
      %v2104 = vsub.f32 %v1911, %v2060
      %v2105 = vsub.f32 %v1916, %v2063
      %v2106 = vsub.f32 %v1919, %v2066
      %v2107 = vsub.f32 %v1969, %v2069
      %v2108 = vsub.f32 %v1972, %v2072
      %v2109 = vsub.f32 %v1977, %v2075
      %v2110 = vsub.f32 %v1980, %v2078
      %v2111 = vmul.f32 %v2079, 1.442695
      %v2112 = vpow.pop %v2111
      %v2113 = vmul.f32 %v2080, 1.442695
      %v2114 = vpow.pop %v2113
      %v2115 = vmul.f32 %v2081, 1.442695
      %v2116 = vpow.pop %v2115
      %v2117 = vmul.f32 %v2082, 1.442695
      %v2118 = vpow.pop %v2117
      %v2119 = vmul.f32 %v2083, 1.442695
      %v2120 = vpow.pop %v2119
      %v2121 = vmul.f32 %v2084, 1.442695
      %v2122 = vpow.pop %v2121
      %v2123 = vmul.f32 %v2085, 1.442695
      %v2124 = vpow.pop %v2123
      %v2125 = vmul.f32 %v2086, 1.442695
      %v2126 = vpow.pop %v2125
      %v2127 = vmul.f32 %v2087, 1.442695
      %v2128 = vpow.pop %v2127
      %v2129 = vmul.f32 %v2088, 1.442695
      %v2130 = vpow.pop %v2129
      %v2131 = vmul.f32 %v2089, 1.442695
      %v2132 = vpow.pop %v2131
      %v2133 = vmul.f32 %v2090, 1.442695
      %v2134 = vpow.pop %v2133
      %v2135 = vmul.f32 %v2091, 1.442695
      %v2136 = vpow.pop %v2135
      %v2137 = vmul.f32 %v2092, 1.442695
      %v2138 = vpow.pop %v2137
      %v2139 = vmul.f32 %v2093, 1.442695
      %v2140 = vpow.pop %v2139
      %v2141 = vmul.f32 %v2094, 1.442695
      %v2142 = vpow.pop %v2141
      %v2143 = vmul.f32 %v2095, 1.442695
      %v2144 = vpow.pop %v2143
      %v2145 = vmul.f32 %v2096, 1.442695
      %v2146 = vpow.pop %v2145
      %v2147 = vmul.f32 %v2097, 1.442695
      %v2148 = vpow.pop %v2147
      %v2149 = vmul.f32 %v2098, 1.442695
      %v2150 = vpow.pop %v2149
      %v2151 = vmul.f32 %v2099, 1.442695
      %v2152 = vpow.pop %v2151
      %v2153 = vmul.f32 %v2100, 1.442695
      %v2154 = vpow.pop %v2153
      %v2155 = vmul.f32 %v2101, 1.442695
      %v2156 = vpow.pop %v2155
      %v2157 = vmul.f32 %v2102, 1.442695
      %v2158 = vpow.pop %v2157
      %v2159 = vmul.f32 %v2103, 1.442695
      %v2160 = vpow.pop %v2159
      %v2161 = vmul.f32 %v2104, 1.442695
      %v2162 = vpow.pop %v2161
      %v2163 = vmul.f32 %v2105, 1.442695
      %v2164 = vpow.pop %v2163
      %v2165 = vmul.f32 %v2106, 1.442695
      %v2166 = vpow.pop %v2165
      %v2167 = vmul.f32 %v2107, 1.442695
      %v2168 = vpow.pop %v2167
      %v2169 = vmul.f32 %v2108, 1.442695
      %v2170 = vpow.pop %v2169
      %v2171 = vmul.f32 %v2109, 1.442695
      %v2172 = vpow.pop %v2171
      %v2173 = vmul.f32 %v2110, 1.442695
      %v2174 = vpow.pop %v2173
      %v2175 = vsel %vm1494, %v2112, 0.0
      %2176 = vadd.xlane.f32.xlu0 %v2175
      %v2177 = vpop.xlane.xlu0 %2176
      %v2178 = vsel %vm1494, %v2114, 0.0
      %2179 = vadd.xlane.f32.xlu0 %v2178
      %v2180 = vpop.xlane.xlu0 %2179
      %v2181 = vsel %vm1494, %v2116, 0.0
      %2182 = vadd.xlane.f32.xlu0 %v2181
      %v2183 = vpop.xlane.xlu0 %2182
      %v2184 = vsel %vm1494, %v2118, 0.0
      %2185 = vadd.xlane.f32.xlu0 %v2184
      %v2186 = vpop.xlane.xlu0 %2185
      %v2187 = vsel %vm1494, %v2120, 0.0
      %2188 = vadd.xlane.f32.xlu0 %v2187
      %v2189 = vpop.xlane.xlu0 %2188
      %v2190 = vsel %vm1494, %v2122, 0.0
      %2191 = vadd.xlane.f32.xlu0 %v2190
      %v2192 = vpop.xlane.xlu0 %2191
      %v2193 = vsel %vm1494, %v2124, 0.0
      %2194 = vadd.xlane.f32.xlu0 %v2193
      %v2195 = vpop.xlane.xlu0 %2194
      %v2196 = vsel %vm1494, %v2126, 0.0
      %2197 = vadd.xlane.f32.xlu0 %v2196
      %v2198 = vpop.xlane.xlu0 %2197
      %v2199 = vsel %vm1494, %v2128, 0.0
      %2200 = vadd.xlane.f32.xlu0 %v2199
      %v2201 = vpop.xlane.xlu0 %2200
      %v2202 = vsel %vm1494, %v2130, 0.0
      %2203 = vadd.xlane.f32.xlu0 %v2202
      %v2204 = vpop.xlane.xlu0 %2203
      %v2205 = vsel %vm1494, %v2132, 0.0
      %2206 = vadd.xlane.f32.xlu0 %v2205
      %v2207 = vpop.xlane.xlu0 %2206
      %v2208 = vsel %vm1494, %v2134, 0.0
      %2209 = vadd.xlane.f32.xlu0 %v2208
      %v2210 = vpop.xlane.xlu0 %2209
      %v2211 = vsel %vm1494, %v2136, 0.0
      %2212 = vadd.xlane.f32.xlu0 %v2211
      %v2213 = vpop.xlane.xlu0 %2212
      %v2214 = vsel %vm1494, %v2138, 0.0
      %2215 = vadd.xlane.f32.xlu0 %v2214
      %v2216 = vpop.xlane.xlu0 %2215
      %v2217 = vsel %vm1494, %v2140, 0.0
      %2218 = vadd.xlane.f32.xlu0 %v2217
      %v2219 = vpop.xlane.xlu0 %2218
      %v2220 = vsel %vm1494, %v2142, 0.0
      %2221 = vadd.xlane.f32.xlu0 %v2220
      %v2222 = vpop.xlane.xlu0 %2221
      %v2223 = vsel %vm1494, %v2144, 0.0
      %2224 = vadd.xlane.f32.xlu0 %v2223
      %v2225 = vpop.xlane.xlu0 %2224
      %v2226 = vsel %vm1494, %v2146, 0.0
      %2227 = vadd.xlane.f32.xlu0 %v2226
      %v2228 = vpop.xlane.xlu0 %2227
      %v2229 = vsel %vm1494, %v2148, 0.0
      %2230 = vadd.xlane.f32.xlu0 %v2229
      %v2231 = vpop.xlane.xlu0 %2230
      %v2232 = vsel %vm1494, %v2150, 0.0
      %2233 = vadd.xlane.f32.xlu0 %v2232
      %v2234 = vpop.xlane.xlu0 %2233
      %v2235 = vsel %vm1494, %v2152, 0.0
      %2236 = vadd.xlane.f32.xlu0 %v2235
      %v2237 = vpop.xlane.xlu0 %2236
      %v2238 = vsel %vm1494, %v2154, 0.0
      %2239 = vadd.xlane.f32.xlu0 %v2238
      %v2240 = vpop.xlane.xlu0 %2239
      %v2241 = vsel %vm1494, %v2156, 0.0
      %2242 = vadd.xlane.f32.xlu0 %v2241
      %v2243 = vpop.xlane.xlu0 %2242
      %v2244 = vsel %vm1494, %v2158, 0.0
      %2245 = vadd.xlane.f32.xlu0 %v2244
      %v2246 = vpop.xlane.xlu0 %2245
      %v2247 = vsel %vm1494, %v2160, 0.0
      %2248 = vadd.xlane.f32.xlu0 %v2247
      %v2249 = vpop.xlane.xlu0 %2248
      %v2250 = vsel %vm1494, %v2162, 0.0
      %2251 = vadd.xlane.f32.xlu0 %v2250
      %v2252 = vpop.xlane.xlu0 %2251
      %v2253 = vsel %vm1494, %v2164, 0.0
      %2254 = vadd.xlane.f32.xlu0 %v2253
      %v2255 = vpop.xlane.xlu0 %2254
      %v2256 = vsel %vm1494, %v2166, 0.0
      %2257 = vadd.xlane.f32.xlu0 %v2256
      %v2258 = vpop.xlane.xlu0 %2257
      %v2259 = vsel %vm1494, %v2168, 0.0
      %2260 = vadd.xlane.f32.xlu0 %v2259
      %v2261 = vpop.xlane.xlu0 %2260
      %v2262 = vsel %vm1494, %v2170, 0.0
      %2263 = vadd.xlane.f32.xlu0 %v2262
      %v2264 = vpop.xlane.xlu0 %2263
      %v2265 = vsel %vm1494, %v2172, 0.0
      %2266 = vadd.xlane.f32.xlu0 %v2265
      %v2267 = vpop.xlane.xlu0 %2266
      %v2268 = vsel %vm1494, %v2174, 0.0
      %2269 = vadd.xlane.f32.xlu0 %v2268
      %v2270 = vpop.xlane.xlu0 %2269
      %v2271 = vrcp.pop %v2177
      %v2272 = vrcp.pop %v2180
      %v2273 = vrcp.pop %v2183
      %v2274 = vrcp.pop %v2186
      %v2275 = vrcp.pop %v2189
      %v2276 = vrcp.pop %v2192
      %v2277 = vrcp.pop %v2195
      %v2278 = vrcp.pop %v2198
      %v2279 = vrcp.pop %v2201
      %v2280 = vrcp.pop %v2204
      %v2281 = vrcp.pop %v2207
      %v2282 = vrcp.pop %v2210
      %v2283 = vrcp.pop %v2213
      %v2284 = vrcp.pop %v2216
      %v2285 = vrcp.pop %v2219
      %v2286 = vrcp.pop %v2222
      %v2287 = vrcp.pop %v2225
      %v2288 = vrcp.pop %v2228
      %v2289 = vrcp.pop %v2231
      %v2290 = vrcp.pop %v2234
      %v2291 = vrcp.pop %v2237
      %v2292 = vrcp.pop %v2240
      %v2293 = vrcp.pop %v2243
      %v2294 = vrcp.pop %v2246
      %v2295 = vrcp.pop %v2249
      %v2296 = vrcp.pop %v2252
      %v2297 = vrcp.pop %v2255
      %v2298 = vrcp.pop %v2258
      %v2299 = vrcp.pop %v2261
      %v2300 = vrcp.pop %v2264
      %v2301 = vrcp.pop %v2267
      %v2302 = vrcp.pop %v2270
      %v2303 = vmul.f32 %v2112, %v2271
      %v2304 = vmul.f32 %v2114, %v2272
      %v2305 = vmul.f32 %v2116, %v2273
      %v2306 = vmul.f32 %v2118, %v2274
      %v2307 = vmul.f32 %v2120, %v2275
      %v2308 = vmul.f32 %v2122, %v2276
      %v2309 = vmul.f32 %v2124, %v2277
      %v2310 = vmul.f32 %v2126, %v2278
      %v2311 = vmul.f32 %v2128, %v2279
      %v2312 = vmul.f32 %v2130, %v2280
      %v2313 = vmul.f32 %v2132, %v2281
      %v2314 = vmul.f32 %v2134, %v2282
      %v2315 = vmul.f32 %v2136, %v2283
      %v2316 = vmul.f32 %v2138, %v2284
      %v2317 = vmul.f32 %v2140, %v2285
      %v2318 = vmul.f32 %v2142, %v2286
      %v2319 = vmul.f32 %v2144, %v2287
      %v2320 = vmul.f32 %v2146, %v2288
      %v2321 = vmul.f32 %v2148, %v2289
      %v2322 = vmul.f32 %v2150, %v2290
      %v2323 = vmul.f32 %v2152, %v2291
      %v2324 = vmul.f32 %v2154, %v2292
      %v2325 = vmul.f32 %v2156, %v2293
      %v2326 = vmul.f32 %v2158, %v2294
      %v2327 = vmul.f32 %v2160, %v2295
      %v2328 = vmul.f32 %v2162, %v2296
      %v2329 = vmul.f32 %v2164, %v2297
      %v2330 = vmul.f32 %v2166, %v2298
      %v2331 = vmul.f32 %v2168, %v2299
      %v2332 = vmul.f32 %v2170, %v2300
      %v2333 = vmul.f32 %v2172, %v2301
      %v2334 = vmul.f32 %v2174, %v2302
      %v2335 = vpack.c.bf16 %v2304, %v2303
      %v2336 = vpack.c.bf16 %v2306, %v2305
      %v2337 = vpack.c.bf16 %v2308, %v2307
      %v2338 = vpack.c.bf16 %v2310, %v2309
      %v2339 = vpack.c.bf16 %v2312, %v2311
      %v2340 = vpack.c.bf16 %v2314, %v2313
      %v2341 = vpack.c.bf16 %v2316, %v2315
      %v2342 = vpack.c.bf16 %v2318, %v2317
      %v2343 = vpack.c.bf16 %v2320, %v2319
      %v2344 = vpack.c.bf16 %v2322, %v2321
      %v2345 = vpack.c.bf16 %v2324, %v2323
      %v2346 = vpack.c.bf16 %v2326, %v2325
      %v2347 = vpack.c.bf16 %v2328, %v2327
      %v2348 = vpack.c.bf16 %v2330, %v2329
      %v2349 = vpack.c.bf16 %v2332, %v2331
      %v2350 = vpack.c.bf16 %v2334, %v2333
      %v2352 = vsel %vm1494, %v2335, 0
      %v2355 = vsel %vm1494, %v2336, 0
      %2357 = vmatprep.subr.bf16.mxu0 0
      %2358 = vmatpush1.bf16.msra.mxu0 %v1478
      %2359 = vmatprep.subr.bf16.mxu0 0
      %2360 = vmatpush1.bf16.msra.mxu0 %v1479
      %2361 = vmatprep.subr.bf16.mxu0 0
      %2362 = vmatpush1.bf16.msra.mxu0 0
      %2363 = vmatprep.subr.bf16.mxu0 0
      %2364 = vmatpush1.bf16.msra.mxu0 0
      %2365 = vmatprep.subr.bf16.mxu0 0
      %2366 = vmatpush1.bf16.msra.mxu0 0
      %2367 = vmatprep.subr.bf16.mxu0 0
      %2368 = vmatpush1.bf16.msra.mxu0 0
      %2369 = vmatprep.subr.bf16.mxu0 0
      %2370 = vmatpush1.bf16.msra.mxu0 0
      %2371 = vmatprep.subr.bf16.mxu0 0
      %2372 = vmatpush1.bf16.msra.mxu0 0
      %2373 = vmatprep.subr.bf16.mxu0 0
      %2374 = vmatpush1.bf16.msra.mxu0 0
      %2375 = vmatprep.subr.bf16.mxu0 0
      %2376 = vmatpush1.bf16.msra.mxu0 0
      %2377 = vmatprep.subr.bf16.mxu0 0
      %2378 = vmatpush1.bf16.msra.mxu0 0
      %2379 = vmatprep.subr.bf16.mxu0 0
      %2380 = vmatpush1.bf16.msra.mxu0 0
      %2381 = vmatprep.subr.bf16.mxu0 0
      %2382 = vmatpush1.bf16.msra.mxu0 0
      %2383 = vmatprep.subr.bf16.mxu0 0
      %2384 = vmatpush1.bf16.msra.mxu0 0
      %2385 = vmatprep.subr.bf16.mxu0 0
      %2386 = vmatpush1.bf16.msra.mxu0 0
      %2387 = vmatprep.subr.bf16.mxu0 0
      %2388 = vmatpush1.bf16.msra.mxu0 0
      %2389 = vmatprep.mubr.bf16.mxu0 0
      %2390 = vmatmul.mubr.bf16.gmra.mrb[0].mxu0 %v2352
      %v2391 = vpop.f32.mrb[0].mxu0
      %v2392 = vadd.f32 0.0, %v2391
      %v2393 = vpop.f32.mrb[0].mxu0
      %v2394 = vpop.f32.mrb[0].mxu0
      %v2395 = vadd.f32 0.0, %v2394
      %v2396 = vpop.f32.mrb[0].mxu0
      %2397 = vmatprep.mubr.bf16.mxu0 0
      %2398 = vmatmul.mubr.bf16.gmra.mrb[0].mxu0 %v2355
      %v2399 = vpop.f32.mrb[0].mxu0
      %v2400 = vadd.f32 0.0, %v2399
      %v2401 = vpop.f32.mrb[0].mxu0
      %v2402 = vpop.f32.mrb[0].mxu0
      %v2403 = vadd.f32 0.0, %v2402
      %v2404 = vpop.f32.mrb[0].mxu0
      %2405 = vdwg.mxu0
      %v2407 = vsel %vm1494, %v2337, 0
      %v2410 = vsel %vm1494, %v2338, 0
      %2412 = vmatprep.subr.bf16.mxu0 0
      %2413 = vmatpush1.bf16.msra.mxu0 %v1480
      %2414 = vmatprep.subr.bf16.mxu0 0
      %2415 = vmatpush1.bf16.msra.mxu0 %v1481
      %2416 = vmatprep.subr.bf16.mxu0 0
      %2417 = vmatpush1.bf16.msra.mxu0 0
      %2418 = vmatprep.subr.bf16.mxu0 0
      %2419 = vmatpush1.bf16.msra.mxu0 0
      %2420 = vmatprep.subr.bf16.mxu0 0
      %2421 = vmatpush1.bf16.msra.mxu0 0
      %2422 = vmatprep.subr.bf16.mxu0 0
      %2423 = vmatpush1.bf16.msra.mxu0 0
      %2424 = vmatprep.subr.bf16.mxu0 0
      %2425 = vmatpush1.bf16.msra.mxu0 0
      %2426 = vmatprep.subr.bf16.mxu0 0
      %2427 = vmatpush1.bf16.msra.mxu0 0
      %2428 = vmatprep.subr.bf16.mxu0 0
      %2429 = vmatpush1.bf16.msra.mxu0 0
      %2430 = vmatprep.subr.bf16.mxu0 0
      %2431 = vmatpush1.bf16.msra.mxu0 0
      %2432 = vmatprep.subr.bf16.mxu0 0
      %2433 = vmatpush1.bf16.msra.mxu0 0
      %2434 = vmatprep.subr.bf16.mxu0 0
      %2435 = vmatpush1.bf16.msra.mxu0 0
      %2436 = vmatprep.subr.bf16.mxu0 0
      %2437 = vmatpush1.bf16.msra.mxu0 0
      %2438 = vmatprep.subr.bf16.mxu0 0
      %2439 = vmatpush1.bf16.msra.mxu0 0
      %2440 = vmatprep.subr.bf16.mxu0 0
      %2441 = vmatpush1.bf16.msra.mxu0 0
      %2442 = vmatprep.subr.bf16.mxu0 0
      %2443 = vmatpush1.bf16.msra.mxu0 0
      %2444 = vmatprep.mubr.bf16.mxu0 0
      %2445 = vmatmul.mubr.bf16.gmra.mrb[0].mxu0 %v2407
      %v2446 = vpop.f32.mrb[0].mxu0
      %v2447 = vadd.f32 0.0, %v2446
      %v2448 = vpop.f32.mrb[0].mxu0
      %v2449 = vpop.f32.mrb[0].mxu0
      %v2450 = vadd.f32 0.0, %v2449
      %v2451 = vpop.f32.mrb[0].mxu0
      %2452 = vmatprep.mubr.bf16.mxu0 0
      %2453 = vmatmul.mubr.bf16.gmra.mrb[0].mxu0 %v2410
      %v2454 = vpop.f32.mrb[0].mxu0
      %v2455 = vadd.f32 0.0, %v2454
      %v2456 = vpop.f32.mrb[0].mxu0
      %v2457 = vpop.f32.mrb[0].mxu0
      %v2458 = vadd.f32 0.0, %v2457
      %v2459 = vpop.f32.mrb[0].mxu0
      %2460 = vdwg.mxu0
      %v2462 = vsel %vm1494, %v2339, 0
      %v2465 = vsel %vm1494, %v2340, 0
      %2467 = vmatprep.subr.bf16.mxu0 0
      %2468 = vmatpush1.bf16.msra.mxu0 %v1482
      %2469 = vmatprep.subr.bf16.mxu0 0
      %2470 = vmatpush1.bf16.msra.mxu0 %v1483
      %2471 = vmatprep.subr.bf16.mxu0 0
      %2472 = vmatpush1.bf16.msra.mxu0 0
      %2473 = vmatprep.subr.bf16.mxu0 0
      %2474 = vmatpush1.bf16.msra.mxu0 0
      %2475 = vmatprep.subr.bf16.mxu0 0
      %2476 = vmatpush1.bf16.msra.mxu0 0
      %2477 = vmatprep.subr.bf16.mxu0 0
      %2478 = vmatpush1.bf16.msra.mxu0 0
      %2479 = vmatprep.subr.bf16.mxu0 0
      %2480 = vmatpush1.bf16.msra.mxu0 0
      %2481 = vmatprep.subr.bf16.mxu0 0
      %2482 = vmatpush1.bf16.msra.mxu0 0
      %2483 = vmatprep.subr.bf16.mxu0 0
      %2484 = vmatpush1.bf16.msra.mxu0 0
      %2485 = vmatprep.subr.bf16.mxu0 0
      %2486 = vmatpush1.bf16.msra.mxu0 0
      %2487 = vmatprep.subr.bf16.mxu0 0
      %2488 = vmatpush1.bf16.msra.mxu0 0
      %2489 = vmatprep.subr.bf16.mxu0 0
      %2490 = vmatpush1.bf16.msra.mxu0 0
      %2491 = vmatprep.subr.bf16.mxu0 0
      %2492 = vmatpush1.bf16.msra.mxu0 0
      %2493 = vmatprep.subr.bf16.mxu0 0
      %2494 = vmatpush1.bf16.msra.mxu0 0
      %2495 = vmatprep.subr.bf16.mxu0 0
      %2496 = vmatpush1.bf16.msra.mxu0 0
      %2497 = vmatprep.subr.bf16.mxu0 0
      %2498 = vmatpush1.bf16.msra.mxu0 0
      %2499 = vmatprep.mubr.bf16.mxu0 0
      %2500 = vmatmul.mubr.bf16.gmra.mrb[0].mxu0 %v2462
      %v2501 = vpop.f32.mrb[0].mxu0
      %v2502 = vadd.f32 0.0, %v2501
      %v2503 = vpop.f32.mrb[0].mxu0
      %v2504 = vpop.f32.mrb[0].mxu0
      %v2505 = vadd.f32 0.0, %v2504
      %v2506 = vpop.f32.mrb[0].mxu0
      %2507 = vmatprep.mubr.bf16.mxu0 0
      %2508 = vmatmul.mubr.bf16.gmra.mrb[0].mxu0 %v2465
      %v2509 = vpop.f32.mrb[0].mxu0
      %v2510 = vadd.f32 0.0, %v2509
      %v2511 = vpop.f32.mrb[0].mxu0
      %v2512 = vpop.f32.mrb[0].mxu0
      %v2513 = vadd.f32 0.0, %v2512
      %v2514 = vpop.f32.mrb[0].mxu0
      %2515 = vdwg.mxu0
      %v2517 = vsel %vm1494, %v2341, 0
      %v2520 = vsel %vm1494, %v2342, 0
      %2522 = vmatprep.subr.bf16.mxu0 0
      %2523 = vmatpush1.bf16.msra.mxu0 %v1484
      %2524 = vmatprep.subr.bf16.mxu0 0
      %2525 = vmatpush1.bf16.msra.mxu0 %v1485
      %2526 = vmatprep.subr.bf16.mxu0 0
      %2527 = vmatpush1.bf16.msra.mxu0 0
      %2528 = vmatprep.subr.bf16.mxu0 0
      %2529 = vmatpush1.bf16.msra.mxu0 0
      %2530 = vmatprep.subr.bf16.mxu0 0
      %2531 = vmatpush1.bf16.msra.mxu0 0
      %2532 = vmatprep.subr.bf16.mxu0 0
      %2533 = vmatpush1.bf16.msra.mxu0 0
      %2534 = vmatprep.subr.bf16.mxu0 0
      %2535 = vmatpush1.bf16.msra.mxu0 0
      %2536 = vmatprep.subr.bf16.mxu0 0
      %2537 = vmatpush1.bf16.msra.mxu0 0
      %2538 = vmatprep.subr.bf16.mxu0 0
      %2539 = vmatpush1.bf16.msra.mxu0 0
      %2540 = vmatprep.subr.bf16.mxu0 0
      %2541 = vmatpush1.bf16.msra.mxu0 0
      %2542 = vmatprep.subr.bf16.mxu0 0
      %2543 = vmatpush1.bf16.msra.mxu0 0
      %2544 = vmatprep.subr.bf16.mxu0 0
      %2545 = vmatpush1.bf16.msra.mxu0 0
      %2546 = vmatprep.subr.bf16.mxu0 0
      %2547 = vmatpush1.bf16.msra.mxu0 0
      %2548 = vmatprep.subr.bf16.mxu0 0
      %2549 = vmatpush1.bf16.msra.mxu0 0
      %2550 = vmatprep.subr.bf16.mxu0 0
      %2551 = vmatpush1.bf16.msra.mxu0 0
      %2552 = vmatprep.subr.bf16.mxu0 0
      %2553 = vmatpush1.bf16.msra.mxu0 0
      %2554 = vmatprep.mubr.bf16.mxu0 0
      %2555 = vmatmul.mubr.bf16.gmra.mrb[0].mxu0 %v2517
      %v2556 = vpop.f32.mrb[0].mxu0
      %v2557 = vadd.f32 0.0, %v2556
      %v2558 = vpop.f32.mrb[0].mxu0
      %v2559 = vpop.f32.mrb[0].mxu0
      %v2560 = vadd.f32 0.0, %v2559
      %v2561 = vpop.f32.mrb[0].mxu0
      %2562 = vmatprep.mubr.bf16.mxu0 0
      %2563 = vmatmul.mubr.bf16.gmra.mrb[0].mxu0 %v2520
      %v2564 = vpop.f32.mrb[0].mxu0
      %v2565 = vadd.f32 0.0, %v2564
      %v2566 = vpop.f32.mrb[0].mxu0
      %v2567 = vpop.f32.mrb[0].mxu0
      %v2568 = vadd.f32 0.0, %v2567
      %v2569 = vpop.f32.mrb[0].mxu0
      %2570 = vdwg.mxu0
      %v2572 = vsel %vm1494, %v2343, 0
      %v2575 = vsel %vm1494, %v2344, 0
      %2577 = vmatprep.subr.bf16.mxu0 0
      %2578 = vmatpush1.bf16.msra.mxu0 %v1486
      %2579 = vmatprep.subr.bf16.mxu0 0
      %2580 = vmatpush1.bf16.msra.mxu0 %v1487
      %2581 = vmatprep.subr.bf16.mxu0 0
      %2582 = vmatpush1.bf16.msra.mxu0 0
      %2583 = vmatprep.subr.bf16.mxu0 0
      %2584 = vmatpush1.bf16.msra.mxu0 0
      %2585 = vmatprep.subr.bf16.mxu0 0
      %2586 = vmatpush1.bf16.msra.mxu0 0
      %2587 = vmatprep.subr.bf16.mxu0 0
      %2588 = vmatpush1.bf16.msra.mxu0 0
      %2589 = vmatprep.subr.bf16.mxu0 0
      %2590 = vmatpush1.bf16.msra.mxu0 0
      %2591 = vmatprep.subr.bf16.mxu0 0
      %2592 = vmatpush1.bf16.msra.mxu0 0
      %2593 = vmatprep.subr.bf16.mxu0 0
      %2594 = vmatpush1.bf16.msra.mxu0 0
      %2595 = vmatprep.subr.bf16.mxu0 0
      %2596 = vmatpush1.bf16.msra.mxu0 0
      %2597 = vmatprep.subr.bf16.mxu0 0
      %2598 = vmatpush1.bf16.msra.mxu0 0
      %2599 = vmatprep.subr.bf16.mxu0 0
      %2600 = vmatpush1.bf16.msra.mxu0 0
      %2601 = vmatprep.subr.bf16.mxu0 0
      %2602 = vmatpush1.bf16.msra.mxu0 0
      %2603 = vmatprep.subr.bf16.mxu0 0
      %2604 = vmatpush1.bf16.msra.mxu0 0
      %2605 = vmatprep.subr.bf16.mxu0 0
      %2606 = vmatpush1.bf16.msra.mxu0 0
      %2607 = vmatprep.subr.bf16.mxu0 0
      %2608 = vmatpush1.bf16.msra.mxu0 0
      %2609 = vmatprep.mubr.bf16.mxu0 0
      %2610 = vmatmul.mubr.bf16.gmra.mrb[0].mxu0 %v2572
      %v2611 = vpop.f32.mrb[0].mxu0
      %v2612 = vadd.f32 0.0, %v2611
      %v2613 = vpop.f32.mrb[0].mxu0
      %v2614 = vpop.f32.mrb[0].mxu0
      %v2615 = vadd.f32 0.0, %v2614
      %v2616 = vpop.f32.mrb[0].mxu0
      %2617 = vmatprep.mubr.bf16.mxu0 0
      %2618 = vmatmul.mubr.bf16.gmra.mrb[0].mxu0 %v2575
      %v2619 = vpop.f32.mrb[0].mxu0
      %v2620 = vadd.f32 0.0, %v2619
      %v2621 = vpop.f32.mrb[0].mxu0
      %v2622 = vpop.f32.mrb[0].mxu0
      %v2623 = vadd.f32 0.0, %v2622
      %v2624 = vpop.f32.mrb[0].mxu0
      %2625 = vdwg.mxu0
      %v2627 = vsel %vm1494, %v2345, 0
      %v2630 = vsel %vm1494, %v2346, 0
      %2632 = vmatprep.subr.bf16.mxu0 0
      %2633 = vmatpush1.bf16.msra.mxu0 %v1488
      %2634 = vmatprep.subr.bf16.mxu0 0
      %2635 = vmatpush1.bf16.msra.mxu0 %v1489
      %2636 = vmatprep.subr.bf16.mxu0 0
      %2637 = vmatpush1.bf16.msra.mxu0 0
      %2638 = vmatprep.subr.bf16.mxu0 0
      %2639 = vmatpush1.bf16.msra.mxu0 0
      %2640 = vmatprep.subr.bf16.mxu0 0
      %2641 = vmatpush1.bf16.msra.mxu0 0
      %2642 = vmatprep.subr.bf16.mxu0 0
      %2643 = vmatpush1.bf16.msra.mxu0 0
      %2644 = vmatprep.subr.bf16.mxu0 0
      %2645 = vmatpush1.bf16.msra.mxu0 0
      %2646 = vmatprep.subr.bf16.mxu0 0
      %2647 = vmatpush1.bf16.msra.mxu0 0
      %2648 = vmatprep.subr.bf16.mxu0 0
      %2649 = vmatpush1.bf16.msra.mxu0 0
      %2650 = vmatprep.subr.bf16.mxu0 0
      %2651 = vmatpush1.bf16.msra.mxu0 0
      %2652 = vmatprep.subr.bf16.mxu0 0
      %2653 = vmatpush1.bf16.msra.mxu0 0
      %2654 = vmatprep.subr.bf16.mxu0 0
      %2655 = vmatpush1.bf16.msra.mxu0 0
      %2656 = vmatprep.subr.bf16.mxu0 0
      %2657 = vmatpush1.bf16.msra.mxu0 0
      %2658 = vmatprep.subr.bf16.mxu0 0
      %2659 = vmatpush1.bf16.msra.mxu0 0
      %2660 = vmatprep.subr.bf16.mxu0 0
      %2661 = vmatpush1.bf16.msra.mxu0 0
      %2662 = vmatprep.subr.bf16.mxu0 0
      %2663 = vmatpush1.bf16.msra.mxu0 0
      %2664 = vmatprep.mubr.bf16.mxu0 0
      %2665 = vmatmul.mubr.bf16.gmra.mrb[0].mxu0 %v2627
      %v2666 = vpop.f32.mrb[0].mxu0
      %v2667 = vadd.f32 0.0, %v2666
      %v2668 = vpop.f32.mrb[0].mxu0
      %v2669 = vpop.f32.mrb[0].mxu0
      %v2670 = vadd.f32 0.0, %v2669
      %v2671 = vpop.f32.mrb[0].mxu0
      %2672 = vmatprep.mubr.bf16.mxu0 0
      %2673 = vmatmul.mubr.bf16.gmra.mrb[0].mxu0 %v2630
      %v2674 = vpop.f32.mrb[0].mxu0
      %v2675 = vadd.f32 0.0, %v2674
      %v2676 = vpop.f32.mrb[0].mxu0
      %v2677 = vpop.f32.mrb[0].mxu0
      %v2678 = vadd.f32 0.0, %v2677
      %v2679 = vpop.f32.mrb[0].mxu0
      %2680 = vdwg.mxu0
      %v2682 = vsel %vm1494, %v2347, 0
      %v2685 = vsel %vm1494, %v2348, 0
      %2687 = vmatprep.subr.bf16.mxu0 0
      %2688 = vmatpush1.bf16.msra.mxu0 %v1490
      %2689 = vmatprep.subr.bf16.mxu0 0
      %2690 = vmatpush1.bf16.msra.mxu0 %v1491
      %2691 = vmatprep.subr.bf16.mxu0 0
      %2692 = vmatpush1.bf16.msra.mxu0 0
      %2693 = vmatprep.subr.bf16.mxu0 0
      %2694 = vmatpush1.bf16.msra.mxu0 0
      %2695 = vmatprep.subr.bf16.mxu0 0
      %2696 = vmatpush1.bf16.msra.mxu0 0
      %2697 = vmatprep.subr.bf16.mxu0 0
      %2698 = vmatpush1.bf16.msra.mxu0 0
      %2699 = vmatprep.subr.bf16.mxu0 0
      %2700 = vmatpush1.bf16.msra.mxu0 0
      %2701 = vmatprep.subr.bf16.mxu0 0
      %2702 = vmatpush1.bf16.msra.mxu0 0
      %2703 = vmatprep.subr.bf16.mxu0 0
      %2704 = vmatpush1.bf16.msra.mxu0 0
      %2705 = vmatprep.subr.bf16.mxu0 0
      %2706 = vmatpush1.bf16.msra.mxu0 0
      %2707 = vmatprep.subr.bf16.mxu0 0
      %2708 = vmatpush1.bf16.msra.mxu0 0
      %2709 = vmatprep.subr.bf16.mxu0 0
      %2710 = vmatpush1.bf16.msra.mxu0 0
      %2711 = vmatprep.subr.bf16.mxu0 0
      %2712 = vmatpush1.bf16.msra.mxu0 0
      %2713 = vmatprep.subr.bf16.mxu0 0
      %2714 = vmatpush1.bf16.msra.mxu0 0
      %2715 = vmatprep.subr.bf16.mxu0 0
      %2716 = vmatpush1.bf16.msra.mxu0 0
      %2717 = vmatprep.subr.bf16.mxu0 0
      %2718 = vmatpush1.bf16.msra.mxu0 0
      %2719 = vmatprep.mubr.bf16.mxu0 0
      %2720 = vmatmul.mubr.bf16.gmra.mrb[0].mxu0 %v2682
      %v2721 = vpop.f32.mrb[0].mxu0
      %v2722 = vadd.f32 0.0, %v2721
      %v2723 = vpop.f32.mrb[0].mxu0
      %v2724 = vpop.f32.mrb[0].mxu0
      %v2725 = vadd.f32 0.0, %v2724
      %v2726 = vpop.f32.mrb[0].mxu0
      %2727 = vmatprep.mubr.bf16.mxu0 0
      %2728 = vmatmul.mubr.bf16.gmra.mrb[0].mxu0 %v2685
      %v2729 = vpop.f32.mrb[0].mxu0
      %v2730 = vadd.f32 0.0, %v2729
      %v2731 = vpop.f32.mrb[0].mxu0
      %v2732 = vpop.f32.mrb[0].mxu0
      %v2733 = vadd.f32 0.0, %v2732
      %v2734 = vpop.f32.mrb[0].mxu0
      %2735 = vdwg.mxu0
      %v2737 = vsel %vm1494, %v2349, 0
      %v2740 = vsel %vm1494, %v2350, 0
      %2742 = vmatprep.subr.bf16.mxu0 0
      %2743 = vmatpush1.bf16.msra.mxu0 %v1492
      %2744 = vmatprep.subr.bf16.mxu0 0
      %2745 = vmatpush1.bf16.msra.mxu0 %v1493
      %2746 = vmatprep.subr.bf16.mxu0 0
      %2747 = vmatpush1.bf16.msra.mxu0 0
      %2748 = vmatprep.subr.bf16.mxu0 0
      %2749 = vmatpush1.bf16.msra.mxu0 0
      %2750 = vmatprep.subr.bf16.mxu0 0
      %2751 = vmatpush1.bf16.msra.mxu0 0
      %2752 = vmatprep.subr.bf16.mxu0 0
      %2753 = vmatpush1.bf16.msra.mxu0 0
      %2754 = vmatprep.subr.bf16.mxu0 0
      %2755 = vmatpush1.bf16.msra.mxu0 0
      %2756 = vmatprep.subr.bf16.mxu0 0
      %2757 = vmatpush1.bf16.msra.mxu0 0
      %2758 = vmatprep.subr.bf16.mxu0 0
      %2759 = vmatpush1.bf16.msra.mxu0 0
      %2760 = vmatprep.subr.bf16.mxu0 0
      %2761 = vmatpush1.bf16.msra.mxu0 0
      %2762 = vmatprep.subr.bf16.mxu0 0
      %2763 = vmatpush1.bf16.msra.mxu0 0
      %2764 = vmatprep.subr.bf16.mxu0 0
      %2765 = vmatpush1.bf16.msra.mxu0 0
      %2766 = vmatprep.subr.bf16.mxu0 0
      %2767 = vmatpush1.bf16.msra.mxu0 0
      %2768 = vmatprep.subr.bf16.mxu0 0
      %2769 = vmatpush1.bf16.msra.mxu0 0
      %2770 = vmatprep.subr.bf16.mxu0 0
      %2771 = vmatpush1.bf16.msra.mxu0 0
      %2772 = vmatprep.subr.bf16.mxu0 0
      %2773 = vmatpush1.bf16.msra.mxu0 0
      %2774 = vmatprep.mubr.bf16.mxu0 0
      %2775 = vmatmul.mubr.bf16.gmra.mrb[0].mxu0 %v2737
      %v2776 = vpop.f32.mrb[0].mxu0
      %v2777 = vadd.f32 0.0, %v2776
      %v2778 = vpop.f32.mrb[0].mxu0
      %v2779 = vpop.f32.mrb[0].mxu0
      %v2780 = vadd.f32 0.0, %v2779
      %v2781 = vpop.f32.mrb[0].mxu0
      %2782 = vmatprep.mubr.bf16.mxu0 0
      %2783 = vmatmul.mubr.bf16.gmra.mrb[0].mxu0 %v2740
      %v2784 = vpop.f32.mrb[0].mxu0
      %v2785 = vadd.f32 0.0, %v2784
      %v2786 = vpop.f32.mrb[0].mxu0
      %v2787 = vpop.f32.mrb[0].mxu0
      %v2788 = vadd.f32 0.0, %v2787
      %v2789 = vpop.f32.mrb[0].mxu0
      %2790 = vdwg.mxu0
      %2799 = vrot.lane.b32.xlu0 %v2502, 32
      %v2800 = vpop.permute.xlu0 %2799
      %2801 = vrot.lane.b32.xlu0 %v2505, 32
      %v2802 = vpop.permute.xlu0 %2801
      %2803 = vrot.lane.b32.xlu0 %v2510, 32
      %v2804 = vpop.permute.xlu0 %2803
      %2805 = vrot.lane.b32.xlu0 %v2513, 32
      %v2806 = vpop.permute.xlu0 %2805
      %2807 = vrot.lane.b32.xlu0 %v2557, 32
      %v2808 = vpop.permute.xlu0 %2807
      %2809 = vrot.lane.b32.xlu0 %v2560, 32
      %v2810 = vpop.permute.xlu0 %2809
      %2811 = vrot.lane.b32.xlu0 %v2565, 32
      %v2812 = vpop.permute.xlu0 %2811
      %2813 = vrot.lane.b32.xlu0 %v2568, 32
      %v2814 = vpop.permute.xlu0 %2813
      %2831 = vrot.lane.b32.xlu0 %v2612, 64
      %v2832 = vpop.permute.xlu0 %2831
      %2833 = vrot.lane.b32.xlu0 %v2615, 64
      %v2834 = vpop.permute.xlu0 %2833
      %2835 = vrot.lane.b32.xlu0 %v2620, 64
      %v2836 = vpop.permute.xlu0 %2835
      %2837 = vrot.lane.b32.xlu0 %v2623, 64
      %v2838 = vpop.permute.xlu0 %2837
      %2839 = vrot.lane.b32.xlu0 %v2667, 64
      %v2840 = vpop.permute.xlu0 %2839
      %2841 = vrot.lane.b32.xlu0 %v2670, 64
      %v2842 = vpop.permute.xlu0 %2841
      %2843 = vrot.lane.b32.xlu0 %v2675, 64
      %v2844 = vpop.permute.xlu0 %2843
      %2845 = vrot.lane.b32.xlu0 %v2678, 64
      %v2846 = vpop.permute.xlu0 %2845
      %2863 = vrot.lane.b32.xlu0 %v2722, 96
      %v2864 = vpop.permute.xlu0 %2863
      %2865 = vrot.lane.b32.xlu0 %v2725, 96
      %v2866 = vpop.permute.xlu0 %2865
      %2867 = vrot.lane.b32.xlu0 %v2730, 96
      %v2868 = vpop.permute.xlu0 %2867
      %2869 = vrot.lane.b32.xlu0 %v2733, 96
      %v2870 = vpop.permute.xlu0 %2869
      %2871 = vrot.lane.b32.xlu0 %v2777, 96
      %v2872 = vpop.permute.xlu0 %2871
      %2873 = vrot.lane.b32.xlu0 %v2780, 96
      %v2874 = vpop.permute.xlu0 %2873
      %2875 = vrot.lane.b32.xlu0 %v2785, 96
      %v2876 = vpop.permute.xlu0 %2875
      %2877 = vrot.lane.b32.xlu0 %v2788, 96
      %v2878 = vpop.permute.xlu0 %2877
      %v2887 = vsel %vm1494, %v2392, %v2800
      %v2888 = vsel %vm1494, %v2395, %v2802
      %v2889 = vsel %vm1494, %v2400, %v2804
      %v2890 = vsel %vm1494, %v2403, %v2806
      %v2891 = vsel %vm1494, %v2447, %v2808
      %v2892 = vsel %vm1494, %v2450, %v2810
      %v2893 = vsel %vm1494, %v2455, %v2812
      %v2894 = vsel %vm1494, %v2458, %v2814
      %vm2895 = vcmask 523264
      %v2896 = vsel %vm2895, %v2887, %v2832
      %v2897 = vsel %vm2895, %v2888, %v2834
      %v2898 = vsel %vm2895, %v2889, %v2836
      %v2899 = vsel %vm2895, %v2890, %v2838
      %v2900 = vsel %vm2895, %v2891, %v2840
      %v2901 = vsel %vm2895, %v2892, %v2842
      %v2902 = vsel %vm2895, %v2893, %v2844
      %v2903 = vsel %vm2895, %v2894, %v2846
      %vm2904 = vcmask 785408
      %v2905 = vsel %vm2904, %v2896, %v2864
      %v2906 = vsel %vm2904, %v2897, %v2866
      %v2907 = vsel %vm2904, %v2898, %v2868
      %v2908 = vsel %vm2904, %v2899, %v2870
      %v2909 = vsel %vm2904, %v2900, %v2872
      %v2910 = vsel %vm2904, %v2901, %v2874
      %v2911 = vsel %vm2904, %v2902, %v2876
      %v2912 = vsel %vm2904, %v2903, %v2878
      %v2913 = vpack.c.bf16 %v2906, %v2905
      %v2914 = vpack.c.bf16 %v2908, %v2907
      %v2915 = vpack.c.bf16 %v2910, %v2909
      %v2916 = vpack.c.bf16 %v2912, %v2911
      %v2917 = vld [vmem:[%s710] sm:$0xf]
      %v2918 = vld [vmem:[%s710 + $0x4] sm:$0xf]
      %v2919 = vld [vmem:[%s710 + $0x8] sm:$0xf]
      %v2920 = vld [vmem:[%s710 + $0xc] sm:$0xf]
      %v2921 = vld [vmem:[%s710 + $0x10] sm:$0xf]
      %v2922 = vld [vmem:[%s710 + $0x14] sm:$0xf]
      %v2923 = vld [vmem:[%s710 + $0x18] sm:$0xf]
      %v2924 = vld [vmem:[%s710 + $0x1c] sm:$0xf]
      %v2925 = vld [vmem:[%s710 + $0x20] sm:$0xf]
      %v2926 = vld [vmem:[%s710 + $0x24] sm:$0xf]
      %v2927 = vld [vmem:[%s710 + $0x28] sm:$0xf]
      %v2928 = vld [vmem:[%s710 + $0x2c] sm:$0xf]
      %v2929 = vld [vmem:[%s710 + $0x30] sm:$0xf]
      %v2930 = vld [vmem:[%s710 + $0x34] sm:$0xf]
      %v2931 = vld [vmem:[%s710 + $0x38] sm:$0xf]
      %v2932 = vld [vmem:[%s710 + $0x3c] sm:$0xf]
      %v2949 = vunpack.c.l.b16 %v2917
      %v2950 = vunpack.c.l.b16 %v2918
      %v2951 = vunpack.c.l.b16 %v2919
      %v2952 = vunpack.c.l.b16 %v2920
      %v2953 = vunpack.c.l.b16 %v2921
      %v2954 = vunpack.c.l.b16 %v2922
      %v2955 = vunpack.c.l.b16 %v2923
      %v2956 = vunpack.c.l.b16 %v2924
      %v2957 = vunpack.c.l.b16 %v2925
      %v2958 = vunpack.c.l.b16 %v2926
      %v2959 = vunpack.c.l.b16 %v2927
      %v2960 = vunpack.c.l.b16 %v2928
      %v2961 = vunpack.c.l.b16 %v2929
      %v2962 = vunpack.c.l.b16 %v2930
      %v2963 = vunpack.c.l.b16 %v2931
      %v2964 = vunpack.c.l.b16 %v2932
      %v2965 = vpack.c.b16 %v2950, %v2949
      %v2966 = vpack.c.b16 %v2952, %v2951
      %v2967 = vpack.c.b16 %v2954, %v2953
      %v2968 = vpack.c.b16 %v2956, %v2955
      %v2969 = vpack.c.b16 %v2958, %v2957
      %v2970 = vpack.c.b16 %v2960, %v2959
      %v2971 = vpack.c.b16 %v2962, %v2961
      %v2972 = vpack.c.b16 %v2964, %v2963
      %2981 = vmatprep.subr.bf16.mxu0 0
      %2982 = vmatpush1.bf16.msra.mxu0 %v2965
      %2983 = vmatprep.subr.bf16.mxu0 0
      %2984 = vmatpush1.bf16.msra.mxu0 %v2966
      %2985 = vmatprep.subr.bf16.mxu0 0
      %2986 = vmatpush1.bf16.msra.mxu0 %v2967
      %2987 = vmatprep.subr.bf16.mxu0 0
      %2988 = vmatpush1.bf16.msra.mxu0 %v2968
      %2989 = vmatprep.subr.bf16.mxu0 0
      %2990 = vmatpush1.bf16.msra.mxu0 %v2969
      %2991 = vmatprep.subr.bf16.mxu0 0
      %2992 = vmatpush1.bf16.msra.mxu0 %v2970
      %2993 = vmatprep.subr.bf16.mxu0 0
      %2994 = vmatpush1.bf16.msra.mxu0 %v2971
      %2995 = vmatprep.subr.bf16.mxu0 0
      %2996 = vmatpush1.bf16.msra.mxu0 %v2972
      %2997 = vmatprep.subr.bf16.mxu0 0
      %2998 = vmatpush1.bf16.msra.mxu0 0
      %2999 = vmatprep.subr.bf16.mxu0 0
      %3000 = vmatpush1.bf16.msra.mxu0 0
      %3001 = vmatprep.subr.bf16.mxu0 0
      %3002 = vmatpush1.bf16.msra.mxu0 0
      %3003 = vmatprep.subr.bf16.mxu0 0
      %3004 = vmatpush1.bf16.msra.mxu0 0
      %3005 = vmatprep.subr.bf16.mxu0 0
      %3006 = vmatpush1.bf16.msra.mxu0 0
      %3007 = vmatprep.subr.bf16.mxu0 0
      %3008 = vmatpush1.bf16.msra.mxu0 0
      %3009 = vmatprep.subr.bf16.mxu0 0
      %3010 = vmatpush1.bf16.msra.mxu0 0
      %3011 = vmatprep.subr.bf16.mxu0 0
      %3012 = vmatpush1.bf16.msra.mxu0 0
      %3013 = vmatprep.mubr.bf16.mxu0 0
      %3014 = vmatmul.mubr.bf16.gmra.mrb[0].mxu0 %v2913
      %v3015 = vpop.f32.mrb[0].mxu0
      %v3016 = vadd.f32 0.0, %v3015
      %v3017 = vpop.f32.mrb[0].mxu0
      %v3018 = vpop.f32.mrb[0].mxu0
      %v3019 = vadd.f32 0.0, %v3018
      %v3020 = vpop.f32.mrb[0].mxu0
      %3021 = vmatprep.mubr.bf16.mxu0 0
      %3022 = vmatmul.mubr.bf16.gmra.mrb[0].mxu0 %v2914
      %v3023 = vpop.f32.mrb[0].mxu0
      %v3024 = vadd.f32 0.0, %v3023
      %v3025 = vpop.f32.mrb[0].mxu0
      %v3026 = vpop.f32.mrb[0].mxu0
      %v3027 = vadd.f32 0.0, %v3026
      %v3028 = vpop.f32.mrb[0].mxu0
      %3029 = vmatprep.mubr.bf16.mxu0 0
      %3030 = vmatmul.mubr.bf16.gmra.mrb[0].mxu0 %v2915
      %v3031 = vpop.f32.mrb[0].mxu0
      %v3032 = vadd.f32 0.0, %v3031
      %v3033 = vpop.f32.mrb[0].mxu0
      %v3034 = vpop.f32.mrb[0].mxu0
      %v3035 = vadd.f32 0.0, %v3034
      %v3036 = vpop.f32.mrb[0].mxu0
      %3037 = vmatprep.mubr.bf16.mxu0 0
      %3038 = vmatmul.mubr.bf16.gmra.mrb[0].mxu0 %v2916
      %v3039 = vpop.f32.mrb[0].mxu0
      %v3040 = vadd.f32 0.0, %v3039
      %v3041 = vpop.f32.mrb[0].mxu0
      %v3042 = vpop.f32.mrb[0].mxu0
      %v3043 = vadd.f32 0.0, %v3042
      %v3044 = vpop.f32.mrb[0].mxu0
      %3045 = vdwg.mxu0
      %v3046 = vadd.f32 %v760, %v3016
      %v3047 = vadd.f32 %v761, %v3019
      %v3048 = vadd.f32 %v762, %v3024
      %v3049 = vadd.f32 %v763, %v3027
      %v3050 = vadd.f32 %v764, %v3032
      %v3051 = vadd.f32 %v765, %v3035
      %v3052 = vadd.f32 %v766, %v3040
      %v3053 = vadd.f32 %v767, %v3043
      %v3054 = vld [vmem:[%s713] sm:$0x1]
      %v3056 = vlaneseq
      %v3057 = vshrl.u32 %v3056, 7
      %v3058 = vsub.s32 0, %v3057
      %v3059 = vrot.slane %v3054, %v3058
      %v3061 = vadd.f32 %v3046, %v3059
      %v3062 = vadd.f32 %v3047, %v3059
      %v3063 = vadd.f32 %v3048, %v3059
      %v3064 = vadd.f32 %v3049, %v3059
      %v3065 = vadd.f32 %v3050, %v3059
      %v3066 = vadd.f32 %v3051, %v3059
      %v3067 = vadd.f32 %v3052, %v3059
      %v3068 = vadd.f32 %v3053, %v3059
      %v3069 = vld [vmem:[%s716] sm:$0x1]
      %v3070 = vld [vmem:[%s719] sm:$0x1]
      %3071 = vadd.xlane.f32.xlu0 %v3061
      %v3072 = vpop.xlane.xlu0 %3071
      %3073 = vadd.xlane.f32.xlu0 %v3062
      %v3074 = vpop.xlane.xlu0 %3073
      %3075 = vadd.xlane.f32.xlu0 %v3063
      %v3076 = vpop.xlane.xlu0 %3075
      %3077 = vadd.xlane.f32.xlu0 %v3064
      %v3078 = vpop.xlane.xlu0 %3077
      %3079 = vadd.xlane.f32.xlu0 %v3065
      %v3080 = vpop.xlane.xlu0 %3079
      %3081 = vadd.xlane.f32.xlu0 %v3066
      %v3082 = vpop.xlane.xlu0 %3081
      %3083 = vadd.xlane.f32.xlu0 %v3067
      %v3084 = vpop.xlane.xlu0 %3083
      %3085 = vadd.xlane.f32.xlu0 %v3068
      %v3086 = vpop.xlane.xlu0 %3085
      %v3087 = vmul.f32 %v3072, %v786
      %v3088 = vmul.f32 %v3074, %v786
      %v3089 = vmul.f32 %v3076, %v786
      %v3090 = vmul.f32 %v3078, %v786
      %v3091 = vmul.f32 %v3080, %v786
      %v3092 = vmul.f32 %v3082, %v786
      %v3093 = vmul.f32 %v3084, %v786
      %v3094 = vmul.f32 %v3086, %v786
      %v3095 = vsub.f32 %v3061, %v3087
      %v3096 = vsub.f32 %v3062, %v3088
      %v3097 = vsub.f32 %v3063, %v3089
      %v3098 = vsub.f32 %v3064, %v3090
      %v3099 = vsub.f32 %v3065, %v3091
      %v3100 = vsub.f32 %v3066, %v3092
      %v3101 = vsub.f32 %v3067, %v3093
      %v3102 = vsub.f32 %v3068, %v3094
      %v3103 = vmul.f32 %v3095, %v3095
      %v3104 = vmul.f32 %v3096, %v3096
      %v3105 = vmul.f32 %v3097, %v3097
      %v3106 = vmul.f32 %v3098, %v3098
      %v3107 = vmul.f32 %v3099, %v3099
      %v3108 = vmul.f32 %v3100, %v3100
      %v3109 = vmul.f32 %v3101, %v3101
      %v3110 = vmul.f32 %v3102, %v3102
      %3111 = vadd.xlane.f32.xlu0 %v3103
      %v3112 = vpop.xlane.xlu0 %3111
      %3113 = vadd.xlane.f32.xlu0 %v3104
      %v3114 = vpop.xlane.xlu0 %3113
      %3115 = vadd.xlane.f32.xlu0 %v3105
      %v3116 = vpop.xlane.xlu0 %3115
      %3117 = vadd.xlane.f32.xlu0 %v3106
      %v3118 = vpop.xlane.xlu0 %3117
      %3119 = vadd.xlane.f32.xlu0 %v3107
      %v3120 = vpop.xlane.xlu0 %3119
      %3121 = vadd.xlane.f32.xlu0 %v3108
      %v3122 = vpop.xlane.xlu0 %3121
      %3123 = vadd.xlane.f32.xlu0 %v3109
      %v3124 = vpop.xlane.xlu0 %3123
      %3125 = vadd.xlane.f32.xlu0 %v3110
      %v3126 = vpop.xlane.xlu0 %3125
      %v3127 = vmul.f32 %v3112, %v786
      %v3128 = vmul.f32 %v3114, %v786
      %v3129 = vmul.f32 %v3116, %v786
      %v3130 = vmul.f32 %v3118, %v786
      %v3131 = vmul.f32 %v3120, %v786
      %v3132 = vmul.f32 %v3122, %v786
      %v3133 = vmul.f32 %v3124, %v786
      %v3134 = vmul.f32 %v3126, %v786
      %v3135 = vadd.f32 %v3127, 1e-06
      %v3136 = vadd.f32 %v3128, 1e-06
      %v3137 = vadd.f32 %v3129, 1e-06
      %v3138 = vadd.f32 %v3130, 1e-06
      %v3139 = vadd.f32 %v3131, 1e-06
      %v3140 = vadd.f32 %v3132, 1e-06
      %v3141 = vadd.f32 %v3133, 1e-06
      %v3142 = vadd.f32 %v3134, 1e-06
      %v3143 = vrsqrt.pop %v3135
      %v3144 = vrsqrt.pop %v3136
      %v3145 = vrsqrt.pop %v3137
      %v3146 = vrsqrt.pop %v3138
      %v3147 = vrsqrt.pop %v3139
      %v3148 = vrsqrt.pop %v3140
      %v3149 = vrsqrt.pop %v3141
      %v3150 = vrsqrt.pop %v3142
      %v3151 = vmul.f32 %v3095, %v3143
      %v3152 = vmul.f32 %v3096, %v3144
      %v3153 = vmul.f32 %v3097, %v3145
      %v3154 = vmul.f32 %v3098, %v3146
      %v3155 = vmul.f32 %v3099, %v3147
      %v3156 = vmul.f32 %v3100, %v3148
      %v3157 = vmul.f32 %v3101, %v3149
      %v3158 = vmul.f32 %v3102, %v3150
      %v3160 = vlaneseq
      %v3161 = vshrl.u32 %v3160, 7
      %v3162 = vsub.s32 0, %v3161
      %v3163 = vrot.slane %v3069, %v3162
      %v3165 = vmul.f32 %v3151, %v3163
      %v3166 = vmul.f32 %v3152, %v3163
      %v3167 = vmul.f32 %v3153, %v3163
      %v3168 = vmul.f32 %v3154, %v3163
      %v3169 = vmul.f32 %v3155, %v3163
      %v3170 = vmul.f32 %v3156, %v3163
      %v3171 = vmul.f32 %v3157, %v3163
      %v3172 = vmul.f32 %v3158, %v3163
      %v3174 = vlaneseq
      %v3175 = vshrl.u32 %v3174, 7
      %v3176 = vsub.s32 0, %v3175
      %v3177 = vrot.slane %v3070, %v3176
      %v3179 = vadd.f32 %v3165, %v3177
      %v3180 = vadd.f32 %v3166, %v3177
      %v3181 = vadd.f32 %v3167, %v3177
      %v3182 = vadd.f32 %v3168, %v3177
      %v3183 = vadd.f32 %v3169, %v3177
      %v3184 = vadd.f32 %v3170, %v3177
      %v3185 = vadd.f32 %v3171, %v3177
      %v3186 = vadd.f32 %v3172, %v3177
      %v3187 = vpack.c.bf16 %v3180, %v3179
      %v3188 = vpack.c.bf16 %v3182, %v3181
      %v3189 = vpack.c.bf16 %v3184, %v3183
      %v3190 = vpack.c.bf16 %v3186, %v3185
      %v3191 = vld [vmem:[%s724] sm:$0xff]
      %v3192 = vld [vmem:[%s724 + $0x8] sm:$0xff]
      %v3193 = vld [vmem:[%s724 + $0x10] sm:$0xff]
      %v3194 = vld [vmem:[%s724 + $0x18] sm:$0xff]
      %v3195 = vld [vmem:[%s724 + $0x20] sm:$0xff]
      %v3196 = vld [vmem:[%s724 + $0x28] sm:$0xff]
      %v3197 = vld [vmem:[%s724 + $0x30] sm:$0xff]
      %v3198 = vld [vmem:[%s724 + $0x38] sm:$0xff]
      %v3199 = vld [vmem:[%s724 + $0x40] sm:$0xff]
      %v3200 = vld [vmem:[%s724 + $0x48] sm:$0xff]
      %v3201 = vld [vmem:[%s724 + $0x50] sm:$0xff]
      %v3202 = vld [vmem:[%s724 + $0x58] sm:$0xff]
      %v3203 = vld [vmem:[%s724 + $0x60] sm:$0xff]
      %v3204 = vld [vmem:[%s724 + $0x68] sm:$0xff]
      %v3205 = vld [vmem:[%s724 + $0x70] sm:$0xff]
      %v3206 = vld [vmem:[%s724 + $0x78] sm:$0xff]
      %v3207 = vld [vmem:[%s728] sm:$0x3]
      %v3209 = vlaneseq
      %v3210 = vshrl.u32 %v3209, 7
      %v3211 = vsub.s32 0, %v3210
      %v3212 = vrot.slane %v3207, %v3211
      %v3213 = vlaneseq
      %v3214 = vshrl.u32 %v3213, 7
      %v3215 = vsub.s32 1, %v3214
      %v3216 = vrot.slane %v3207, %v3215
      %v3235 = vunpack.c.l.b16 %v3191
      %v3236 = vunpack.c.h.b16 %v3191
      %v3237 = vunpack.c.l.b16 %v3192
      %v3238 = vunpack.c.h.b16 %v3192
      %v3239 = vunpack.c.l.b16 %v3193
      %v3240 = vunpack.c.h.b16 %v3193
      %v3241 = vunpack.c.l.b16 %v3194
      %v3242 = vunpack.c.h.b16 %v3194
      %v3243 = vunpack.c.l.b16 %v3195
      %v3244 = vunpack.c.h.b16 %v3195
      %v3245 = vunpack.c.l.b16 %v3196
      %v3246 = vunpack.c.h.b16 %v3196
      %v3247 = vunpack.c.l.b16 %v3197
      %v3248 = vunpack.c.h.b16 %v3197
      %v3249 = vunpack.c.l.b16 %v3198
      %v3250 = vunpack.c.h.b16 %v3198
      %v3251 = vunpack.c.l.b16 %v3199
      %v3252 = vunpack.c.h.b16 %v3199
      %v3253 = vunpack.c.l.b16 %v3200
      %v3254 = vunpack.c.h.b16 %v3200
      %v3255 = vunpack.c.l.b16 %v3201
      %v3256 = vunpack.c.h.b16 %v3201
      %v3257 = vunpack.c.l.b16 %v3202
      %v3258 = vunpack.c.h.b16 %v3202
      %v3259 = vunpack.c.l.b16 %v3203
      %v3260 = vunpack.c.h.b16 %v3203
      %v3261 = vunpack.c.l.b16 %v3204
      %v3262 = vunpack.c.h.b16 %v3204
      %v3263 = vunpack.c.l.b16 %v3205
      %v3264 = vunpack.c.h.b16 %v3205
      %v3265 = vunpack.c.l.b16 %v3206
      %v3266 = vunpack.c.h.b16 %v3206
      %v3267 = vpack.c.b16 %v3237, %v3235
      %v3268 = vpack.c.b16 %v3238, %v3236
      %v3269 = vpack.c.b16 %v3241, %v3239
      %v3270 = vpack.c.b16 %v3242, %v3240
      %v3271 = vpack.c.b16 %v3245, %v3243
      %v3272 = vpack.c.b16 %v3246, %v3244
      %v3273 = vpack.c.b16 %v3249, %v3247
      %v3274 = vpack.c.b16 %v3250, %v3248
      %v3275 = vpack.c.b16 %v3253, %v3251
      %v3276 = vpack.c.b16 %v3254, %v3252
      %v3277 = vpack.c.b16 %v3257, %v3255
      %v3278 = vpack.c.b16 %v3258, %v3256
      %v3279 = vpack.c.b16 %v3261, %v3259
      %v3280 = vpack.c.b16 %v3262, %v3260
      %v3281 = vpack.c.b16 %v3265, %v3263
      %v3282 = vpack.c.b16 %v3266, %v3264
      %3299 = vmatprep.subr.bf16.mxu0 %v3268
      %3300 = vmatpush1.bf16.msra.mxu0 %v3267
      %3301 = vmatprep.subr.bf16.mxu0 %v3270
      %3302 = vmatpush1.bf16.msra.mxu0 %v3269
      %3303 = vmatprep.subr.bf16.mxu0 %v3272
      %3304 = vmatpush1.bf16.msra.mxu0 %v3271
      %3305 = vmatprep.subr.bf16.mxu0 %v3274
      %3306 = vmatpush1.bf16.msra.mxu0 %v3273
      %3307 = vmatprep.subr.bf16.mxu0 %v3276
      %3308 = vmatpush1.bf16.msra.mxu0 %v3275
      %3309 = vmatprep.subr.bf16.mxu0 %v3278
      %3310 = vmatpush1.bf16.msra.mxu0 %v3277
      %3311 = vmatprep.subr.bf16.mxu0 %v3280
      %3312 = vmatpush1.bf16.msra.mxu0 %v3279
      %3313 = vmatprep.subr.bf16.mxu0 %v3282
      %3314 = vmatpush1.bf16.msra.mxu0 %v3281
      %3315 = vmatprep.subr.bf16.mxu0 0
      %3316 = vmatpush1.bf16.msra.mxu0 0
      %3317 = vmatprep.subr.bf16.mxu0 0
      %3318 = vmatpush1.bf16.msra.mxu0 0
      %3319 = vmatprep.subr.bf16.mxu0 0
      %3320 = vmatpush1.bf16.msra.mxu0 0
      %3321 = vmatprep.subr.bf16.mxu0 0
      %3322 = vmatpush1.bf16.msra.mxu0 0
      %3323 = vmatprep.subr.bf16.mxu0 0
      %3324 = vmatpush1.bf16.msra.mxu0 0
      %3325 = vmatprep.subr.bf16.mxu0 0
      %3326 = vmatpush1.bf16.msra.mxu0 0
      %3327 = vmatprep.subr.bf16.mxu0 0
      %3328 = vmatpush1.bf16.msra.mxu0 0
      %3329 = vmatprep.subr.bf16.mxu0 0
      %3330 = vmatpush1.bf16.msra.mxu0 0
      %3331 = vmatprep.mubr.bf16.mxu0 0
      %3332 = vmatmul.mubr.bf16.gmra.mrb[0].mxu0 %v3187
      %v3333 = vpop.f32.mrb[0].mxu0
      %v3334 = vadd.f32 %v3212, %v3333
      %v3335 = vpop.f32.mrb[0].mxu0
      %v3336 = vadd.f32 %v3216, %v3335
      %v3337 = vpop.f32.mrb[0].mxu0
      %v3338 = vadd.f32 %v3212, %v3337
      %v3339 = vpop.f32.mrb[0].mxu0
      %v3340 = vadd.f32 %v3216, %v3339
      %3341 = vmatprep.mubr.bf16.mxu0 0
      %3342 = vmatmul.mubr.bf16.gmra.mrb[0].mxu0 %v3188
      %v3343 = vpop.f32.mrb[0].mxu0
      %v3344 = vadd.f32 %v3212, %v3343
      %v3345 = vpop.f32.mrb[0].mxu0
      %v3346 = vadd.f32 %v3216, %v3345
      %v3347 = vpop.f32.mrb[0].mxu0
      %v3348 = vadd.f32 %v3212, %v3347
      %v3349 = vpop.f32.mrb[0].mxu0
      %v3350 = vadd.f32 %v3216, %v3349
      %3351 = vmatprep.mubr.bf16.mxu0 0
      %3352 = vmatmul.mubr.bf16.gmra.mrb[0].mxu0 %v3189
      %v3353 = vpop.f32.mrb[0].mxu0
      %v3354 = vadd.f32 %v3212, %v3353
      %v3355 = vpop.f32.mrb[0].mxu0
      %v3356 = vadd.f32 %v3216, %v3355
      %v3357 = vpop.f32.mrb[0].mxu0
      %v3358 = vadd.f32 %v3212, %v3357
      %v3359 = vpop.f32.mrb[0].mxu0
      %v3360 = vadd.f32 %v3216, %v3359
      %3361 = vmatprep.mubr.bf16.mxu0 0
      %3362 = vmatmul.mubr.bf16.gmra.mrb[0].mxu0 %v3190
      %v3363 = vpop.f32.mrb[0].mxu0
      %v3364 = vadd.f32 %v3212, %v3363
      %v3365 = vpop.f32.mrb[0].mxu0
      %v3366 = vadd.f32 %v3216, %v3365
      %v3367 = vpop.f32.mrb[0].mxu0
      %v3368 = vadd.f32 %v3212, %v3367
      %v3369 = vpop.f32.mrb[0].mxu0
      %v3370 = vadd.f32 %v3216, %v3369
      %3371 = vdwg.mxu0
      %v3372 = vmul.f32 %v3334, %v3334
      %v3373 = vmul.f32 %v3336, %v3336
      %v3374 = vmul.f32 %v3338, %v3338
      %v3375 = vmul.f32 %v3340, %v3340
      %v3376 = vmul.f32 %v3344, %v3344
      %v3377 = vmul.f32 %v3346, %v3346
      %v3378 = vmul.f32 %v3348, %v3348
      %v3379 = vmul.f32 %v3350, %v3350
      %v3380 = vmul.f32 %v3354, %v3354
      %v3381 = vmul.f32 %v3356, %v3356
      %v3382 = vmul.f32 %v3358, %v3358
      %v3383 = vmul.f32 %v3360, %v3360
      %v3384 = vmul.f32 %v3364, %v3364
      %v3385 = vmul.f32 %v3366, %v3366
      %v3386 = vmul.f32 %v3368, %v3368
      %v3387 = vmul.f32 %v3370, %v3370
      %v3388 = vmul.f32 %v3334, %v3372
      %v3389 = vmul.f32 %v3336, %v3373
      %v3390 = vmul.f32 %v3338, %v3374
      %v3391 = vmul.f32 %v3340, %v3375
      %v3392 = vmul.f32 %v3344, %v3376
      %v3393 = vmul.f32 %v3346, %v3377
      %v3394 = vmul.f32 %v3348, %v3378
      %v3395 = vmul.f32 %v3350, %v3379
      %v3396 = vmul.f32 %v3354, %v3380
      %v3397 = vmul.f32 %v3356, %v3381
      %v3398 = vmul.f32 %v3358, %v3382
      %v3399 = vmul.f32 %v3360, %v3383
      %v3400 = vmul.f32 %v3364, %v3384
      %v3401 = vmul.f32 %v3366, %v3385
      %v3402 = vmul.f32 %v3368, %v3386
      %v3403 = vmul.f32 %v3370, %v3387
      %v3404 = vmul.f32 %v3388, 0.044715
      %v3405 = vmul.f32 %v3389, 0.044715
      %v3406 = vmul.f32 %v3390, 0.044715
      %v3407 = vmul.f32 %v3391, 0.044715
      %v3408 = vmul.f32 %v3392, 0.044715
      %v3409 = vmul.f32 %v3393, 0.044715
      %v3410 = vmul.f32 %v3394, 0.044715
      %v3411 = vmul.f32 %v3395, 0.044715
      %v3412 = vmul.f32 %v3396, 0.044715
      %v3413 = vmul.f32 %v3397, 0.044715
      %v3414 = vmul.f32 %v3398, 0.044715
      %v3415 = vmul.f32 %v3399, 0.044715
      %v3416 = vmul.f32 %v3400, 0.044715
      %v3417 = vmul.f32 %v3401, 0.044715
      %v3418 = vmul.f32 %v3402, 0.044715
      %v3419 = vmul.f32 %v3403, 0.044715
      %v3420 = vadd.f32 %v3334, %v3404
      %v3421 = vadd.f32 %v3336, %v3405
      %v3422 = vadd.f32 %v3338, %v3406
      %v3423 = vadd.f32 %v3340, %v3407
      %v3424 = vadd.f32 %v3344, %v3408
      %v3425 = vadd.f32 %v3346, %v3409
      %v3426 = vadd.f32 %v3348, %v3410
      %v3427 = vadd.f32 %v3350, %v3411
      %v3428 = vadd.f32 %v3354, %v3412
      %v3429 = vadd.f32 %v3356, %v3413
      %v3430 = vadd.f32 %v3358, %v3414
      %v3431 = vadd.f32 %v3360, %v3415
      %v3432 = vadd.f32 %v3364, %v3416
      %v3433 = vadd.f32 %v3366, %v3417
      %v3434 = vadd.f32 %v3368, %v3418
      %v3435 = vadd.f32 %v3370, %v3419
      %v3436 = vmul.f32 %v3420, 0.7978846
      %v3437 = vmul.f32 %v3421, 0.7978846
      %v3438 = vmul.f32 %v3422, 0.7978846
      %v3439 = vmul.f32 %v3423, 0.7978846
      %v3440 = vmul.f32 %v3424, 0.7978846
      %v3441 = vmul.f32 %v3425, 0.7978846
      %v3442 = vmul.f32 %v3426, 0.7978846
      %v3443 = vmul.f32 %v3427, 0.7978846
      %v3444 = vmul.f32 %v3428, 0.7978846
      %v3445 = vmul.f32 %v3429, 0.7978846
      %v3446 = vmul.f32 %v3430, 0.7978846
      %v3447 = vmul.f32 %v3431, 0.7978846
      %v3448 = vmul.f32 %v3432, 0.7978846
      %v3449 = vmul.f32 %v3433, 0.7978846
      %v3450 = vmul.f32 %v3434, 0.7978846
      %v3451 = vmul.f32 %v3435, 0.7978846
      %v3452 = vtanh.pop %v3436
      %v3453 = vtanh.pop %v3437
      %v3454 = vtanh.pop %v3438
      %v3455 = vtanh.pop %v3439
      %v3456 = vtanh.pop %v3440
      %v3457 = vtanh.pop %v3441
      %v3458 = vtanh.pop %v3442
      %v3459 = vtanh.pop %v3443
      %v3460 = vtanh.pop %v3444
      %v3461 = vtanh.pop %v3445
      %v3462 = vtanh.pop %v3446
      %v3463 = vtanh.pop %v3447
      %v3464 = vtanh.pop %v3448
      %v3465 = vtanh.pop %v3449
      %v3466 = vtanh.pop %v3450
      %v3467 = vtanh.pop %v3451
      %v3468 = vadd.f32 %v3452, 1.0
      %v3469 = vadd.f32 %v3453, 1.0
      %v3470 = vadd.f32 %v3454, 1.0
      %v3471 = vadd.f32 %v3455, 1.0
      %v3472 = vadd.f32 %v3456, 1.0
      %v3473 = vadd.f32 %v3457, 1.0
      %v3474 = vadd.f32 %v3458, 1.0
      %v3475 = vadd.f32 %v3459, 1.0
      %v3476 = vadd.f32 %v3460, 1.0
      %v3477 = vadd.f32 %v3461, 1.0
      %v3478 = vadd.f32 %v3462, 1.0
      %v3479 = vadd.f32 %v3463, 1.0
      %v3480 = vadd.f32 %v3464, 1.0
      %v3481 = vadd.f32 %v3465, 1.0
      %v3482 = vadd.f32 %v3466, 1.0
      %v3483 = vadd.f32 %v3467, 1.0
      %v3484 = vmul.f32 %v3468, 0.5
      %v3485 = vmul.f32 %v3469, 0.5
      %v3486 = vmul.f32 %v3470, 0.5
      %v3487 = vmul.f32 %v3471, 0.5
      %v3488 = vmul.f32 %v3472, 0.5
      %v3489 = vmul.f32 %v3473, 0.5
      %v3490 = vmul.f32 %v3474, 0.5
      %v3491 = vmul.f32 %v3475, 0.5
      %v3492 = vmul.f32 %v3476, 0.5
      %v3493 = vmul.f32 %v3477, 0.5
      %v3494 = vmul.f32 %v3478, 0.5
      %v3495 = vmul.f32 %v3479, 0.5
      %v3496 = vmul.f32 %v3480, 0.5
      %v3497 = vmul.f32 %v3481, 0.5
      %v3498 = vmul.f32 %v3482, 0.5
      %v3499 = vmul.f32 %v3483, 0.5
      %v3500 = vmul.f32 %v3334, %v3484
      %v3501 = vmul.f32 %v3336, %v3485
      %v3502 = vmul.f32 %v3338, %v3486
      %v3503 = vmul.f32 %v3340, %v3487
      %v3504 = vmul.f32 %v3344, %v3488
      %v3505 = vmul.f32 %v3346, %v3489
      %v3506 = vmul.f32 %v3348, %v3490
      %v3507 = vmul.f32 %v3350, %v3491
      %v3508 = vmul.f32 %v3354, %v3492
      %v3509 = vmul.f32 %v3356, %v3493
      %v3510 = vmul.f32 %v3358, %v3494
      %v3511 = vmul.f32 %v3360, %v3495
      %v3512 = vmul.f32 %v3364, %v3496
      %v3513 = vmul.f32 %v3366, %v3497
      %v3514 = vmul.f32 %v3368, %v3498
      %v3515 = vmul.f32 %v3370, %v3499
      %v3516 = vpack.c.bf16 %v3502, %v3500
      %v3517 = vpack.c.bf16 %v3503, %v3501
      %v3518 = vpack.c.bf16 %v3506, %v3504
      %v3519 = vpack.c.bf16 %v3507, %v3505
      %v3520 = vpack.c.bf16 %v3510, %v3508
      %v3521 = vpack.c.bf16 %v3511, %v3509
      %v3522 = vpack.c.bf16 %v3514, %v3512
      %v3523 = vpack.c.bf16 %v3515, %v3513
      %v3524 = vld [vmem:[%s733] sm:$0xf]
      %v3525 = vld [vmem:[%s733 + $0x4] sm:$0xf]
      %v3526 = vld [vmem:[%s733 + $0x8] sm:$0xf]
      %v3527 = vld [vmem:[%s733 + $0xc] sm:$0xf]
      %v3528 = vld [vmem:[%s733 + $0x10] sm:$0xf]
      %v3529 = vld [vmem:[%s733 + $0x14] sm:$0xf]
      %v3530 = vld [vmem:[%s733 + $0x18] sm:$0xf]
      %v3531 = vld [vmem:[%s733 + $0x1c] sm:$0xf]
      %v3532 = vld [vmem:[%s733 + $0x20] sm:$0xf]
      %v3533 = vld [vmem:[%s733 + $0x24] sm:$0xf]
      %v3534 = vld [vmem:[%s733 + $0x28] sm:$0xf]
      %v3535 = vld [vmem:[%s733 + $0x2c] sm:$0xf]
      %v3536 = vld [vmem:[%s733 + $0x30] sm:$0xf]
      %v3537 = vld [vmem:[%s733 + $0x34] sm:$0xf]
      %v3538 = vld [vmem:[%s733 + $0x38] sm:$0xf]
      %v3539 = vld [vmem:[%s733 + $0x3c] sm:$0xf]
      %v3540 = vld [vmem:[%s733 + $0x40] sm:$0xf]
      %v3541 = vld [vmem:[%s733 + $0x44] sm:$0xf]
      %v3542 = vld [vmem:[%s733 + $0x48] sm:$0xf]
      %v3543 = vld [vmem:[%s733 + $0x4c] sm:$0xf]
      %v3544 = vld [vmem:[%s733 + $0x50] sm:$0xf]
      %v3545 = vld [vmem:[%s733 + $0x54] sm:$0xf]
      %v3546 = vld [vmem:[%s733 + $0x58] sm:$0xf]
      %v3547 = vld [vmem:[%s733 + $0x5c] sm:$0xf]
      %v3548 = vld [vmem:[%s733 + $0x60] sm:$0xf]
      %v3549 = vld [vmem:[%s733 + $0x64] sm:$0xf]
      %v3550 = vld [vmem:[%s733 + $0x68] sm:$0xf]
      %v3551 = vld [vmem:[%s733 + $0x6c] sm:$0xf]
      %v3552 = vld [vmem:[%s733 + $0x70] sm:$0xf]
      %v3553 = vld [vmem:[%s733 + $0x74] sm:$0xf]
      %v3554 = vld [vmem:[%s733 + $0x78] sm:$0xf]
      %v3555 = vld [vmem:[%s733 + $0x7c] sm:$0xf]
      %v3556 = vld [vmem:[%s736] sm:$0x1]
      %v3558 = vlaneseq
      %v3559 = vshrl.u32 %v3558, 7
      %v3560 = vsub.s32 0, %v3559
      %v3561 = vrot.slane %v3556, %v3560
      %v3595 = vunpack.c.l.b16 %v3524
      %v3596 = vunpack.c.l.b16 %v3525
      %v3597 = vunpack.c.l.b16 %v3526
      %v3598 = vunpack.c.l.b16 %v3527
      %v3599 = vunpack.c.l.b16 %v3528
      %v3600 = vunpack.c.l.b16 %v3529
      %v3601 = vunpack.c.l.b16 %v3530
      %v3602 = vunpack.c.l.b16 %v3531
      %v3603 = vunpack.c.l.b16 %v3532
      %v3604 = vunpack.c.l.b16 %v3533
      %v3605 = vunpack.c.l.b16 %v3534
      %v3606 = vunpack.c.l.b16 %v3535
      %v3607 = vunpack.c.l.b16 %v3536
      %v3608 = vunpack.c.l.b16 %v3537
      %v3609 = vunpack.c.l.b16 %v3538
      %v3610 = vunpack.c.l.b16 %v3539
      %v3611 = vunpack.c.l.b16 %v3540
      %v3612 = vunpack.c.l.b16 %v3541
      %v3613 = vunpack.c.l.b16 %v3542
      %v3614 = vunpack.c.l.b16 %v3543
      %v3615 = vunpack.c.l.b16 %v3544
      %v3616 = vunpack.c.l.b16 %v3545
      %v3617 = vunpack.c.l.b16 %v3546
      %v3618 = vunpack.c.l.b16 %v3547
      %v3619 = vunpack.c.l.b16 %v3548
      %v3620 = vunpack.c.l.b16 %v3549
      %v3621 = vunpack.c.l.b16 %v3550
      %v3622 = vunpack.c.l.b16 %v3551
      %v3623 = vunpack.c.l.b16 %v3552
      %v3624 = vunpack.c.l.b16 %v3553
      %v3625 = vunpack.c.l.b16 %v3554
      %v3626 = vunpack.c.l.b16 %v3555
      %v3627 = vpack.c.b16 %v3596, %v3595
      %v3628 = vpack.c.b16 %v3598, %v3597
      %v3629 = vpack.c.b16 %v3600, %v3599
      %v3630 = vpack.c.b16 %v3602, %v3601
      %v3631 = vpack.c.b16 %v3604, %v3603
      %v3632 = vpack.c.b16 %v3606, %v3605
      %v3633 = vpack.c.b16 %v3608, %v3607
      %v3634 = vpack.c.b16 %v3610, %v3609
      %v3635 = vpack.c.b16 %v3612, %v3611
      %v3636 = vpack.c.b16 %v3614, %v3613
      %v3637 = vpack.c.b16 %v3616, %v3615
      %v3638 = vpack.c.b16 %v3618, %v3617
      %v3639 = vpack.c.b16 %v3620, %v3619
      %v3640 = vpack.c.b16 %v3622, %v3621
      %v3641 = vpack.c.b16 %v3624, %v3623
      %v3642 = vpack.c.b16 %v3626, %v3625
      %3659 = vmatprep.subr.bf16.mxu0 0
      %3660 = vmatpush1.bf16.msra.mxu0 %v3627
      %3661 = vmatprep.subr.bf16.mxu0 0
      %3662 = vmatpush1.bf16.msra.mxu0 %v3628
      %3663 = vmatprep.subr.bf16.mxu0 0
      %3664 = vmatpush1.bf16.msra.mxu0 %v3629
      %3665 = vmatprep.subr.bf16.mxu0 0
      %3666 = vmatpush1.bf16.msra.mxu0 %v3630
      %3667 = vmatprep.subr.bf16.mxu0 0
      %3668 = vmatpush1.bf16.msra.mxu0 %v3631
      %3669 = vmatprep.subr.bf16.mxu0 0
      %3670 = vmatpush1.bf16.msra.mxu0 %v3632
      %3671 = vmatprep.subr.bf16.mxu0 0
      %3672 = vmatpush1.bf16.msra.mxu0 %v3633
      %3673 = vmatprep.subr.bf16.mxu0 0
      %3674 = vmatpush1.bf16.msra.mxu0 %v3634
      %3675 = vmatprep.subr.bf16.mxu0 0
      %3676 = vmatpush1.bf16.msra.mxu0 %v3635
      %3677 = vmatprep.subr.bf16.mxu0 0
      %3678 = vmatpush1.bf16.msra.mxu0 %v3636
      %3679 = vmatprep.subr.bf16.mxu0 0
      %3680 = vmatpush1.bf16.msra.mxu0 %v3637
      %3681 = vmatprep.subr.bf16.mxu0 0
      %3682 = vmatpush1.bf16.msra.mxu0 %v3638
      %3683 = vmatprep.subr.bf16.mxu0 0
      %3684 = vmatpush1.bf16.msra.mxu0 %v3639
      %3685 = vmatprep.subr.bf16.mxu0 0
      %3686 = vmatpush1.bf16.msra.mxu0 %v3640
      %3687 = vmatprep.subr.bf16.mxu0 0
      %3688 = vmatpush1.bf16.msra.mxu0 %v3641
      %3689 = vmatprep.subr.bf16.mxu0 0
      %3690 = vmatpush1.bf16.msra.mxu0 %v3642
      %3691 = vmatprep.mubr.bf16.mxu0 %v3517
      %3692 = vmatmul.mubr.bf16.gmra.mrb[0].mxu0 %v3516
      %v3693 = vpop.f32.mrb[0].mxu0
      %v3694 = vadd.f32 %v3561, %v3693
      %v3695 = vpop.f32.mrb[0].mxu0
      %v3696 = vpop.f32.mrb[0].mxu0
      %v3697 = vadd.f32 %v3561, %v3696
      %v3698 = vpop.f32.mrb[0].mxu0
      %3699 = vmatprep.mubr.bf16.mxu0 %v3519
      %3700 = vmatmul.mubr.bf16.gmra.mrb[0].mxu0 %v3518
      %v3701 = vpop.f32.mrb[0].mxu0
      %v3702 = vadd.f32 %v3561, %v3701
      %v3703 = vpop.f32.mrb[0].mxu0
      %v3704 = vpop.f32.mrb[0].mxu0
      %v3705 = vadd.f32 %v3561, %v3704
      %v3706 = vpop.f32.mrb[0].mxu0
      %3707 = vmatprep.mubr.bf16.mxu0 %v3521
      %3708 = vmatmul.mubr.bf16.gmra.mrb[0].mxu0 %v3520
      %v3709 = vpop.f32.mrb[0].mxu0
      %v3710 = vadd.f32 %v3561, %v3709
      %v3711 = vpop.f32.mrb[0].mxu0
      %v3712 = vpop.f32.mrb[0].mxu0
      %v3713 = vadd.f32 %v3561, %v3712
      %v3714 = vpop.f32.mrb[0].mxu0
      %3715 = vmatprep.mubr.bf16.mxu0 %v3523
      %3716 = vmatmul.mubr.bf16.gmra.mrb[0].mxu0 %v3522
      %v3717 = vpop.f32.mrb[0].mxu0
      %v3718 = vadd.f32 %v3561, %v3717
      %v3719 = vpop.f32.mrb[0].mxu0
      %v3720 = vpop.f32.mrb[0].mxu0
      %v3721 = vadd.f32 %v3561, %v3720
      %v3722 = vpop.f32.mrb[0].mxu0
      %3723 = vdwg.mxu0
      %v3724 = vadd.f32 %v3061, %v3694
      %v3725 = vadd.f32 %v3062, %v3697
      %v3726 = vadd.f32 %v3063, %v3702
      %v3727 = vadd.f32 %v3064, %v3705
      %v3728 = vadd.f32 %v3065, %v3710
      %v3729 = vadd.f32 %v3066, %v3713
      %v3730 = vadd.f32 %v3067, %v3718
      %v3731 = vadd.f32 %v3068, %v3721
      %3732 = vst [vmem:[#allocation2] sm:$0xff] %v3724
      %3733 = vst [vmem:[#allocation2 + $0x8] sm:$0xff] %v3725
      %3734 = vst [vmem:[#allocation2 + $0x10] sm:$0xff] %v3726
      %3735 = vst [vmem:[#allocation2 + $0x18] sm:$0xff] %v3727
      %3736 = vst [vmem:[#allocation2 + $0x20] sm:$0xff] %v3728
      %3737 = vst [vmem:[#allocation2 + $0x28] sm:$0xff] %v3729
      %3738 = vst [vmem:[#allocation2 + $0x30] sm:$0xff] %v3730
      %3739 = vst [vmem:[#allocation2 + $0x38] sm:$0xff] %v3731
      %p3740 = scmp.eq.s32.totalorder %s30, 1
      // Predicated region
      $region93: #{wilor_forward.4} parent=87 // pred_check
        %p3741 = pneg %p3740
      $region94: #{wilor_forward.4} parent=87 // pred_check_branch
        %3743 = sbr.rel (%p3741) target = $region96
      $region95: #{wilor_forward.4} parent=87 // pred_region
        %v3744 = vld [vmem:[%s13] sm:$0x1]
        %v3745 = vld [vmem:[%s14] sm:$0x1]
        %3746 = vadd.xlane.f32.xlu0 %v3724
        %v3747 = vpop.xlane.xlu0 %3746
        %3748 = vadd.xlane.f32.xlu0 %v3725
        %v3749 = vpop.xlane.xlu0 %3748
        %3750 = vadd.xlane.f32.xlu0 %v3726
        %v3751 = vpop.xlane.xlu0 %3750
        %3752 = vadd.xlane.f32.xlu0 %v3727
        %v3753 = vpop.xlane.xlu0 %3752
        %3754 = vadd.xlane.f32.xlu0 %v3728
        %v3755 = vpop.xlane.xlu0 %3754
        %3756 = vadd.xlane.f32.xlu0 %v3729
        %v3757 = vpop.xlane.xlu0 %3756
        %3758 = vadd.xlane.f32.xlu0 %v3730
        %v3759 = vpop.xlane.xlu0 %3758
        %3760 = vadd.xlane.f32.xlu0 %v3731
        %v3761 = vpop.xlane.xlu0 %3760
        %v3762 = vmul.f32 %v3747, %v786
        %v3763 = vmul.f32 %v3749, %v786
        %v3764 = vmul.f32 %v3751, %v786
        %v3765 = vmul.f32 %v3753, %v786
        %v3766 = vmul.f32 %v3755, %v786
        %v3767 = vmul.f32 %v3757, %v786
        %v3768 = vmul.f32 %v3759, %v786
        %v3769 = vmul.f32 %v3761, %v786
        %v3770 = vsub.f32 %v3724, %v3762
        %v3771 = vsub.f32 %v3725, %v3763
        %v3772 = vsub.f32 %v3726, %v3764
        %v3773 = vsub.f32 %v3727, %v3765
        %v3774 = vsub.f32 %v3728, %v3766
        %v3775 = vsub.f32 %v3729, %v3767
        %v3776 = vsub.f32 %v3730, %v3768
        %v3777 = vsub.f32 %v3731, %v3769
        %v3778 = vmul.f32 %v3770, %v3770
        %v3779 = vmul.f32 %v3771, %v3771
        %v3780 = vmul.f32 %v3772, %v3772
        %v3781 = vmul.f32 %v3773, %v3773
        %v3782 = vmul.f32 %v3774, %v3774
        %v3783 = vmul.f32 %v3775, %v3775
        %v3784 = vmul.f32 %v3776, %v3776
        %v3785 = vmul.f32 %v3777, %v3777
        %3786 = vadd.xlane.f32.xlu0 %v3778
        %v3787 = vpop.xlane.xlu0 %3786
        %3788 = vadd.xlane.f32.xlu0 %v3779
        %v3789 = vpop.xlane.xlu0 %3788
        %3790 = vadd.xlane.f32.xlu0 %v3780
        %v3791 = vpop.xlane.xlu0 %3790
        %3792 = vadd.xlane.f32.xlu0 %v3781
        %v3793 = vpop.xlane.xlu0 %3792
        %3794 = vadd.xlane.f32.xlu0 %v3782
        %v3795 = vpop.xlane.xlu0 %3794
        %3796 = vadd.xlane.f32.xlu0 %v3783
        %v3797 = vpop.xlane.xlu0 %3796
        %3798 = vadd.xlane.f32.xlu0 %v3784
        %v3799 = vpop.xlane.xlu0 %3798
        %3800 = vadd.xlane.f32.xlu0 %v3785
        %v3801 = vpop.xlane.xlu0 %3800
        %v3802 = vmul.f32 %v3787, %v786
        %v3803 = vmul.f32 %v3789, %v786
        %v3804 = vmul.f32 %v3791, %v786
        %v3805 = vmul.f32 %v3793, %v786
        %v3806 = vmul.f32 %v3795, %v786
        %v3807 = vmul.f32 %v3797, %v786
        %v3808 = vmul.f32 %v3799, %v786
        %v3809 = vmul.f32 %v3801, %v786
        %v3810 = vadd.f32 %v3802, 1e-06
        %v3811 = vadd.f32 %v3803, 1e-06
        %v3812 = vadd.f32 %v3804, 1e-06
        %v3813 = vadd.f32 %v3805, 1e-06
        %v3814 = vadd.f32 %v3806, 1e-06
        %v3815 = vadd.f32 %v3807, 1e-06
        %v3816 = vadd.f32 %v3808, 1e-06
        %v3817 = vadd.f32 %v3809, 1e-06
        %v3818 = vrsqrt.pop %v3810
        %v3819 = vrsqrt.pop %v3811
        %v3820 = vrsqrt.pop %v3812
        %v3821 = vrsqrt.pop %v3813
        %v3822 = vrsqrt.pop %v3814
        %v3823 = vrsqrt.pop %v3815
        %v3824 = vrsqrt.pop %v3816
        %v3825 = vrsqrt.pop %v3817
        %v3826 = vmul.f32 %v3770, %v3818
        %v3827 = vmul.f32 %v3771, %v3819
        %v3828 = vmul.f32 %v3772, %v3820
        %v3829 = vmul.f32 %v3773, %v3821
        %v3830 = vmul.f32 %v3774, %v3822
        %v3831 = vmul.f32 %v3775, %v3823
        %v3832 = vmul.f32 %v3776, %v3824
        %v3833 = vmul.f32 %v3777, %v3825
        %v3835 = vlaneseq
        %v3836 = vshrl.u32 %v3835, 7
        %v3837 = vsub.s32 0, %v3836
        %v3838 = vrot.slane %v3744, %v3837
        %v3840 = vmul.f32 %v3826, %v3838
        %v3841 = vmul.f32 %v3827, %v3838
        %v3842 = vmul.f32 %v3828, %v3838
        %v3843 = vmul.f32 %v3829, %v3838
        %v3844 = vmul.f32 %v3830, %v3838
        %v3845 = vmul.f32 %v3831, %v3838
        %v3846 = vmul.f32 %v3832, %v3838
        %v3847 = vmul.f32 %v3833, %v3838
        %v3849 = vlaneseq
        %v3850 = vshrl.u32 %v3849, 7
        %v3851 = vsub.s32 0, %v3850
        %v3852 = vrot.slane %v3745, %v3851
        %v3854 = vadd.f32 %v3840, %v3852
        %v3855 = vadd.f32 %v3841, %v3852
        %v3856 = vadd.f32 %v3842, %v3852
        %v3857 = vadd.f32 %v3843, %v3852
        %v3858 = vadd.f32 %v3844, %v3852
        %v3859 = vadd.f32 %v3845, %v3852
        %v3860 = vadd.f32 %v3846, %v3852
        %v3861 = vadd.f32 %v3847, %v3852
        %v3862 = vadd.f32 %v3854, %v3855
        %v3863 = vadd.f32 %v3862, %v3856
        %v3864 = vadd.f32 %v3863, %v3857
        %v3865 = vrot.slane %v3864, 4
        %v3866 = vadd.f32 %v3864, %v3865
        %v3867 = vrot.slane %v3866, 2
        %v3868 = vadd.f32 %v3866, %v3867
        %v3869 = vrot.slane %v3868, 1
        %v3870 = vadd.f32 %v3868, %v3869
        %v3871 = vadd.f32 %v3858, %v3859
        %v3872 = vadd.f32 %v3871, %v3860
        %v3873 = vadd.f32 %v3872, %v3861
        %v3874 = vrot.slane %v3873, 4
        %v3875 = vadd.f32 %v3873, %v3874
        %v3876 = vrot.slane %v3875, 2
        %v3877 = vadd.f32 %v3875, %v3876
        %v3878 = vrot.slane %v3877, 1
        %v3879 = vadd.f32 %v3877, %v3878
        %v3880 = vrcp.pop 32.0
        %v3881 = vmul.f32 %v3870, %v3880
        %v3882 = vmul.f32 %v3879, %v3880
        %vm3885 = vcmask 1041409
        %v3886 = vsel %vm3885, %v3882, %v3881
        %3888 = vst [vmem:[%s17] sm:$0x3] %v3886
        %v3889 = vpack.c.bf16 %v3881, %v3881
        %v3890 = vpack.c.bf16 %v3882, %v3882
        %v3891 = vld [vmem:[%s15] sm:$0xf]
        %v3892 = vld [vmem:[%s15 + $0x4] sm:$0xf]
        %v3893 = vld [vmem:[%s15 + $0x8] sm:$0xf]
        %v3894 = vld [vmem:[%s15 + $0xc] sm:$0xf]
        %v3895 = vld [vmem:[%s15 + $0x10] sm:$0xf]
        %v3896 = vld [vmem:[%s15 + $0x14] sm:$0xf]
        %v3897 = vld [vmem:[%s15 + $0x18] sm:$0xf]
        %v3898 = vld [vmem:[%s15 + $0x1c] sm:$0xf]
        %v3899 = vld [vmem:[%s15 + $0x20] sm:$0xf]
        %v3900 = vld [vmem:[%s15 + $0x24] sm:$0xf]
        %v3901 = vld [vmem:[%s15 + $0x28] sm:$0xf]
        %v3902 = vld [vmem:[%s15 + $0x2c] sm:$0xf]
        %v3903 = vld [vmem:[%s15 + $0x30] sm:$0xf]
        %v3904 = vld [vmem:[%s15 + $0x34] sm:$0xf]
        %v3905 = vld [vmem:[%s15 + $0x38] sm:$0xf]
        %v3906 = vld [vmem:[%s15 + $0x3c] sm:$0xf]
        %v3907 = vld [vmem:[%s16] sm:$0x1]
        %v3909 = vlaneseq
        %v3910 = vshrl.u32 %v3909, 7
        %v3911 = vsub.s32 0, %v3910
        %v3912 = vrot.slane %v3907, %v3911
        %v3916 = vunpack.c.l.b16 %v3889
        %v3917 = vunpack.c.l.b16 %v3890
        %v3918 = vsel %vm3885, %v3917, %v3916
        %v3919 = vpack.c.b16 %v3918, %v3918
        %v3937 = vunpack.c.l.b16 %v3891
        %v3938 = vunpack.c.l.b16 %v3892
        %v3939 = vunpack.c.l.b16 %v3893
        %v3940 = vunpack.c.l.b16 %v3894
        %v3941 = vunpack.c.l.b16 %v3895
        %v3942 = vunpack.c.l.b16 %v3896
        %v3943 = vunpack.c.l.b16 %v3897
        %v3944 = vunpack.c.l.b16 %v3898
        %v3945 = vunpack.c.l.b16 %v3899
        %v3946 = vunpack.c.l.b16 %v3900
        %v3947 = vunpack.c.l.b16 %v3901
        %v3948 = vunpack.c.l.b16 %v3902
        %v3949 = vunpack.c.l.b16 %v3903
        %v3950 = vunpack.c.l.b16 %v3904
        %v3951 = vunpack.c.l.b16 %v3905
        %v3952 = vunpack.c.l.b16 %v3906
        %v3953 = vpack.c.b16 %v3938, %v3937
        %v3954 = vpack.c.b16 %v3940, %v3939
        %v3955 = vpack.c.b16 %v3942, %v3941
        %v3956 = vpack.c.b16 %v3944, %v3943
        %v3957 = vpack.c.b16 %v3946, %v3945
        %v3958 = vpack.c.b16 %v3948, %v3947
        %v3959 = vpack.c.b16 %v3950, %v3949
        %v3960 = vpack.c.b16 %v3952, %v3951
        %3969 = vmatprep.subr.bf16.mxu0 0
        %3970 = vmatpush1.bf16.msra.mxu0 %v3953
        %3971 = vmatprep.subr.bf16.mxu0 0
        %3972 = vmatpush1.bf16.msra.mxu0 %v3954
        %3973 = vmatprep.subr.bf16.mxu0 0
        %3974 = vmatpush1.bf16.msra.mxu0 %v3955
        %3975 = vmatprep.subr.bf16.mxu0 0
        %3976 = vmatpush1.bf16.msra.mxu0 %v3956
        %3977 = vmatprep.subr.bf16.mxu0 0
        %3978 = vmatpush1.bf16.msra.mxu0 %v3957
        %3979 = vmatprep.subr.bf16.mxu0 0
        %3980 = vmatpush1.bf16.msra.mxu0 %v3958
        %3981 = vmatprep.subr.bf16.mxu0 0
        %3982 = vmatpush1.bf16.msra.mxu0 %v3959
        %3983 = vmatprep.subr.bf16.mxu0 0
        %3984 = vmatpush1.bf16.msra.mxu0 %v3960
        %3985 = vmatprep.subr.bf16.mxu0 0
        %3986 = vmatpush1.bf16.msra.mxu0 0
        %3987 = vmatprep.subr.bf16.mxu0 0
        %3988 = vmatpush1.bf16.msra.mxu0 0
        %3989 = vmatprep.subr.bf16.mxu0 0
        %3990 = vmatpush1.bf16.msra.mxu0 0
        %3991 = vmatprep.subr.bf16.mxu0 0
        %3992 = vmatpush1.bf16.msra.mxu0 0
        %3993 = vmatprep.subr.bf16.mxu0 0
        %3994 = vmatpush1.bf16.msra.mxu0 0
        %3995 = vmatprep.subr.bf16.mxu0 0
        %3996 = vmatpush1.bf16.msra.mxu0 0
        %3997 = vmatprep.subr.bf16.mxu0 0
        %3998 = vmatpush1.bf16.msra.mxu0 0
        %3999 = vmatprep.subr.bf16.mxu0 0
        %4000 = vmatpush1.bf16.msra.mxu0 0
        %4001 = vmatprep.mubr.bf16.mxu0 0
        %4002 = vmatmul.mubr.bf16.gmra.mrb[0].mxu0 %v3919
        %v4003 = vpop.f32.mrb[0].mxu0
        %v4004 = vadd.f32 %v3912, %v4003
        %v4005 = vpop.f32.mrb[0].mxu0
        %v4006 = vpop.f32.mrb[0].mxu0
        %v4007 = vpop.f32.mrb[0].mxu0
        %4008 = vdwg.mxu0
        %4009 = vst [vmem:[%s18] sm:$0x3] %v4004
      $region96: #{wilor_forward.4} parent=87 // pred_fallthru
        _
      // Predicated region
      $region97: #{wilor_forward.4} parent=87 // pred_check
        %p4010 = pneg %p460
      $region98: #{wilor_forward.4} parent=87 // pred_check_branch
        %4012 = sbr.rel (%p4010) target = $region100
      $region99: #{wilor_forward.4} parent=87 // pred_region
        _
      $region100: #{wilor_forward.4} parent=87 // pred_fallthru
        _
      // Predicated region
      $region101: #{wilor_forward.4} parent=87 // pred_check
        %p4013 = pneg %p481
      $region102: #{wilor_forward.4} parent=87 // pred_check_branch
        %4015 = sbr.rel (%p4013) target = $region104
      $region103: #{wilor_forward.4} parent=87 // pred_region
        _
      $region104: #{wilor_forward.4} parent=87 // pred_fallthru
        _
      // Predicated region
      $region105: #{wilor_forward.4} parent=87 // pred_check
        %p4016 = pneg %p460
      $region106: #{wilor_forward.4} parent=87 // pred_check_branch
        %4018 = sbr.rel (%p4016) target = $region108
      $region107: #{wilor_forward.4} parent=87 // pred_region
        _
      $region108: #{wilor_forward.4} parent=87 // pred_fallthru
        _
      // Predicated region
      $region109: #{wilor_forward.4} parent=87 // pred_check
        %p4019 = pneg %p481
      $region110: #{wilor_forward.4} parent=87 // pred_check_branch
        %4021 = sbr.rel (%p4019) target = $region112
      $region111: #{wilor_forward.4} parent=87 // pred_region
        _
      $region112: #{wilor_forward.4} parent=87 // pred_fallthru
        _
    $region88: #{wilor_forward.4} parent=5 // pred_fallthru
      _
    %p4022 = scmp.le.s32.totalorder 2, %s25
    // Predicated region
    $region113: #{wilor_forward.4} parent=5 // pred_check
      %p4023 = pneg %p4022
    $region114: #{wilor_forward.4} parent=5 // pred_check_branch
      %4025 = sbr.rel (%p4023) target = $region116
    $region115: #{wilor_forward.4} parent=5 // pred_region
      %s4026 = ssub.s32 %s25, 2
    $region116: #{wilor_forward.4} parent=5 // pred_fallthru
      _
  $region6: #{wilor_forward.4} parent=0 // loop_footer
    %s29 = sadd.s32 1, %s25
  $region7: #{wilor_forward.4} parent=0 // loop_footer_branch
    %24 = sbr.rel target = $region3
  $region8: #{wilor_forward.4} parent=0 // loop_exit
    _

// kernel: wilor_forward.5
$region0: #{wilor_forward.5}
  #allocation0 [shape = 'u32[]', space=smem, size = 0x4, offset = 0x4, fixed_abs, tag = 'smem constant byte address 0x4 - core index']
  #allocation1 [shape = 'u32[144,128]{1,0:T(1,128)}', space=vmem, size = 0x12000, scoped, tag = 'internal scratch']
  %s0 = inlined_call_operand.vmem [shape: bf16[2,512], index: 0, kind: input, shape index: {}]
  %s1 = inlined_call_operand.vmem [shape: bf16[512,128], index: 1, kind: input, shape index: {}]
  %s2 = inlined_call_operand.vmem [shape: f32[1,128], index: 2, kind: input, shape index: {}]
  %s3 = inlined_call_operand.vmem [shape: bf16[128,128], index: 3, kind: input, shape index: {}]
  %s4 = inlined_call_operand.vmem [shape: f32[1,128], index: 4, kind: input, shape index: {}]
  %s5 = inlined_call_operand.vmem [shape: f32[2,128], index: 5, kind: output, shape index: {}]
  %s6 = sld [smem:[#allocation0]]
  $region30: #{wilor_forward.5} parent=0
    _
  %s8 = ssub.s32 1, %s6
  %s9 = scalar_select 0, %s8, %s6
  // Predicated region
  $region2: #{wilor_forward.5} parent=0 // pred_check
    _
  $region3: #{wilor_forward.5} parent=0 // pred_check_branch
    %11 = sbr.rel (0) target = $region5
  $region4: #{wilor_forward.5} parent=0 // pred_region
    _
  $region5: #{wilor_forward.5} parent=0 // pred_fallthru
    _
  // Predicated region
  $region6: #{wilor_forward.5} parent=0 // pred_check
    _
  $region7: #{wilor_forward.5} parent=0 // pred_check_branch
    %13 = sbr.rel (0) target = $region9
  $region8: #{wilor_forward.5} parent=0 // pred_region
    _
  $region9: #{wilor_forward.5} parent=0 // pred_fallthru
    _
  // Predicated region
  $region10: #{wilor_forward.5} parent=0 // pred_check
    _
  $region11: #{wilor_forward.5} parent=0 // pred_check_branch
    %15 = sbr.rel (0) target = $region13
  $region12: #{wilor_forward.5} parent=0 // pred_region
    _
  $region13: #{wilor_forward.5} parent=0 // pred_fallthru
    _
  // Predicated region
  $region14: #{wilor_forward.5} parent=0 // pred_check
    _
  $region15: #{wilor_forward.5} parent=0 // pred_check_branch
    %17 = sbr.rel (0) target = $region17
  $region16: #{wilor_forward.5} parent=0 // pred_region
    _
  $region17: #{wilor_forward.5} parent=0 // pred_fallthru
    _
  // Predicated region
  $region18: #{wilor_forward.5} parent=0 // pred_check
    _
  $region19: #{wilor_forward.5} parent=0 // pred_check_branch
    %19 = sbr.rel (0) target = $region21
  $region20: #{wilor_forward.5} parent=0 // pred_region
    _
  $region21: #{wilor_forward.5} parent=0 // pred_fallthru
    _
  %v21 = vld [vmem:[%s0] sm:$0xf]
  %v22 = vld [vmem:[%s1] sm:$0xf]
  %v23 = vld [vmem:[%s1 + $0x4] sm:$0xf]
  %v24 = vld [vmem:[%s1 + $0x8] sm:$0xf]
  %v25 = vld [vmem:[%s1 + $0xc] sm:$0xf]
  %v26 = vld [vmem:[%s1 + $0x10] sm:$0xf]
  %v27 = vld [vmem:[%s1 + $0x14] sm:$0xf]
  %v28 = vld [vmem:[%s1 + $0x18] sm:$0xf]
  %v29 = vld [vmem:[%s1 + $0x1c] sm:$0xf]
  %v30 = vld [vmem:[%s1 + $0x20] sm:$0xf]
  %v31 = vld [vmem:[%s1 + $0x24] sm:$0xf]
  %v32 = vld [vmem:[%s1 + $0x28] sm:$0xf]
  %v33 = vld [vmem:[%s1 + $0x2c] sm:$0xf]
  %v34 = vld [vmem:[%s1 + $0x30] sm:$0xf]
  %v35 = vld [vmem:[%s1 + $0x34] sm:$0xf]
  %v36 = vld [vmem:[%s1 + $0x38] sm:$0xf]
  %v37 = vld [vmem:[%s1 + $0x3c] sm:$0xf]
  %v38 = vld [vmem:[%s1 + $0x40] sm:$0xf]
  %v39 = vld [vmem:[%s1 + $0x44] sm:$0xf]
  %v40 = vld [vmem:[%s1 + $0x48] sm:$0xf]
  %v41 = vld [vmem:[%s1 + $0x4c] sm:$0xf]
  %v42 = vld [vmem:[%s1 + $0x50] sm:$0xf]
  %v43 = vld [vmem:[%s1 + $0x54] sm:$0xf]
  %v44 = vld [vmem:[%s1 + $0x58] sm:$0xf]
  %v45 = vld [vmem:[%s1 + $0x5c] sm:$0xf]
  %v46 = vld [vmem:[%s1 + $0x60] sm:$0xf]
  %v47 = vld [vmem:[%s1 + $0x64] sm:$0xf]
  %v48 = vld [vmem:[%s1 + $0x68] sm:$0xf]
  %v49 = vld [vmem:[%s1 + $0x6c] sm:$0xf]
  %v50 = vld [vmem:[%s1 + $0x70] sm:$0xf]
  %v51 = vld [vmem:[%s1 + $0x74] sm:$0xf]
  %v52 = vld [vmem:[%s1 + $0x78] sm:$0xf]
  %v53 = vld [vmem:[%s1 + $0x7c] sm:$0xf]
  %v54 = vld [vmem:[%s1 + $0x80] sm:$0xf]
  %v55 = vld [vmem:[%s1 + $0x84] sm:$0xf]
  %v56 = vld [vmem:[%s1 + $0x88] sm:$0xf]
  %v57 = vld [vmem:[%s1 + $0x8c] sm:$0xf]
  %v58 = vld [vmem:[%s1 + $0x90] sm:$0xf]
  %v59 = vld [vmem:[%s1 + $0x94] sm:$0xf]
  %v60 = vld [vmem:[%s1 + $0x98] sm:$0xf]
  %v61 = vld [vmem:[%s1 + $0x9c] sm:$0xf]
  %v62 = vld [vmem:[%s1 + $0xa0] sm:$0xf]
  %v63 = vld [vmem:[%s1 + $0xa4] sm:$0xf]
  %v64 = vld [vmem:[%s1 + $0xa8] sm:$0xf]
  %v65 = vld [vmem:[%s1 + $0xac] sm:$0xf]
  %v66 = vld [vmem:[%s1 + $0xb0] sm:$0xf]
  %v67 = vld [vmem:[%s1 + $0xb4] sm:$0xf]
  %v68 = vld [vmem:[%s1 + $0xb8] sm:$0xf]
  %v69 = vld [vmem:[%s1 + $0xbc] sm:$0xf]
  %v70 = vld [vmem:[%s1 + $0xc0] sm:$0xf]
  %v71 = vld [vmem:[%s1 + $0xc4] sm:$0xf]
  %v72 = vld [vmem:[%s1 + $0xc8] sm:$0xf]
  %v73 = vld [vmem:[%s1 + $0xcc] sm:$0xf]
  %v74 = vld [vmem:[%s1 + $0xd0] sm:$0xf]
  %v75 = vld [vmem:[%s1 + $0xd4] sm:$0xf]
  %v76 = vld [vmem:[%s1 + $0xd8] sm:$0xf]
  %v77 = vld [vmem:[%s1 + $0xdc] sm:$0xf]
  %v78 = vld [vmem:[%s1 + $0xe0] sm:$0xf]
  %v79 = vld [vmem:[%s1 + $0xe4] sm:$0xf]
  %v80 = vld [vmem:[%s1 + $0xe8] sm:$0xf]
  %v81 = vld [vmem:[%s1 + $0xec] sm:$0xf]
  %v82 = vld [vmem:[%s1 + $0xf0] sm:$0xf]
  %v83 = vld [vmem:[%s1 + $0xf4] sm:$0xf]
  %v84 = vld [vmem:[%s1 + $0xf8] sm:$0xf]
  %v85 = vld [vmem:[%s1 + $0xfc] sm:$0xf]
  %v86 = vld [vmem:[%s2] sm:$0x1]
  %v88 = vlaneseq
  %v89 = vshrl.u32 %v88, 7
  %v90 = vsub.s32 0, %v89
  %v91 = vrot.slane %v86, %v90
  %v95 = vunpack.c.l.s4 1966171168
  %v96 = vunpack.c.0.s8 %v95
  %v97 = vlaneseq
  %v98 = vshrl.u32 %v97, 7
  %v99 = vsub.s32 %v96, %v98
  %v100 = vrot.slane %v21, %v99
  %v101 = vcombine.high %v100, %v100
  %v103 = vunpack.c.l.s4 1966171168
  %v104 = vunpack.c.0.s8 %v103
  %v105 = vlaneseq
  %v106 = vshrl.u32 %v105, 7
  %v107 = vsub.s32 %v104, %v106
  %v108 = vrot.slane %v100, %v107
  %v110 = vunpack.c.l.s4 1966171168
  %v111 = vunpack.c.0.s8 %v110
  %v112 = vlaneseq
  %v113 = vshrl.u32 %v112, 7
  %v114 = vsub.s32 %v111, %v113
  %v115 = vrot.slane %v101, %v114
  %v116 = vcombine.high %v108, %v108
  %v117 = vcombine.high %v115, %v115
  %v186 = vunpack.c.l.b16 %v22
  %v187 = vunpack.c.l.b16 %v23
  %v188 = vunpack.c.l.b16 %v24
  %v189 = vunpack.c.l.b16 %v25
  %v190 = vunpack.c.l.b16 %v26
  %v191 = vunpack.c.l.b16 %v27
  %v192 = vunpack.c.l.b16 %v28
  %v193 = vunpack.c.l.b16 %v29
  %v194 = vunpack.c.l.b16 %v30
  %v195 = vunpack.c.l.b16 %v31
  %v196 = vunpack.c.l.b16 %v32
  %v197 = vunpack.c.l.b16 %v33
  %v198 = vunpack.c.l.b16 %v34
  %v199 = vunpack.c.l.b16 %v35
  %v200 = vunpack.c.l.b16 %v36
  %v201 = vunpack.c.l.b16 %v37
  %v202 = vunpack.c.l.b16 %v38
  %v203 = vunpack.c.l.b16 %v39
  %v204 = vunpack.c.l.b16 %v40
  %v205 = vunpack.c.l.b16 %v41
  %v206 = vunpack.c.l.b16 %v42
  %v207 = vunpack.c.l.b16 %v43
  %v208 = vunpack.c.l.b16 %v44
  %v209 = vunpack.c.l.b16 %v45
  %v210 = vunpack.c.l.b16 %v46
  %v211 = vunpack.c.l.b16 %v47
  %v212 = vunpack.c.l.b16 %v48
  %v213 = vunpack.c.l.b16 %v49
  %v214 = vunpack.c.l.b16 %v50
  %v215 = vunpack.c.l.b16 %v51
  %v216 = vunpack.c.l.b16 %v52
  %v217 = vunpack.c.l.b16 %v53
  %v218 = vunpack.c.l.b16 %v54
  %v219 = vunpack.c.l.b16 %v55
  %v220 = vunpack.c.l.b16 %v56
  %v221 = vunpack.c.l.b16 %v57
  %v222 = vunpack.c.l.b16 %v58
  %v223 = vunpack.c.l.b16 %v59
  %v224 = vunpack.c.l.b16 %v60
  %v225 = vunpack.c.l.b16 %v61
  %v226 = vunpack.c.l.b16 %v62
  %v227 = vunpack.c.l.b16 %v63
  %v228 = vunpack.c.l.b16 %v64
  %v229 = vunpack.c.l.b16 %v65
  %v230 = vunpack.c.l.b16 %v66
  %v231 = vunpack.c.l.b16 %v67
  %v232 = vunpack.c.l.b16 %v68
  %v233 = vunpack.c.l.b16 %v69
  %v234 = vunpack.c.l.b16 %v70
  %v235 = vunpack.c.l.b16 %v71
  %v236 = vunpack.c.l.b16 %v72
  %v237 = vunpack.c.l.b16 %v73
  %v238 = vunpack.c.l.b16 %v74
  %v239 = vunpack.c.l.b16 %v75
  %v240 = vunpack.c.l.b16 %v76
  %v241 = vunpack.c.l.b16 %v77
  %v242 = vunpack.c.l.b16 %v78
  %v243 = vunpack.c.l.b16 %v79
  %v244 = vunpack.c.l.b16 %v80
  %v245 = vunpack.c.l.b16 %v81
  %v246 = vunpack.c.l.b16 %v82
  %v247 = vunpack.c.l.b16 %v83
  %v248 = vunpack.c.l.b16 %v84
  %v249 = vunpack.c.l.b16 %v85
  %v250 = vpack.c.b16 %v187, %v186
  %v251 = vpack.c.b16 %v189, %v188
  %v252 = vpack.c.b16 %v191, %v190
  %v253 = vpack.c.b16 %v193, %v192
  %v254 = vpack.c.b16 %v195, %v194
  %v255 = vpack.c.b16 %v197, %v196
  %v256 = vpack.c.b16 %v199, %v198
  %v257 = vpack.c.b16 %v201, %v200
  %v258 = vpack.c.b16 %v203, %v202
  %v259 = vpack.c.b16 %v205, %v204
  %v260 = vpack.c.b16 %v207, %v206
  %v261 = vpack.c.b16 %v209, %v208
  %v262 = vpack.c.b16 %v211, %v210
  %v263 = vpack.c.b16 %v213, %v212
  %v264 = vpack.c.b16 %v215, %v214
  %v265 = vpack.c.b16 %v217, %v216
  %v266 = vpack.c.b16 %v219, %v218
  %v267 = vpack.c.b16 %v221, %v220
  %v268 = vpack.c.b16 %v223, %v222
  %v269 = vpack.c.b16 %v225, %v224
  %v270 = vpack.c.b16 %v227, %v226
  %v271 = vpack.c.b16 %v229, %v228
  %v272 = vpack.c.b16 %v231, %v230
  %v273 = vpack.c.b16 %v233, %v232
  %v274 = vpack.c.b16 %v235, %v234
  %v275 = vpack.c.b16 %v237, %v236
  %v276 = vpack.c.b16 %v239, %v238
  %v277 = vpack.c.b16 %v241, %v240
  %v278 = vpack.c.b16 %v243, %v242
  %v279 = vpack.c.b16 %v245, %v244
  %v280 = vpack.c.b16 %v247, %v246
  %v281 = vpack.c.b16 %v249, %v248
  %314 = vmatprep.subr.bf16.mxu0 0
  %315 = vmatpush1.bf16.msra.mxu0 %v250
  %316 = vmatprep.subr.bf16.mxu0 0
  %317 = vmatpush1.bf16.msra.mxu0 %v251
  %318 = vmatprep.subr.bf16.mxu0 0
  %319 = vmatpush1.bf16.msra.mxu0 %v252
  %320 = vmatprep.subr.bf16.mxu0 0
  %321 = vmatpush1.bf16.msra.mxu0 %v253
  %322 = vmatprep.subr.bf16.mxu0 0
  %323 = vmatpush1.bf16.msra.mxu0 %v254
  %324 = vmatprep.subr.bf16.mxu0 0
  %325 = vmatpush1.bf16.msra.mxu0 %v255
  %326 = vmatprep.subr.bf16.mxu0 0
  %327 = vmatpush1.bf16.msra.mxu0 %v256
  %328 = vmatprep.subr.bf16.mxu0 0
  %329 = vmatpush1.bf16.msra.mxu0 %v257
  %330 = vmatprep.subr.bf16.mxu0 0
  %331 = vmatpush1.bf16.msra.mxu0 %v258
  %332 = vmatprep.subr.bf16.mxu0 0
  %333 = vmatpush1.bf16.msra.mxu0 %v259
  %334 = vmatprep.subr.bf16.mxu0 0
  %335 = vmatpush1.bf16.msra.mxu0 %v260
  %336 = vmatprep.subr.bf16.mxu0 0
  %337 = vmatpush1.bf16.msra.mxu0 %v261
  %338 = vmatprep.subr.bf16.mxu0 0
  %339 = vmatpush1.bf16.msra.mxu0 %v262
  %340 = vmatprep.subr.bf16.mxu0 0
  %341 = vmatpush1.bf16.msra.mxu0 %v263
  %342 = vmatprep.subr.bf16.mxu0 0
  %343 = vmatpush1.bf16.msra.mxu0 %v264
  %344 = vmatprep.subr.bf16.mxu0 0
  %345 = vmatpush1.bf16.msra.mxu0 %v265
  %346 = vmatprep.mubr.bf16.mxu0 %v115
  %347 = vmatmul.mubr.bf16.gmra.mrb[0].mxu0 %v108
  %v348 = vpop.f32.mrb[0].mxu0
  %v349 = vadd.f32 %v91, %v348
  %v350 = vpop.f32.mrb[0].mxu0
  %v351 = vpop.f32.mrb[0].mxu0
  %v352 = vpop.f32.mrb[0].mxu0
  %353 = vdwg.mxu0
  %354 = vmatprep.subr.bf16.mxu0 0
  %355 = vmatpush1.bf16.msra.mxu0 %v266
  %356 = vmatprep.subr.bf16.mxu0 0
  %357 = vmatpush1.bf16.msra.mxu0 %v267
  %358 = vmatprep.subr.bf16.mxu0 0
  %359 = vmatpush1.bf16.msra.mxu0 %v268
  %360 = vmatprep.subr.bf16.mxu0 0
  %361 = vmatpush1.bf16.msra.mxu0 %v269
  %362 = vmatprep.subr.bf16.mxu0 0
  %363 = vmatpush1.bf16.msra.mxu0 %v270
  %364 = vmatprep.subr.bf16.mxu0 0
  %365 = vmatpush1.bf16.msra.mxu0 %v271
  %366 = vmatprep.subr.bf16.mxu0 0
  %367 = vmatpush1.bf16.msra.mxu0 %v272
  %368 = vmatprep.subr.bf16.mxu0 0
  %369 = vmatpush1.bf16.msra.mxu0 %v273
  %370 = vmatprep.subr.bf16.mxu0 0
  %371 = vmatpush1.bf16.msra.mxu0 %v274
  %372 = vmatprep.subr.bf16.mxu0 0
  %373 = vmatpush1.bf16.msra.mxu0 %v275
  %374 = vmatprep.subr.bf16.mxu0 0
  %375 = vmatpush1.bf16.msra.mxu0 %v276
  %376 = vmatprep.subr.bf16.mxu0 0
  %377 = vmatpush1.bf16.msra.mxu0 %v277
  %378 = vmatprep.subr.bf16.mxu0 0
  %379 = vmatpush1.bf16.msra.mxu0 %v278
  %380 = vmatprep.subr.bf16.mxu0 0
  %381 = vmatpush1.bf16.msra.mxu0 %v279
  %382 = vmatprep.subr.bf16.mxu0 0
  %383 = vmatpush1.bf16.msra.mxu0 %v280
  %384 = vmatprep.subr.bf16.mxu0 0
  %385 = vmatpush1.bf16.msra.mxu0 %v281
  %386 = vmatprep.mubr.bf16.mxu0 %v117
  %387 = vmatmul.mubr.bf16.gmra.mrb[0].mxu0 %v116
  %v388 = vpop.f32.mrb[0].mxu0
  %v389 = vadd.f32 %v349, %v388
  %v390 = vpop.f32.mrb[0].mxu0
  %v391 = vpop.f32.mrb[0].mxu0
  %v392 = vpop.f32.mrb[0].mxu0
  %393 = vdwg.mxu0
  %v394 = vmul.f32 %v389, %v389
  %v395 = vmul.f32 %v389, %v394
  %v396 = vmul.f32 %v395, 0.044715
  %v397 = vadd.f32 %v389, %v396
  %v398 = vmul.f32 %v397, 0.7978846
  %v399 = vtanh.pop %v398
  %v400 = vadd.f32 %v399, 1.0
  %v401 = vmul.f32 %v400, 0.5
  %v402 = vmul.f32 %v389, %v401
  %v403 = vpack.c.bf16 %v402, %v402
  %v404 = vld [vmem:[%s3] sm:$0xf]
  %v405 = vld [vmem:[%s3 + $0x4] sm:$0xf]
  %v406 = vld [vmem:[%s3 + $0x8] sm:$0xf]
  %v407 = vld [vmem:[%s3 + $0xc] sm:$0xf]
  %v408 = vld [vmem:[%s3 + $0x10] sm:$0xf]
  %v409 = vld [vmem:[%s3 + $0x14] sm:$0xf]
  %v410 = vld [vmem:[%s3 + $0x18] sm:$0xf]
  %v411 = vld [vmem:[%s3 + $0x1c] sm:$0xf]
  %v412 = vld [vmem:[%s3 + $0x20] sm:$0xf]
  %v413 = vld [vmem:[%s3 + $0x24] sm:$0xf]
  %v414 = vld [vmem:[%s3 + $0x28] sm:$0xf]
  %v415 = vld [vmem:[%s3 + $0x2c] sm:$0xf]
  %v416 = vld [vmem:[%s3 + $0x30] sm:$0xf]
  %v417 = vld [vmem:[%s3 + $0x34] sm:$0xf]
  %v418 = vld [vmem:[%s3 + $0x38] sm:$0xf]
  %v419 = vld [vmem:[%s3 + $0x3c] sm:$0xf]
  %v420 = vld [vmem:[%s4] sm:$0x1]
  %v422 = vlaneseq
  %v423 = vshrl.u32 %v422, 7
  %v424 = vsub.s32 0, %v423
  %v425 = vrot.slane %v420, %v424
  %v443 = vunpack.c.l.b16 %v404
  %v444 = vunpack.c.l.b16 %v405
  %v445 = vunpack.c.l.b16 %v406
  %v446 = vunpack.c.l.b16 %v407
  %v447 = vunpack.c.l.b16 %v408
  %v448 = vunpack.c.l.b16 %v409
  %v449 = vunpack.c.l.b16 %v410
  %v450 = vunpack.c.l.b16 %v411
  %v451 = vunpack.c.l.b16 %v412
  %v452 = vunpack.c.l.b16 %v413
  %v453 = vunpack.c.l.b16 %v414
  %v454 = vunpack.c.l.b16 %v415
  %v455 = vunpack.c.l.b16 %v416
  %v456 = vunpack.c.l.b16 %v417
  %v457 = vunpack.c.l.b16 %v418
  %v458 = vunpack.c.l.b16 %v419
  %v459 = vpack.c.b16 %v444, %v443
  %v460 = vpack.c.b16 %v446, %v445
  %v461 = vpack.c.b16 %v448, %v447
  %v462 = vpack.c.b16 %v450, %v449
  %v463 = vpack.c.b16 %v452, %v451
  %v464 = vpack.c.b16 %v454, %v453
  %v465 = vpack.c.b16 %v456, %v455
  %v466 = vpack.c.b16 %v458, %v457
  %475 = vmatprep.subr.bf16.mxu0 0
  %476 = vmatpush1.bf16.msra.mxu0 %v459
  %477 = vmatprep.subr.bf16.mxu0 0
  %478 = vmatpush1.bf16.msra.mxu0 %v460
  %479 = vmatprep.subr.bf16.mxu0 0
  %480 = vmatpush1.bf16.msra.mxu0 %v461
  %481 = vmatprep.subr.bf16.mxu0 0
  %482 = vmatpush1.bf16.msra.mxu0 %v462
  %483 = vmatprep.subr.bf16.mxu0 0
  %484 = vmatpush1.bf16.msra.mxu0 %v463
  %485 = vmatprep.subr.bf16.mxu0 0
  %486 = vmatpush1.bf16.msra.mxu0 %v464
  %487 = vmatprep.subr.bf16.mxu0 0
  %488 = vmatpush1.bf16.msra.mxu0 %v465
  %489 = vmatprep.subr.bf16.mxu0 0
  %490 = vmatpush1.bf16.msra.mxu0 %v466
  %491 = vmatprep.subr.bf16.mxu0 0
  %492 = vmatpush1.bf16.msra.mxu0 0
  %493 = vmatprep.subr.bf16.mxu0 0
  %494 = vmatpush1.bf16.msra.mxu0 0
  %495 = vmatprep.subr.bf16.mxu0 0
  %496 = vmatpush1.bf16.msra.mxu0 0
  %497 = vmatprep.subr.bf16.mxu0 0
  %498 = vmatpush1.bf16.msra.mxu0 0
  %499 = vmatprep.subr.bf16.mxu0 0
  %500 = vmatpush1.bf16.msra.mxu0 0
  %501 = vmatprep.subr.bf16.mxu0 0
  %502 = vmatpush1.bf16.msra.mxu0 0
  %503 = vmatprep.subr.bf16.mxu0 0
  %504 = vmatpush1.bf16.msra.mxu0 0
  %505 = vmatprep.subr.bf16.mxu0 0
  %506 = vmatpush1.bf16.msra.mxu0 0
  %507 = vmatprep.mubr.bf16.mxu0 0
  %508 = vmatmul.mubr.bf16.gmra.mrb[0].mxu0 %v403
  %v509 = vpop.f32.mrb[0].mxu0
  %v510 = vadd.f32 %v425, %v509
  %v511 = vpop.f32.mrb[0].mxu0
  %v512 = vpop.f32.mrb[0].mxu0
  %v513 = vpop.f32.mrb[0].mxu0
  %514 = vdwg.mxu0
  %515 = vst [vmem:[%s5] sm:$0x3] %v510
  // Predicated region
  $region22: #{wilor_forward.5} parent=0 // pred_check
    _
  $region23: #{wilor_forward.5} parent=0 // pred_check_branch
    %517 = sbr.rel (0) target = $region25
  $region24: #{wilor_forward.5} parent=0 // pred_region
    _
  $region25: #{wilor_forward.5} parent=0 // pred_fallthru
    _
  // Predicated region
  $region26: #{wilor_forward.5} parent=0 // pred_check
    _
  $region27: #{wilor_forward.5} parent=0 // pred_check_branch
    %519 = sbr.rel (0) target = $region29
  $region28: #{wilor_forward.5} parent=0 // pred_region
    _
  $region29: #{wilor_forward.5} parent=0 // pred_fallthru
    _

</llo_original>
